<compile_context>
chip_gen: v5e
topology: v5e:2x2
jax: 0.10.0
libtpu: 0.0.40
codegen_flags: <defaults>
</compile_context>

<pallas_src>
import functools

import jax
import jax.numpy as jnp
from jax.experimental import pallas as pl
from jax.experimental.pallas import tpu as pltpu


def _round_up(x, m):
    return ((x + m - 1) // m) * m


@functools.lru_cache(maxsize=None)
def _tpu_config():
    """Returns (tn_lanes, vmem_limit_bytes) keyed off the local TPU generation."""
    kind = ""
    try:
        kind = jax.devices()[0].device_kind.lower()
    except Exception:
        pass
    vmem_cap = None
    try:
        vmem_cap = int(getattr(pltpu.get_tpu_info(), "vmem_capacity_bytes", 0)) or None
    except Exception:
        vmem_cap = None
    wide_mxu = ("v6" in kind) or ("v7" in kind)          # 256-wide MXU generations
    tn = 256 if wide_mxu else 128
    if vmem_cap is None:
        vmem_cap = 64 * 1024 * 1024 if "v7" in kind else 128 * 1024 * 1024
    vmem_limit = int(min((vmem_cap * 3) // 4, 96 * 1024 * 1024))
    return tn, vmem_limit


# ----------------------------------------------------------------------------
# Tiled matmul + bias (+ReLU / +complex spectral mask) Pallas kernels
# ----------------------------------------------------------------------------
def _mm_bias_kernel(a_ref, b_ref, bias_ref, o_ref, *, relu):
    acc = jnp.dot(a_ref[...], b_ref[...], preferred_element_type=jnp.float32)
    acc = acc + bias_ref[...]
    if relu:
        acc = jnp.maximum(acc, 0.0)
    o_ref[...] = acc.astype(o_ref.dtype)


def _mm_bias_cmask_kernel(a_ref, b_ref, bias_ref, s_ref, o_ref):
    # up2 conv-transpose matmul with the complex spectral mask fused into the
    # epilogue: output lane 0 = real, lane 1 = imag of (dec * spec).
    dec = jnp.dot(a_ref[...], b_ref[...], preferred_element_type=jnp.float32)
    dec = dec + bias_ref[...]
    d0, d1 = dec[:, 0:1], dec[:, 1:2]
    s0, s1 = s_ref[:, 0:1], s_ref[:, 1:2]
    re = d0 * s0 - d1 * s1
    im = d0 * s1 + d1 * s0
    col = jax.lax.broadcasted_iota(jnp.int32, o_ref.shape, 1)
    out = jnp.where(col == 0, re, jnp.where(col == 1, im, jnp.float32(0)))
    o_ref[...] = out.astype(o_ref.dtype)


def pack_dense(w_kn, bias_n, *, tn):
    """Pre-cast/pre-pad a (K, N) weight + (N,) bias once (outside jit)."""
    K, N = w_kn.shape
    tn_eff = tn if N > 128 else 128
    Kp = _round_up(K, 8)
    Np = _round_up(N, tn_eff)
    w_p = jnp.pad(jnp.asarray(w_kn, jnp.float32).astype(jnp.bfloat16),
                  ((0, Kp - K), (0, Np - N)))
    b_p = jnp.pad(jnp.asarray(bias_n, jnp.float32).reshape(1, N),
                  ((0, 0), (0, Np - N)))
    return {"w": w_p, "b": b_p, "K": K, "N": N, "tn": tn_eff}


def pallas_matmul_bias(a, packed, *, relu=False, out_dtype=jnp.float32,
                       cmask_side=None, tm_max=256):
    """(M,K) @ prepacked (K,N) + bias, optional fused ReLU or complex mask."""
    M, K = a.shape
    Kp, Np = packed["w"].shape
    N, tn = packed["N"], packed["tn"]
    tm = min(tm_max, _round_up(M, 16))
    Mp = _round_up(M, tm)

    a_p = a.astype(jnp.bfloat16)
    if Mp != M or Kp != K:
        a_p = jnp.pad(a_p, ((0, Mp - M), (0, Kp - K)))

    _, vmem_limit = _tpu_config()
    in_specs = [
        pl.BlockSpec((tm, Kp), lambda i, j: (i, 0)),
        pl.BlockSpec((Kp, tn), lambda i, j: (0, j)),
        pl.BlockSpec((1, tn), lambda i, j: (0, j)),
    ]
    operands = [a_p, packed["w"], packed["b"]]

    if cmask_side is None:
        kernel = functools.partial(_mm_bias_kernel, relu=relu)
    else:
        assert Np == tn, "complex-mask fusion expects a single N tile"
        side = cmask_side.astype(jnp.float32)
        if Mp != M:
            side = jnp.pad(side, ((0, Mp - M), (0, 0)))
        in_specs.append(pl.BlockSpec((tm, 2), lambda i, j: (i, 0)))
        operands.append(side)
        kernel = _mm_bias_cmask_kernel

    out = pl.pallas_call(
        kernel,
        out_shape=jax.ShapeDtypeStruct((Mp, Np), out_dtype),
        grid_spec=pltpu.PrefetchScalarGridSpec(
            num_scalar_prefetch=0,
            grid=(Mp // tm, Np // tn),
            in_specs=in_specs,
            out_specs=pl.BlockSpec((tm, tn), lambda i, j: (i, j)),
        ),
        compiler_params=pltpu.CompilerParams(
            dimension_semantics=("parallel", "parallel"),
            vmem_limit_bytes=vmem_limit,
        ),
    )(*operands)
    return out[:M, :N]


# ----------------------------------------------------------------------------
# Conv / ConvTranspose (NHWC) via im2col + the tiled Pallas matmul
# ----------------------------------------------------------------------------
def conv2d_nhwc(x, wpk, stride, padding, *, relu=False, out_dtype=jnp.float32,
                cmask_side=None):
    # TODO(synk): implicit-GEMM the kh*kw taps into the matmul grid instead of
    # materializing im2col patches in HBM (space-to-batch for stride-2 convs).
    B, H, W, Cin = x.shape
    kh, kw, Cout = wpk["kh"], wpk["kw"], wpk["N"]
    sh, sw = stride
    ph, pww = padding
    xp = jnp.pad(x, ((0, 0), (ph, ph), (pww, pww), (0, 0)))
    Ho = (H + 2 * ph - kh) // sh + 1
    Wo = (W + 2 * pww - kw) // sw + 1
    cols = []
    for i in range(kh):
        for j in range(kw):
            cols.append(xp[:, i:i + sh * (Ho - 1) + 1:sh,
                           j:j + sw * (Wo - 1) + 1:sw, :])
    patches = jnp.concatenate(cols, axis=-1)                  # (B, Ho, Wo, kh*kw*Cin)
    a = patches.reshape(B * Ho * Wo, kh * kw * Cin)
    out = pallas_matmul_bias(a, wpk, relu=relu, out_dtype=out_dtype,
                             cmask_side=cmask_side)
    return out.reshape(B, Ho, Wo, Cout)


def _pad_or_crop(arr, axis, p):
    if p >= 0:
        cfg = [(0, 0)] * arr.ndim
        cfg[axis] = (p, p)
        return jnp.pad(arr, cfg)
    sl = [slice(None)] * arr.ndim
    sl[axis] = slice(-p, arr.shape[axis] + p)
    return arr[tuple(sl)]


def conv_transpose2d_nhwc(x, wpk, stride, padding, output_padding, *,
                          relu=False, out_dtype=jnp.float32, cmask_side=None):
    # TODO(synk): sub-pixel (per-output-phase) decomposition would avoid the
    # ~sh*sw structural-zero MACs of this zero-dilated formulation.
    B, H, W, Cin = x.shape
    kh, kw = wpk["kh"], wpk["kw"]
    sh, sw = stride
    ph, pww = padding
    oph, opw = output_padding
    Hd = (H - 1) * sh + 1
    Wd = (W - 1) * sw + 1
    xd = jnp.zeros((B, Hd, Wd, Cin), x.dtype).at[:, ::sh, ::sw, :].set(x)
    xd = jnp.pad(xd, ((0, 0), (0, oph), (0, opw), (0, 0)))
    xd = _pad_or_crop(xd, 1, kh - 1 - ph)
    xd = _pad_or_crop(xd, 2, kw - 1 - pww)
    return conv2d_nhwc(xd, wpk, (1, 1), (0, 0), relu=relu,
                       out_dtype=out_dtype, cmask_side=cmask_side)


# ----------------------------------------------------------------------------
# Fused bidirectional-GRU recurrence + output Linear kernel
# ----------------------------------------------------------------------------
def _bigru_fc_kernel(gx_ref, whh_ref, bhn_ref, fcw_ref, fcb_ref, y_ref,
                     hall_sc, *, hidden):
    T, bn, _ = gx_ref.shape
    H = hidden
    H2 = 2 * H

    # Loop invariants hoisted out of the recurrence (JAX does not CSE these).
    whh = whh_ref[...]                                       # (2H, 6H) bf16
    bhn = jnp.broadcast_to(bhn_ref[...], (bn, H2))           # (bn, 2H) f32
    lane = jax.lax.broadcasted_iota(jnp.int32, (bn, 6 * H), 1)
    fwd_cols = (lane % H2) < H      # forward-direction half of each gate pair

    def step(t, h):                                          # h: (bn, 2H) f32
        tb = T - 1 - t
        # Forward gates consume gx[t], backward gates gx[T-1-t]; one select
        # keeps every later op a full 128-lane [fwd|bwd] vreg op (no mid-vreg
        # gate slicing, both directions computed together).
        gxx = jnp.where(fwd_cols, gx_ref[t], gx_ref[tb])     # (bn, 6H)
        gh = jnp.dot(h.astype(jnp.bfloat16), whh,
                     preferred_element_type=jnp.float32)     # (bn, 6H)
        r = jax.nn.sigmoid(gxx[:, :H2] + gh[:, :H2])
        z = jax.nn.sigmoid(gxx[:, H2:2 * H2] + gh[:, H2:2 * H2])
        n = jnp.tanh(gxx[:, 2 * H2:] + r * (gh[:, 2 * H2:] + bhn))
        h_new = (1.0 - z) * n + z * h
        hall_sc[t, :, :H] = h_new[:, :H]       # forward hidden at time t
        hall_sc[tb, :, H:] = h_new[:, H:]      # backward hidden at time T-1-t
        return h_new

    jax.lax.fori_loop(0, T, step, jnp.zeros((bn, H2), jnp.float32))

    # Fused output Linear over the whole hidden sequence (lane-dense 2H=128).
    hseq = hall_sc[...].reshape(T * bn, H2).astype(jnp.bfloat16)
    y = jnp.dot(hseq, fcw_ref[...], preferred_element_type=jnp.float32)
    y = y + fcb_ref[...]
    y_ref[...] = y.reshape(T, bn, -1).astype(y_ref.dtype)


def pallas_bigru_fc(gx, whh, bhn, fc_w, fc_b, hidden):
    """gx: (T, N, 6H) f32, gate columns interleaved [r_f r_b z_f z_b n_f n_b]."""
    # TODO(synk): production-length T needs a T-chunked gx pipeline with a
    # carried hidden state instead of whole-T VMEM blocks.
    T, N, G = gx.shape
    H = hidden
    C = fc_w.shape[1]
    # >=2 grid programs so both v7x TensorCores work on the serial stage.
    bn = min(128, _round_up(max((N + 1) // 2, 1), 16))
    Np = _round_up(N, bn)
    if Np != N:
        gx = jnp.pad(gx, ((0, 0), (0, Np - N), (0, 0)))
    _, vmem_limit = _tpu_config()

    y = pl.pallas_call(
        functools.partial(_bigru_fc_kernel, hidden=H),
        out_shape=jax.ShapeDtypeStruct((T, Np, C), jnp.bfloat16),
        grid_spec=pltpu.PrefetchScalarGridSpec(
            num_scalar_prefetch=0,
            grid=(Np // bn,),
            in_specs=[
                pl.BlockSpec((T, bn, G), lambda i: (0, i, 0)),
                pl.BlockSpec((2 * H, G), lambda i: (0, 0)),
                pl.BlockSpec((1, 2 * H), lambda i: (0, 0)),
                pl.BlockSpec((2 * H, C), lambda i: (0, 0)),
                pl.BlockSpec((1, C), lambda i: (0, 0)),
            ],
            out_specs=pl.BlockSpec((T, bn, C), lambda i: (0, i, 0)),
            scratch_shapes=[pltpu.VMEM((T, bn, 2 * H), jnp.float32)],
        ),
        compiler_params=pltpu.CompilerParams(
            dimension_semantics=("parallel",),
            vmem_limit_bytes=vmem_limit,
        ),
    )(gx, whh, bhn, fc_w, fc_b)
    return y[:, :N]


def bigru_reconstructor(prep, x_nhwc, hidden):
    # x_nhwc: (B, F2, T2, C) -> (B, F2, T2, C); sequences are the B*F2 rows.
    B, F2, T2, C = x_nhwc.shape
    N = B * F2
    seq = x_nhwc.reshape(N, T2, C).transpose(1, 0, 2)         # (T2, N, C)
    gx = pallas_matmul_bias(seq.reshape(T2 * N, C), prep["gru_proj"],
                            out_dtype=jnp.float32)            # (T2*N, 6H)
    gx = gx.reshape(T2, N, 6 * hidden)
    y = pallas_bigru_fc(gx, prep["gru_whh"], prep["gru_bhn"],
                        prep["fc_w"], prep["fc_b"], hidden)   # (T2, N, C) bf16
    return y.transpose(1, 0, 2).reshape(B, F2, T2, C)


# ----------------------------------------------------------------------------
# STFT / ISTFT  (FFT has no Pallas primitive -> plain JAX glue)
# ----------------------------------------------------------------------------
def hann_window(n_fft):
    n = jnp.arange(n_fft, dtype=jnp.float32)
    return 0.5 * (1.0 - jnp.cos(2.0 * jnp.pi * n / n_fft))


def stft(x, n_fft, hop, window):
    # TODO(synk): rfft has no Pallas equivalent; done in plain JAX.
    pad = n_fft // 2
    xp = jnp.pad(x, ((0, 0), (pad, pad)), mode='reflect')
    n_frames = 1 + (xp.shape[1] - n_fft) // hop
    idx = jnp.arange(n_fft)[None, :] + hop * jnp.arange(n_frames)[:, None]
    frames = xp[:, idx] * window[None, None, :]               # (B, T, n_fft)
    spec = jnp.fft.rfft(frames, axis=-1)                      # (B, T, F)
    return jnp.transpose(spec, (0, 2, 1))                     # (B, F, T) complex


def istft(real, imag, n_fft, hop, window):
    # Vectorized overlap-add: single scatter-add instead of a per-frame loop.
    B, F, T = real.shape
    spec = jnp.transpose(real + 1j * imag, (0, 2, 1))         # (B, T, F)
    frames = jnp.fft.irfft(spec, n=n_fft, axis=-1) * window[None, None, :]
    out_len = n_fft + hop * (T - 1)
    idx = hop * jnp.arange(T)[:, None] + jnp.arange(n_fft)[None, :]   # (T, n_fft)
    ola = jnp.zeros((B, out_len), jnp.float32).at[:, idx].add(frames)
    wsq = jnp.zeros((out_len,), jnp.float32).at[idx].add(
        jnp.broadcast_to(window * window, (T, n_fft)))
    pad = n_fft // 2
    ola = ola[:, pad:out_len - pad]
    wsq = wsq[pad:out_len - pad]
    return ola / jnp.where(wsq > 1e-11, wsq, 1.0)


# ----------------------------------------------------------------------------
# One-time weight preparation (outside jit): cast/pad/pack every matmul weight
# ----------------------------------------------------------------------------
def prepare_params(params, hidden):
    tn, _ = _tpu_config()
    H = hidden

    def gates(w):
        return w[0:H], w[H:2 * H], w[2 * H:3 * H]

    def pack_conv(w_oihw, b):
        Cout, Cin, kh, kw = w_oihw.shape
        wm = jnp.transpose(w_oihw, (2, 3, 1, 0)).reshape(kh * kw * Cin, Cout)
        d = pack_dense(wm, b, tn=tn)
        d["kh"], d["kw"] = kh, kw
        return d

    def pack_deconv(w_iohw, b):
        wf = jnp.flip(w_iohw, axis=(2, 3)).transpose(1, 0, 2, 3)
        return pack_conv(wf, b)

    prep = {
        "conv1": pack_conv(params["conv1_w"], params["conv1_b"]),
        "conv2": pack_conv(params["conv2_w"], params["conv2_b"]),
        "up1": pack_deconv(params["up1_w"], params["up1_b"]),
        "up2": pack_deconv(params["up2_w"], params["up2_b"]),
    }

    # GRU input projection, columns interleaved [r_f r_b z_f z_b n_f n_b];
    # b_hh for the r/z gates is folded in (they sit outside the r*(.) term).
    wir_f, wiz_f, win_f = gates(params["gru_wih_f"])
    wir_b, wiz_b, win_b = gates(params["gru_wih_b"])
    bir_f, biz_f, bin_f = gates(params["gru_bih_f"])
    bir_b, biz_b, bin_b = gates(params["gru_bih_b"])
    bhr_f, bhz_f, bhn_f = gates(params["gru_bhh_f"])
    bhr_b, bhz_b, bhn_b = gates(params["gru_bhh_b"])
    w_proj = jnp.concatenate(
        [wir_f.T, wir_b.T, wiz_f.T, wiz_b.T, win_f.T, win_b.T], axis=1)
    b_proj = jnp.concatenate(
        [bir_f + bhr_f, bir_b + bhr_b, biz_f + bhz_f, biz_b + bhz_b, bin_f, bin_b])
    prep["gru_proj"] = pack_dense(w_proj, b_proj, tn=tn)

    # Packed recurrent weight: rows = [h_f | h_b], columns = interleaved gates.
    whr_f, whz_f, whn_f = gates(params["gru_whh_f"])
    whr_b, whz_b, whn_b = gates(params["gru_whh_b"])
    whh = jnp.zeros((2 * H, 6 * H), jnp.float32)
    whh = whh.at[:H, 0 * H:1 * H].set(whr_f.T)
    whh = whh.at[H:, 1 * H:2 * H].set(whr_b.T)
    whh = whh.at[:H, 2 * H:3 * H].set(whz_f.T)
    whh = whh.at[H:, 3 * H:4 * H].set(whz_b.T)
    whh = whh.at[:H, 4 * H:5 * H].set(whn_f.T)
    whh = whh.at[H:, 5 * H:6 * H].set(whn_b.T)
    prep["gru_whh"] = whh.astype(jnp.bfloat16)
    prep["gru_bhn"] = jnp.concatenate([bhn_f, bhn_b]).reshape(1, 2 * H).astype(jnp.float32)

    prep["fc_w"] = params["fc_w"].T.astype(jnp.bfloat16)          # (2H, in_dim)
    prep["fc_b"] = params["fc_b"].reshape(1, -1).astype(jnp.float32)
    return prep


# ----------------------------------------------------------------------------
# Full forward pass
# ----------------------------------------------------------------------------
def audio_enhancer(prep, x, n_fft, hop, hidden):
    window = hann_window(n_fft)
    spec_c = stft(x, n_fft, hop, window)                      # (B, F, T) complex
    spec = jnp.stack([spec_c.real, spec_c.imag], axis=-1)     # (B, F, T, 2) f32
    # Encoder (bf16 inter-layer activations)
    e1 = conv2d_nhwc(spec, prep["conv1"], (2, 2), (1, 2),
                     relu=True, out_dtype=jnp.bfloat16)
    e2 = conv2d_nhwc(e1, prep["conv2"], (2, 2), (1, 2),
                     relu=True, out_dtype=jnp.bfloat16)
    # Bi-GRU reconstructor (recurrence + fc fused in one Pallas kernel)
    r = bigru_reconstructor(prep, e2, hidden)                 # bf16
    # Decoder; up2 has the complex spectral mask fused into its epilogue.
    d1 = conv_transpose2d_nhwc(r, prep["up1"], (2, 2), (1, 2), (0, 1),
                               relu=True, out_dtype=jnp.bfloat16)
    B, F, T, _ = spec.shape
    masked = conv_transpose2d_nhwc(
        d1, prep["up2"], (2, 2), (1, 2), (0, 1), relu=False,
        out_dtype=jnp.float32, cmask_side=spec.reshape(B * F * T, 2))
    assert masked.shape == (B, F, T, 2)
    real, imag = masked[..., 0], masked[..., 1]
    return istft(real, imag, n_fft, hop, window)


def init_params(key, channels=32, hidden=64):
    ks = jax.random.split(key, 16)
    w = lambda k, shape: jax.random.normal(k, shape, jnp.float32) * 0.1
    in_dim = channels * 2
    return {
        'conv1_w': w(ks[0], (channels, 2, 3, 5)),
        'conv1_b': w(ks[1], (channels,)),
        'conv2_w': w(ks[2], (channels * 2, channels, 3, 5)),
        'conv2_b': w(ks[3], (channels * 2,)),
        'gru_wih_f': w(ks[4], (3 * hidden, in_dim)),
        'gru_whh_f': w(ks[5], (3 * hidden, hidden)),
        'gru_bih_f': w(ks[6], (3 * hidden,)),
        'gru_bhh_f': w(ks[7], (3 * hidden,)),
        'gru_wih_b': w(ks[8], (3 * hidden, in_dim)),
        'gru_whh_b': w(ks[9], (3 * hidden, hidden)),
        'gru_bih_b': w(ks[10], (3 * hidden,)),
        'gru_bhh_b': w(ks[11], (3 * hidden,)),
        'fc_w': w(ks[12], (in_dim, 2 * hidden)),
        'fc_b': w(ks[13], (in_dim,)),
        'up1_w': w(ks[14], (channels * 2, channels, 3, 5)),   # ConvTranspose (Cin, Cout, kh, kw)
        'up1_b': jnp.zeros((channels,), jnp.float32),
        'up2_w': w(ks[15], (channels, 2, 3, 2)),
        'up2_b': jnp.zeros((2,), jnp.float32),
    }


if __name__ == "__main__":
    # Small-but-consistent config: channels=32 (so GRU in_dim=64 matches the
    # hardcoded BiGRUReconstructor(64, 64)), n_fft=64, hop=16, audio L=128
    # -> spec (B, 33, 9, 2) NHWC; decoder reconstructs exactly (B, 33, 9, 2).
    n_fft, hop, channels, hidden = 64, 16, 32, 64
    B, L = 2, 128

    key = jax.random.PRNGKey(0)
    pkey, xkey = jax.random.split(key)
    params = init_params(pkey, channels=channels, hidden=hidden)
    prep = prepare_params(params, hidden=hidden)   # one-time weight pack, outside jit
    x = jax.random.normal(xkey, (B, L), jnp.float32)

    fwd = jax.jit(lambda xx: audio_enhancer(prep, xx, n_fft=n_fft, hop=hop, hidden=hidden))
    out = fwd(x)
    jax.block_until_ready(out)
    assert out.shape == (B, hop * (L // hop)) == (2, 128)
    print("KERNEL_OK")
</pallas_src>

<mosaic_0001>
module attributes {stable_mosaic.version = 11 : i64} {
  func.func @_mm_bias_kernel(%arg0: i32, %arg1: i32, %arg2: memref<176x32xbf16, #tpu.memory_space<vmem>>, %arg3: memref<32x128xbf16, #tpu.memory_space<vmem>>, %arg4: memref<1x128xf32, #tpu.memory_space<vmem>>, %arg5: memref<176x128xbf16, #tpu.memory_space<vmem>>) attributes {dimension_semantics = [#tpu.dimension_semantics<parallel>, #tpu.dimension_semantics<parallel>], iteration_bounds = array<i64: 1, 1>, scalar_prefetch = 0 : i64, scratch_operands = 0 : i64, tpu.core_type = #tpu.core_type<tc>, window_params = [{transform_indices = @transform_0, window_bounds = array<i64: 176, 32>}, {transform_indices = @transform_1, window_bounds = array<i64: 32, 128>}, {transform_indices = @transform_2, window_bounds = array<i64: 1, 128>}, {transform_indices = @transform_3, window_bounds = array<i64: 176, 128>}]} {
    %c0 = arith.constant 0 : index
    %c0_0 = arith.constant 0 : index
    %0 = vector.load %arg2[%c0, %c0_0] : memref<176x32xbf16, #tpu.memory_space<vmem>>, vector<176x32xbf16>
    %c0_1 = arith.constant 0 : index
    %c0_2 = arith.constant 0 : index
    %1 = vector.load %arg3[%c0_1, %c0_2] : memref<32x128xbf16, #tpu.memory_space<vmem>>, vector<32x128xbf16>
    %cst = arith.constant dense<0.000000e+00> : vector<176x128xf32>
    %2 = tpu.matmul %0, %1, %cst {dimension_numbers = #tpu.dot_dimension_numbers<[1], [0], [0], [1], [0, 0, 1, 1], [], []>} : vector<176x32xbf16>, vector<32x128xbf16>, vector<176x128xf32> -> vector<176x128xf32>
    %c0_3 = arith.constant 0 : index
    %c0_4 = arith.constant 0 : index
    %3 = vector.load %arg4[%c0_3, %c0_4] : memref<1x128xf32, #tpu.memory_space<vmem>>, vector<1x128xf32>
    %4 = vector.broadcast %3 : vector<1x128xf32> to vector<176x128xf32>
    %5 = arith.addf %2, %4 : vector<176x128xf32>
    %cst_5 = arith.constant 0.000000e+00 : f32
    %6 = vector.broadcast %cst_5 : f32 to vector<176x128xf32>
    %7 = arith.maximumf %5, %6 : vector<176x128xf32>
    %8 = arith.truncf %7 : vector<176x128xf32> to vector<176x128xbf16>
    %c0_6 = arith.constant 0 : index
    %c0_7 = arith.constant 0 : index
    %9 = vector.load %arg5[%c0_6, %c0_7] : memref<176x128xbf16, #tpu.memory_space<vmem>>, vector<176x128xbf16>
    tpu.vector_store %arg5[%c0_6, %c0_7], %8 {strides = array<i32>} : memref<176x128xbf16, #tpu.memory_space<vmem>>, vector<176x128xbf16>,
    return
  }
  func.func @transform_0(%arg0: i32, %arg1: i32) -> (i32, i32) {
    %c0_i32 = arith.constant 0 : i32
    %c0_i32_0 = arith.constant 0 : i32
    return %arg0, %c0_i32 : i32, i32
  }
  func.func @transform_1(%arg0: i32, %arg1: i32) -> (i32, i32) {
    %c0_i32 = arith.constant 0 : i32
    %c0_i32_0 = arith.constant 0 : i32
    return %c0_i32, %arg1 : i32, i32
  }
  func.func @transform_2(%arg0: i32, %arg1: i32) -> (i32, i32) {
    %c0_i32 = arith.constant 0 : i32
    %c0_i32_0 = arith.constant 0 : i32
    return %c0_i32, %arg1 : i32, i32
  }
  func.func @transform_3(%arg0: i32, %arg1: i32) -> (i32, i32) {
    %c0_i32 = arith.constant 0 : i32
    return %arg0, %arg1 : i32, i32
  }
}

module attributes {stable_mosaic.version = 11 : i64} {
  func.func @_mm_bias_kernel(%arg0: i32, %arg1: i32, %arg2: memref<64x480xbf16, #tpu.memory_space<vmem>>, %arg3: memref<480x128xbf16, #tpu.memory_space<vmem>>, %arg4: memref<1x128xf32, #tpu.memory_space<vmem>>, %arg5: memref<64x128xbf16, #tpu.memory_space<vmem>>) attributes {dimension_semantics = [#tpu.dimension_semantics<parallel>, #tpu.dimension_semantics<parallel>], iteration_bounds = array<i64: 1, 1>, scalar_prefetch = 0 : i64, scratch_operands = 0 : i64, tpu.core_type = #tpu.core_type<tc>, window_params = [{transform_indices = @transform_0, window_bounds = array<i64: 64, 480>}, {transform_indices = @transform_1, window_bounds = array<i64: 480, 128>}, {transform_indices = @transform_2, window_bounds = array<i64: 1, 128>}, {transform_indices = @transform_3, window_bounds = array<i64: 64, 128>}]} {
    %c0 = arith.constant 0 : index
    %c0_0 = arith.constant 0 : index
    %0 = vector.load %arg2[%c0, %c0_0] : memref<64x480xbf16, #tpu.memory_space<vmem>>, vector<64x480xbf16>
    %c0_1 = arith.constant 0 : index
    %c0_2 = arith.constant 0 : index
    %1 = vector.load %arg3[%c0_1, %c0_2] : memref<480x128xbf16, #tpu.memory_space<vmem>>, vector<480x128xbf16>
    %cst = arith.constant dense<0.000000e+00> : vector<64x128xf32>
    %2 = tpu.matmul %0, %1, %cst {dimension_numbers = #tpu.dot_dimension_numbers<[1], [0], [0], [1], [0, 0, 1, 1], [], []>} : vector<64x480xbf16>, vector<480x128xbf16>, vector<64x128xf32> -> vector<64x128xf32>
    %c0_3 = arith.constant 0 : index
    %c0_4 = arith.constant 0 : index
    %3 = vector.load %arg4[%c0_3, %c0_4] : memref<1x128xf32, #tpu.memory_space<vmem>>, vector<1x128xf32>
    %4 = vector.broadcast %3 : vector<1x128xf32> to vector<64x128xf32>
    %5 = arith.addf %2, %4 : vector<64x128xf32>
    %cst_5 = arith.constant 0.000000e+00 : f32
    %6 = vector.broadcast %cst_5 : f32 to vector<64x128xf32>
    %7 = arith.maximumf %5, %6 : vector<64x128xf32>
    %8 = arith.truncf %7 : vector<64x128xf32> to vector<64x128xbf16>
    %c0_6 = arith.constant 0 : index
    %c0_7 = arith.constant 0 : index
    %9 = vector.load %arg5[%c0_6, %c0_7] : memref<64x128xbf16, #tpu.memory_space<vmem>>, vector<64x128xbf16>
    tpu.vector_store %arg5[%c0_6, %c0_7], %8 {strides = array<i32>} : memref<64x128xbf16, #tpu.memory_space<vmem>>, vector<64x128xbf16>,
    return
  }
  func.func @transform_0(%arg0: i32, %arg1: i32) -> (i32, i32) {
    %c0_i32 = arith.constant 0 : i32
    %c0_i32_0 = arith.constant 0 : i32
    return %arg0, %c0_i32 : i32, i32
  }
  func.func @transform_1(%arg0: i32, %arg1: i32) -> (i32, i32) {
    %c0_i32 = arith.constant 0 : i32
    %c0_i32_0 = arith.constant 0 : i32
    return %c0_i32, %arg1 : i32, i32
  }
  func.func @transform_2(%arg0: i32, %arg1: i32) -> (i32, i32) {
    %c0_i32 = arith.constant 0 : i32
    %c0_i32_0 = arith.constant 0 : i32
    return %c0_i32, %arg1 : i32, i32
  }
  func.func @transform_3(%arg0: i32, %arg1: i32) -> (i32, i32) {
    %c0_i32 = arith.constant 0 : i32
    return %arg0, %arg1 : i32, i32
  }
}

module attributes {stable_mosaic.version = 11 : i64} {
  func.func @_mm_bias_kernel(%arg0: i32, %arg1: i32, %arg2: memref<64x64xbf16, #tpu.memory_space<vmem>>, %arg3: memref<64x128xbf16, #tpu.memory_space<vmem>>, %arg4: memref<1x128xf32, #tpu.memory_space<vmem>>, %arg5: memref<64x128xf32, #tpu.memory_space<vmem>>) attributes {dimension_semantics = [#tpu.dimension_semantics<parallel>, #tpu.dimension_semantics<parallel>], iteration_bounds = array<i64: 1, 3>, scalar_prefetch = 0 : i64, scratch_operands = 0 : i64, tpu.core_type = #tpu.core_type<tc>, window_params = [{transform_indices = @transform_0, window_bounds = array<i64: 64, 64>}, {transform_indices = @transform_1, window_bounds = array<i64: 64, 128>}, {transform_indices = @transform_2, window_bounds = array<i64: 1, 128>}, {transform_indices = @transform_3, window_bounds = array<i64: 64, 128>}]} {
    %c0 = arith.constant 0 : index
    %c0_0 = arith.constant 0 : index
    %0 = vector.load %arg2[%c0, %c0_0] : memref<64x64xbf16, #tpu.memory_space<vmem>>, vector<64x64xbf16>
    %c0_1 = arith.constant 0 : index
    %c0_2 = arith.constant 0 : index
    %1 = vector.load %arg3[%c0_1, %c0_2] : memref<64x128xbf16, #tpu.memory_space<vmem>>, vector<64x128xbf16>
    %cst = arith.constant dense<0.000000e+00> : vector<64x128xf32>
    %2 = tpu.matmul %0, %1, %cst {dimension_numbers = #tpu.dot_dimension_numbers<[1], [0], [0], [1], [0, 0, 1, 1], [], []>} : vector<64x64xbf16>, vector<64x128xbf16>, vector<64x128xf32> -> vector<64x128xf32>
    %c0_3 = arith.constant 0 : index
    %c0_4 = arith.constant 0 : index
    %3 = vector.load %arg4[%c0_3, %c0_4] : memref<1x128xf32, #tpu.memory_space<vmem>>, vector<1x128xf32>
    %4 = vector.broadcast %3 : vector<1x128xf32> to vector<64x128xf32>
    %5 = arith.addf %2, %4 : vector<64x128xf32>
    %c0_5 = arith.constant 0 : index
    %c0_6 = arith.constant 0 : index
    %6 = vector.load %arg5[%c0_5, %c0_6] : memref<64x128xf32, #tpu.memory_space<vmem>>, vector<64x128xf32>
    tpu.vector_store %arg5[%c0_5, %c0_6], %5 {strides = array<i32>} : memref<64x128xf32, #tpu.memory_space<vmem>>, vector<64x128xf32>,
    return
  }
  func.func @transform_0(%arg0: i32, %arg1: i32) -> (i32, i32) {
    %c0_i32 = arith.constant 0 : i32
    %c0_i32_0 = arith.constant 0 : i32
    return %arg0, %c0_i32 : i32, i32
  }
  func.func @transform_1(%arg0: i32, %arg1: i32) -> (i32, i32) {
    %c0_i32 = arith.constant 0 : i32
    %c0_i32_0 = arith.constant 0 : i32
    return %c0_i32, %arg1 : i32, i32
  }
  func.func @transform_2(%arg0: i32, %arg1: i32) -> (i32, i32) {
    %c0_i32 = arith.constant 0 : i32
    %c0_i32_0 = arith.constant 0 : i32
    return %c0_i32, %arg1 : i32, i32
  }
  func.func @transform_3(%arg0: i32, %arg1: i32) -> (i32, i32) {
    %c0_i32 = arith.constant 0 : i32
    return %arg0, %arg1 : i32, i32
  }
}

module attributes {stable_mosaic.version = 11 : i64} {
  func.func @_bigru_fc_kernel(%arg0: i32, %arg1: memref<3x16x384xf32, #tpu.memory_space<vmem>>, %arg2: memref<128x384xbf16, #tpu.memory_space<vmem>>, %arg3: memref<1x128xf32, #tpu.memory_space<vmem>>, %arg4: memref<128x64xbf16, #tpu.memory_space<vmem>>, %arg5: memref<1x64xf32, #tpu.memory_space<vmem>>, %arg6: memref<3x16x64xbf16, #tpu.memory_space<vmem>>, %arg7: memref<3x16x128xf32, #tpu.memory_space<vmem>>) attributes {dimension_semantics = [#tpu.dimension_semantics<parallel>], iteration_bounds = array<i64: 2>, scalar_prefetch = 0 : i64, scratch_operands = 1 : i64, tpu.core_type = #tpu.core_type<tc>, window_params = [{transform_indices = @transform_0, window_bounds = array<i64: 3, 16, 384>}, {pipeline_mode = #tpu.pipeline_mode<synchronous>, transform_indices = @transform_1, window_bounds = array<i64: 128, 384>}, {pipeline_mode = #tpu.pipeline_mode<synchronous>, transform_indices = @transform_2, window_bounds = array<i64: 1, 128>}, {pipeline_mode = #tpu.pipeline_mode<synchronous>, transform_indices = @transform_3, window_bounds = array<i64: 128, 64>}, {pipeline_mode = #tpu.pipeline_mode<synchronous>, transform_indices = @transform_4, window_bounds = array<i64: 1, 64>}, {transform_indices = @transform_5, window_bounds = array<i64: 3, 16, 64>}]} {
    %c0 = arith.constant 0 : index
    %c0_0 = arith.constant 0 : index
    %0 = vector.load %arg2[%c0, %c0_0] : memref<128x384xbf16, #tpu.memory_space<vmem>>, vector<128x384xbf16>
    %c0_1 = arith.constant 0 : index
    %c0_2 = arith.constant 0 : index
    %1 = vector.load %arg3[%c0_1, %c0_2] : memref<1x128xf32, #tpu.memory_space<vmem>>, vector<1x128xf32>
    %2 = vector.shape_cast %1 : vector<1x128xf32> to vector<1x128xf32>
    %3 = vector.broadcast %2 : vector<1x128xf32> to vector<16x128xf32>
    %4 = tpu.iota {dimensions = array<i32: 1>} : vector<16x384xi32>
    %c128_i32 = arith.constant 128 : i32
    %c0_i32 = arith.constant 0 : i32
    %5 = arith.cmpi eq, %c128_i32, %c0_i32 : i32
    %c1_i32 = arith.constant 1 : i32
    %6 = arith.select %5, %c1_i32, %c128_i32 : i32
    %7 = vector.broadcast %6 : i32 to vector<16x384xi32>
    %8 = arith.remsi %4, %7 : vector<16x384xi32>
    %c0_i32_3 = arith.constant 0 : i32
    %9 = vector.broadcast %c0_i32_3 : i32 to vector<16x384xi32>
    %10 = arith.cmpi ne, %8, %9 : vector<16x384xi32>
    %c0_i32_4 = arith.constant 0 : i32
    %11 = vector.broadcast %c0_i32_4 : i32 to vector<16x384xi32>
    %12 = arith.cmpi slt, %8, %11 : vector<16x384xi32>
    %c0_i32_5 = arith.constant 0 : i32
    %13 = arith.cmpi slt, %6, %c0_i32_5 : i32
    %14 = vector.broadcast %13 : i1 to vector<16x384xi1>
    %15 = vector.broadcast %14 : vector<16x384xi1> to vector<16x384xi1>
    %16 = arith.xori %12, %15 : vector<16x384xi1>
    %17 = arith.andi %16, %10 : vector<16x384xi1>
    %18 = vector.broadcast %6 : i32 to vector<16x384xi32>
    %19 = arith.addi %8, %18 : vector<16x384xi32>
    %20 = arith.select %17, %19, %8 : vector<16x384xi1>, vector<16x384xi32>
    %c64_i32 = arith.constant 64 : i32
    %21 = vector.broadcast %c64_i32 : i32 to vector<16x384xi32>
    %22 = arith.cmpi slt, %20, %21 : vector<16x384xi32>
    %cst = arith.constant 0.000000e+00 : f32
    %23 = vector.broadcast %cst : f32 to vector<16x128xf32>
    %c0_i32_6 = arith.constant 0 : i32
    %c3_i32 = arith.constant 3 : i32
    %24 = arith.addi %c0_i32_6, %c3_i32 : i32
    %c1_i32_7 = arith.constant 1 : i32
    %25 = scf.for %arg8 = %c0_i32_6 to %24 step %c1_i32_7 iter_args(%arg9 = %23) -> (vector<16x128xf32>)  : i32 {
      %c2_i32 = arith.constant 2 : i32
      %37 = arith.subi %c2_i32, %arg8 : i32
      %38 = arith.index_cast %arg8 : i32 to index
      %c0_20 = arith.constant 0 : index
      %c0_21 = arith.constant 0 : index
      %39 = vector.load %arg1[%38, %c0_20, %c0_21] : memref<3x16x384xf32, #tpu.memory_space<vmem>>, vector<1x16x384xf32>
      %40 = vector.shape_cast %39 : vector<1x16x384xf32> to vector<16x384xf32>
      %41 = arith.index_cast %37 : i32 to index
      %c0_22 = arith.constant 0 : index
      %c0_23 = arith.constant 0 : index
      %42 = vector.load %arg1[%41, %c0_22, %c0_23] : memref<3x16x384xf32, #tpu.memory_space<vmem>>, vector<1x16x384xf32>
      %43 = vector.shape_cast %42 : vector<1x16x384xf32> to vector<16x384xf32>
      %44 = arith.select %22, %40, %43 : vector<16x384xi1>, vector<16x384xf32>
      %45 = arith.truncf %arg9 : vector<16x128xf32> to vector<16x128xbf16>
      %cst_24 = arith.constant dense<0.000000e+00> : vector<16x384xf32>
      %46 = tpu.matmul %45, %0, %cst_24 {dimension_numbers = #tpu.dot_dimension_numbers<[1], [0], [0], [1], [0, 0, 1, 1], [], []>} : vector<16x128xbf16>, vector<128x384xbf16>, vector<16x384xf32> -> vector<16x384xf32>
      %47 = vector.extract_strided_slice %44 {offsets = [0, 0], sizes = [16, 128], strides = [1, 1]} : vector<16x384xf32> to vector<16x128xf32>
      %48 = vector.extract_strided_slice %46 {offsets = [0, 0], sizes = [16, 128], strides = [1, 1]} : vector<16x384xf32> to vector<16x128xf32>
      %49 = arith.addf %47, %48 : vector<16x128xf32>
      %50 = arith.negf %49 : vector<16x128xf32>
      %51 = math.exp %50 : vector<16x128xf32>
      %cst_25 = arith.constant 1.000000e+00 : f32
      %52 = vector.broadcast %cst_25 : f32 to vector<16x128xf32>
      %53 = arith.addf %52, %51 : vector<16x128xf32>
      %54 = arith.divf %52, %53 : vector<16x128xf32>
      %55 = vector.extract_strided_slice %44 {offsets = [0, 128], sizes = [16, 128], strides = [1, 1]} : vector<16x384xf32> to vector<16x128xf32>
      %56 = vector.extract_strided_slice %46 {offsets = [0, 128], sizes = [16, 128], strides = [1, 1]} : vector<16x384xf32> to vector<16x128xf32>
      %57 = arith.addf %55, %56 : vector<16x128xf32>
      %58 = arith.negf %57 : vector<16x128xf32>
      %59 = math.exp %58 : vector<16x128xf32>
      %cst_26 = arith.constant 1.000000e+00 : f32
      %60 = vector.broadcast %cst_26 : f32 to vector<16x128xf32>
      %61 = arith.addf %60, %59 : vector<16x128xf32>
      %62 = arith.divf %60, %61 : vector<16x128xf32>
      %63 = vector.extract_strided_slice %44 {offsets = [0, 256], sizes = [16, 128], strides = [1, 1]} : vector<16x384xf32> to vector<16x128xf32>
      %64 = vector.extract_strided_slice %46 {offsets = [0, 256], sizes = [16, 128], strides = [1, 1]} : vector<16x384xf32> to vector<16x128xf32>
      %65 = arith.addf %64, %3 : vector<16x128xf32>
      %66 = arith.mulf %54, %65 : vector<16x128xf32>
      %67 = arith.addf %63, %66 : vector<16x128xf32>
      %68 = math.tanh %67 : vector<16x128xf32>
      %cst_27 = arith.constant 1.000000e+00 : f32
      %69 = vector.broadcast %cst_27 : f32 to vector<16x128xf32>
      %70 = arith.subf %69, %62 : vector<16x128xf32>
      %71 = arith.mulf %70, %68 : vector<16x128xf32>
      %72 = arith.mulf %62, %arg9 : vector<16x128xf32>
      %73 = arith.addf %71, %72 : vector<16x128xf32>
      %74 = vector.extract_strided_slice %73 {offsets = [0, 0], sizes = [16, 64], strides = [1, 1]} : vector<16x128xf32> to vector<16x64xf32>
      %75 = arith.index_cast %arg8 : i32 to index
      %c0_28 = arith.constant 0 : index
      %c0_29 = arith.constant 0 : index
      %76 = vector.load %arg7[%75, %c0_28, %c0_29] : memref<3x16x128xf32, #tpu.memory_space<vmem>>, vector<1x16x64xf32>
      %77 = vector.shape_cast %76 : vector<1x16x64xf32> to vector<16x64xf32>
      %78 = vector.shape_cast %74 : vector<16x64xf32> to vector<1x16x64xf32>
      tpu.vector_store %arg7[%75, %c0_28, %c0_29], %78 {strides = array<i32>} : memref<3x16x128xf32, #tpu.memory_space<vmem>>, vector<1x16x64xf32>,
      %79 = vector.extract_strided_slice %73 {offsets = [0, 64], sizes = [16, 64], strides = [1, 1]} : vector<16x128xf32> to vector<16x64xf32>
      %80 = arith.index_cast %37 : i32 to index
      %c0_30 = arith.constant 0 : index
      %c64 = arith.constant 64 : index
      %81 = vector.load %arg7[%80, %c0_30, %c64] : memref<3x16x128xf32, #tpu.memory_space<vmem>>, vector<1x16x64xf32>
      %82 = vector.shape_cast %81 : vector<1x16x64xf32> to vector<16x64xf32>
      %83 = vector.shape_cast %79 : vector<16x64xf32> to vector<1x16x64xf32>
      tpu.vector_store %arg7[%80, %c0_30, %c64], %83 {strides = array<i32>} : memref<3x16x128xf32, #tpu.memory_space<vmem>>, vector<1x16x64xf32>,
      scf.yield %73 : vector<16x128xf32>
    }
    %c3_i32_8 = arith.constant 3 : i32
    %c0_9 = arith.constant 0 : index
    %c0_10 = arith.constant 0 : index
    %c0_11 = arith.constant 0 : index
    %26 = vector.load %arg7[%c0_9, %c0_10, %c0_11] : memref<3x16x128xf32, #tpu.memory_space<vmem>>, vector<3x16x128xf32>
    %27 = vector.shape_cast %26 : vector<3x16x128xf32> to vector<48x128xf32>
    %28 = arith.truncf %27 : vector<48x128xf32> to vector<48x128xbf16>
    %c0_12 = arith.constant 0 : index
    %c0_13 = arith.constant 0 : index
    %29 = vector.load %arg4[%c0_12, %c0_13] : memref<128x64xbf16, #tpu.memory_space<vmem>>, vector<128x64xbf16>
    %cst_14 = arith.constant dense<0.000000e+00> : vector<48x64xf32>
    %30 = tpu.matmul %28, %29, %cst_14 {dimension_numbers = #tpu.dot_dimension_numbers<[1], [0], [0], [1], [0, 0, 1, 1], [], []>} : vector<48x128xbf16>, vector<128x64xbf16>, vector<48x64xf32> -> vector<48x64xf32>
    %c0_15 = arith.constant 0 : index
    %c0_16 = arith.constant 0 : index
    %31 = vector.load %arg5[%c0_15, %c0_16] : memref<1x64xf32, #tpu.memory_space<vmem>>, vector<1x64xf32>
    %32 = vector.broadcast %31 : vector<1x64xf32> to vector<48x64xf32>
    %33 = arith.addf %30, %32 : vector<48x64xf32>
    %34 = vector.shape_cast %33 : vector<48x64xf32> to vector<3x16x64xf32>
    %35 = arith.truncf %34 : vector<3x16x64xf32> to vector<3x16x64xbf16>
    %c0_17 = arith.constant 0 : index
    %c0_18 = arith.constant 0 : index
    %c0_19 = arith.constant 0 : index
    %36 = vector.load %arg6[%c0_17, %c0_18, %c0_19] : memref<3x16x64xbf16, #tpu.memory_space<vmem>>, vector<3x16x64xbf16>
    tpu.vector_store %arg6[%c0_17, %c0_18, %c0_19], %35 {strides = array<i32>} : memref<3x16x64xbf16, #tpu.memory_space<vmem>>, vector<3x16x64xbf16>,
    return
  }
  func.func @transform_0(%arg0: i32) -> (i32, i32, i32) {
    %c0_i32 = arith.constant 0 : i32
    %c0_i32_0 = arith.constant 0 : i32
    %c0_i32_1 = arith.constant 0 : i32
    return %c0_i32, %arg0, %c0_i32_0 : i32, i32, i32
  }
  func.func @transform_1(%arg0: i32) -> (i32, i32) {
    %c0_i32 = arith.constant 0 : i32
    %c0_i32_0 = arith.constant 0 : i32
    %c0_i32_1 = arith.constant 0 : i32
    return %c0_i32, %c0_i32_0 : i32, i32
  }
  func.func @transform_2(%arg0: i32) -> (i32, i32) {
    %c0_i32 = arith.constant 0 : i32
    %c0_i32_0 = arith.constant 0 : i32
    %c0_i32_1 = arith.constant 0 : i32
    return %c0_i32, %c0_i32_0 : i32, i32
  }
  func.func @transform_3(%arg0: i32) -> (i32, i32) {
    %c0_i32 = arith.constant 0 : i32
    %c0_i32_0 = arith.constant 0 : i32
    %c0_i32_1 = arith.constant 0 : i32
    return %c0_i32, %c0_i32_0 : i32, i32
  }
  func.func @transform_4(%arg0: i32) -> (i32, i32) {
    %c0_i32 = arith.constant 0 : i32
    %c0_i32_0 = arith.constant 0 : i32
    %c0_i32_1 = arith.constant 0 : i32
    return %c0_i32, %c0_i32_0 : i32, i32
  }
  func.func @transform_5(%arg0: i32) -> (i32, i32, i32) {
    %c0_i32 = arith.constant 0 : i32
    %c0_i32_0 = arith.constant 0 : i32
    %c0_i32_1 = arith.constant 0 : i32
    return %c0_i32, %arg0, %c0_i32_0 : i32, i32, i32
  }
}

module attributes {stable_mosaic.version = 11 : i64} {
  func.func @_mm_bias_kernel(%arg0: i32, %arg1: i32, %arg2: memref<208x960xbf16, #tpu.memory_space<vmem>>, %arg3: memref<960x128xbf16, #tpu.memory_space<vmem>>, %arg4: memref<1x128xf32, #tpu.memory_space<vmem>>, %arg5: memref<208x128xbf16, #tpu.memory_space<vmem>>) attributes {dimension_semantics = [#tpu.dimension_semantics<parallel>, #tpu.dimension_semantics<parallel>], iteration_bounds = array<i64: 1, 1>, scalar_prefetch = 0 : i64, scratch_operands = 0 : i64, tpu.core_type = #tpu.core_type<tc>, window_params = [{transform_indices = @transform_0, window_bounds = array<i64: 208, 960>}, {transform_indices = @transform_1, window_bounds = array<i64: 960, 128>}, {transform_indices = @transform_2, window_bounds = array<i64: 1, 128>}, {transform_indices = @transform_3, window_bounds = array<i64: 208, 128>}]} {
    %c0 = arith.constant 0 : index
    %c0_0 = arith.constant 0 : index
    %0 = vector.load %arg2[%c0, %c0_0] : memref<208x960xbf16, #tpu.memory_space<vmem>>, vector<208x960xbf16>
    %c0_1 = arith.constant 0 : index
    %c0_2 = arith.constant 0 : index
    %1 = vector.load %arg3[%c0_1, %c0_2] : memref<960x128xbf16, #tpu.memory_space<vmem>>, vector<960x128xbf16>
    %cst = arith.constant dense<0.000000e+00> : vector<208x128xf32>
    %2 = tpu.matmul %0, %1, %cst {dimension_numbers = #tpu.dot_dimension_numbers<[1], [0], [0], [1], [0, 0, 1, 1], [], []>} : vector<208x960xbf16>, vector<960x128xbf16>, vector<208x128xf32> -> vector<208x128xf32>
    %c0_3 = arith.constant 0 : index
    %c0_4 = arith.constant 0 : index
    %3 = vector.load %arg4[%c0_3, %c0_4] : memref<1x128xf32, #tpu.memory_space<vmem>>, vector<1x128xf32>
    %4 = vector.broadcast %3 : vector<1x128xf32> to vector<208x128xf32>
    %5 = arith.addf %2, %4 : vector<208x128xf32>
    %cst_5 = arith.constant 0.000000e+00 : f32
    %6 = vector.broadcast %cst_5 : f32 to vector<208x128xf32>
    %7 = arith.maximumf %5, %6 : vector<208x128xf32>
    %8 = arith.truncf %7 : vector<208x128xf32> to vector<208x128xbf16>
    %c0_6 = arith.constant 0 : index
    %c0_7 = arith.constant 0 : index
    %9 = vector.load %arg5[%c0_6, %c0_7] : memref<208x128xbf16, #tpu.memory_space<vmem>>, vector<208x128xbf16>
    tpu.vector_store %arg5[%c0_6, %c0_7], %8 {strides = array<i32>} : memref<208x128xbf16, #tpu.memory_space<vmem>>, vector<208x128xbf16>,
    return
  }
  func.func @transform_0(%arg0: i32, %arg1: i32) -> (i32, i32) {
    %c0_i32 = arith.constant 0 : i32
    %c0_i32_0 = arith.constant 0 : i32
    return %arg0, %c0_i32 : i32, i32
  }
  func.func @transform_1(%arg0: i32, %arg1: i32) -> (i32, i32) {
    %c0_i32 = arith.constant 0 : i32
    %c0_i32_0 = arith.constant 0 : i32
    return %c0_i32, %arg1 : i32, i32
  }
  func.func @transform_2(%arg0: i32, %arg1: i32) -> (i32, i32) {
    %c0_i32 = arith.constant 0 : i32
    %c0_i32_0 = arith.constant 0 : i32
    return %c0_i32, %arg1 : i32, i32
  }
  func.func @transform_3(%arg0: i32, %arg1: i32) -> (i32, i32) {
    %c0_i32 = arith.constant 0 : i32
    return %arg0, %arg1 : i32, i32
  }
}

module attributes {stable_mosaic.version = 11 : i64} {
  func.func @_mm_bias_cmask_kernel(%arg0: i32, %arg1: i32, %arg2: memref<256x192xbf16, #tpu.memory_space<vmem>>, %arg3: memref<192x128xbf16, #tpu.memory_space<vmem>>, %arg4: memref<1x128xf32, #tpu.memory_space<vmem>>, %arg5: memref<256x2xf32, #tpu.memory_space<vmem>>, %arg6: memref<256x128xf32, #tpu.memory_space<vmem>>) attributes {dimension_semantics = [#tpu.dimension_semantics<parallel>, #tpu.dimension_semantics<parallel>], iteration_bounds = array<i64: 3, 1>, scalar_prefetch = 0 : i64, scratch_operands = 0 : i64, tpu.core_type = #tpu.core_type<tc>, window_params = [{transform_indices = @transform_0, window_bounds = array<i64: 256, 192>}, {transform_indices = @transform_1, window_bounds = array<i64: 192, 128>}, {transform_indices = @transform_2, window_bounds = array<i64: 1, 128>}, {transform_indices = @transform_3, window_bounds = array<i64: 256, 2>}, {transform_indices = @transform_4, window_bounds = array<i64: 256, 128>}]} {
    %c0 = arith.constant 0 : index
    %c0_0 = arith.constant 0 : index
    %0 = vector.load %arg2[%c0, %c0_0] : memref<256x192xbf16, #tpu.memory_space<vmem>>, vector<256x192xbf16>
    %c0_1 = arith.constant 0 : index
    %c0_2 = arith.constant 0 : index
    %1 = vector.load %arg3[%c0_1, %c0_2] : memref<192x128xbf16, #tpu.memory_space<vmem>>, vector<192x128xbf16>
    %cst = arith.constant dense<0.000000e+00> : vector<256x128xf32>
    %2 = tpu.matmul %0, %1, %cst {dimension_numbers = #tpu.dot_dimension_numbers<[1], [0], [0], [1], [0, 0, 1, 1], [], []>} : vector<256x192xbf16>, vector<192x128xbf16>, vector<256x128xf32> -> vector<256x128xf32>
    %c0_3 = arith.constant 0 : index
    %c0_4 = arith.constant 0 : index
    %3 = vector.load %arg4[%c0_3, %c0_4] : memref<1x128xf32, #tpu.memory_space<vmem>>, vector<1x128xf32>
    %4 = vector.broadcast %3 : vector<1x128xf32> to vector<256x128xf32>
    %5 = arith.addf %2, %4 : vector<256x128xf32>
    %6 = vector.extract_strided_slice %5 {offsets = [0, 0], sizes = [256, 1], strides = [1, 1]} : vector<256x128xf32> to vector<256x1xf32>
    %7 = vector.extract_strided_slice %5 {offsets = [0, 1], sizes = [256, 1], strides = [1, 1]} : vector<256x128xf32> to vector<256x1xf32>
    %c0_5 = arith.constant 0 : index
    %c0_6 = arith.constant 0 : index
    %8 = vector.load %arg5[%c0_5, %c0_6] : memref<256x2xf32, #tpu.memory_space<vmem>>, vector<256x1xf32>
    %c0_7 = arith.constant 0 : index
    %c1 = arith.constant 1 : index
    %9 = vector.load %arg5[%c0_7, %c1] : memref<256x2xf32, #tpu.memory_space<vmem>>, vector<256x1xf32>
    %10 = arith.mulf %6, %8 : vector<256x1xf32>
    %11 = arith.mulf %7, %9 : vector<256x1xf32>
    %12 = arith.subf %10, %11 : vector<256x1xf32>
    %13 = arith.mulf %6, %9 : vector<256x1xf32>
    %14 = arith.mulf %7, %8 : vector<256x1xf32>
    %15 = arith.addf %13, %14 : vector<256x1xf32>
    %16 = tpu.iota {dimensions = array<i32: 1>} : vector<256x128xi32>
    %c0_i32 = arith.constant 0 : i32
    %17 = vector.broadcast %c0_i32 : i32 to vector<256x128xi32>
    %18 = arith.cmpi eq, %16, %17 : vector<256x128xi32>
    %c1_i32 = arith.constant 1 : i32
    %19 = vector.broadcast %c1_i32 : i32 to vector<256x128xi32>
    %20 = arith.cmpi eq, %16, %19 : vector<256x128xi32>
    %cst_8 = arith.constant 0.000000e+00 : f32
    %21 = vector.shape_cast %15 : vector<256x1xf32> to vector<256x1xf32>
    %22 = vector.broadcast %21 : vector<256x1xf32> to vector<256x128xf32>
    %23 = vector.broadcast %cst_8 : f32 to vector<256x128xf32>
    %24 = arith.select %20, %22, %23 : vector<256x128xi1>, vector<256x128xf32>
    %25 = vector.shape_cast %12 : vector<256x1xf32> to vector<256x1xf32>
    %26 = vector.broadcast %25 : vector<256x1xf32> to vector<256x128xf32>
    %27 = arith.select %18, %26, %24 : vector<256x128xi1>, vector<256x128xf32>
    %c0_9 = arith.constant 0 : index
    %c0_10 = arith.constant 0 : index
    %28 = vector.load %arg6[%c0_9, %c0_10] : memref<256x128xf32, #tpu.memory_space<vmem>>, vector<256x128xf32>
    tpu.vector_store %arg6[%c0_9, %c0_10], %27 {strides = array<i32>} : memref<256x128xf32, #tpu.memory_space<vmem>>, vector<256x128xf32>,
    return
  }
  func.func @transform_0(%arg0: i32, %arg1: i32) -> (i32, i32) {
    %c0_i32 = arith.constant 0 : i32
    %c0_i32_0 = arith.constant 0 : i32
    return %arg0, %c0_i32 : i32, i32
  }
  func.func @transform_1(%arg0: i32, %arg1: i32) -> (i32, i32) {
    %c0_i32 = arith.constant 0 : i32
    %c0_i32_0 = arith.constant 0 : i32
    return %c0_i32, %arg1 : i32, i32
  }
  func.func @transform_2(%arg0: i32, %arg1: i32) -> (i32, i32) {
    %c0_i32 = arith.constant 0 : i32
    %c0_i32_0 = arith.constant 0 : i32
    return %c0_i32, %arg1 : i32, i32
  }
  func.func @transform_3(%arg0: i32, %arg1: i32) -> (i32, i32) {
    %c0_i32 = arith.constant 0 : i32
    %c0_i32_0 = arith.constant 0 : i32
    return %arg0, %c0_i32 : i32, i32
  }
  func.func @transform_4(%arg0: i32, %arg1: i32) -> (i32, i32) {
    %c0_i32 = arith.constant 0 : i32
    return %arg0, %arg1 : i32, i32
  }
}

</mosaic_0001>

<llo_original>
// kernel: _lambda_.6
$region0: #{_lambda_.6}
  #allocation0 [shape = 'u32[]', space=smem, size = 0x4, offset = 0x4, fixed_abs, tag = 'smem constant byte address 0x4 - core index']
  #allocation1 [shape = 'u32[72,128]{1,0:T(1,128)}', space=vmem, size = 0x9000, scoped, tag = 'internal scratch']
  %s0 = inlined_call_operand.vmem [shape: bf16[176,32], index: 0, kind: input, shape index: {}]
  %s1 = inlined_call_operand.vmem [shape: bf16[32,128], index: 1, kind: input, shape index: {}]
  %s2 = inlined_call_operand.vmem [shape: f32[1,128], index: 2, kind: input, shape index: {}]
  %s3 = inlined_call_operand.vmem [shape: bf16[176,128], index: 3, kind: output, shape index: {}]
  %s4 = sld [smem:[#allocation0]]
  $region22: #{_lambda_.6} parent=0
    _
  %s6 = ssub.s32 1, %s4
  %s7 = scalar_select 0, %s6, %s4
  // Predicated region
  $region2: #{_lambda_.6} parent=0 // pred_check
    _
  $region3: #{_lambda_.6} parent=0 // pred_check_branch
    %9 = sbr.rel (0) target = $region5
  $region4: #{_lambda_.6} parent=0 // pred_region
    _
  $region5: #{_lambda_.6} parent=0 // pred_fallthru
    _
  // Predicated region
  $region6: #{_lambda_.6} parent=0 // pred_check
    _
  $region7: #{_lambda_.6} parent=0 // pred_check_branch
    %11 = sbr.rel (0) target = $region9
  $region8: #{_lambda_.6} parent=0 // pred_region
    _
  $region9: #{_lambda_.6} parent=0 // pred_fallthru
    _
  // Predicated region
  $region10: #{_lambda_.6} parent=0 // pred_check
    _
  $region11: #{_lambda_.6} parent=0 // pred_check_branch
    %13 = sbr.rel (0) target = $region13
  $region12: #{_lambda_.6} parent=0 // pred_region
    _
  $region13: #{_lambda_.6} parent=0 // pred_fallthru
    _
  %v15 = vld [vmem:[%s0] sm:$0xf]
  %v16 = vld [vmem:[%s0 + $0x4] sm:$0xf]
  %v17 = vld [vmem:[%s0 + $0x8] sm:$0xf]
  %v18 = vld [vmem:[%s0 + $0xc] sm:$0xf]
  %v19 = vld [vmem:[%s0 + $0x10] sm:$0xf]
  %v20 = vld [vmem:[%s0 + $0x14] sm:$0xf]
  %v21 = vld [vmem:[%s0 + $0x18] sm:$0xf]
  %v22 = vld [vmem:[%s0 + $0x1c] sm:$0xf]
  %v23 = vld [vmem:[%s0 + $0x20] sm:$0xf]
  %v24 = vld [vmem:[%s0 + $0x24] sm:$0xf]
  %v25 = vld [vmem:[%s0 + $0x28] sm:$0xf]
  %v26 = vld [vmem:[%s0 + $0x2c] sm:$0xf]
  %v27 = vld [vmem:[%s0 + $0x30] sm:$0xf]
  %v28 = vld [vmem:[%s0 + $0x34] sm:$0xf]
  %v29 = vld [vmem:[%s0 + $0x38] sm:$0xf]
  %v30 = vld [vmem:[%s0 + $0x3c] sm:$0xf]
  %v31 = vld [vmem:[%s0 + $0x40] sm:$0xf]
  %v32 = vld [vmem:[%s0 + $0x44] sm:$0xf]
  %v33 = vld [vmem:[%s0 + $0x48] sm:$0xf]
  %v34 = vld [vmem:[%s0 + $0x4c] sm:$0xf]
  %v35 = vld [vmem:[%s0 + $0x50] sm:$0xf]
  %v36 = vld [vmem:[%s0 + $0x54] sm:$0xf]
  %v37 = vld [vmem:[%s1] sm:$0xf]
  %v38 = vld [vmem:[%s1 + $0x4] sm:$0xf]
  %v39 = vld [vmem:[%s1 + $0x8] sm:$0xf]
  %v40 = vld [vmem:[%s1 + $0xc] sm:$0xf]
  %v41 = vld [vmem:[%s2] sm:$0x1]
  %v43 = vperm.slane %v41, 0
  %v67 = vunpack.c.l.b16 %v15
  %v68 = vunpack.c.l.b16 %v16
  %v69 = vunpack.c.l.b16 %v17
  %v70 = vunpack.c.l.b16 %v18
  %v71 = vunpack.c.l.b16 %v19
  %v72 = vunpack.c.l.b16 %v20
  %v73 = vunpack.c.l.b16 %v21
  %v74 = vunpack.c.l.b16 %v22
  %v75 = vunpack.c.l.b16 %v23
  %v76 = vunpack.c.l.b16 %v24
  %v77 = vunpack.c.l.b16 %v25
  %v78 = vunpack.c.l.b16 %v26
  %v79 = vunpack.c.l.b16 %v27
  %v80 = vunpack.c.l.b16 %v28
  %v81 = vunpack.c.l.b16 %v29
  %v82 = vunpack.c.l.b16 %v30
  %v83 = vunpack.c.l.b16 %v31
  %v84 = vunpack.c.l.b16 %v32
  %v85 = vunpack.c.l.b16 %v33
  %v86 = vunpack.c.l.b16 %v34
  %v87 = vunpack.c.l.b16 %v35
  %v88 = vunpack.c.l.b16 %v36
  %v89 = vpack.c.b16 %v68, %v67
  %v90 = vpack.c.b16 %v70, %v69
  %v91 = vpack.c.b16 %v72, %v71
  %v92 = vpack.c.b16 %v74, %v73
  %v93 = vpack.c.b16 %v76, %v75
  %v94 = vpack.c.b16 %v78, %v77
  %v95 = vpack.c.b16 %v80, %v79
  %v96 = vpack.c.b16 %v82, %v81
  %v97 = vpack.c.b16 %v84, %v83
  %v98 = vpack.c.b16 %v86, %v85
  %v99 = vpack.c.b16 %v88, %v87
  %v104 = vunpack.c.l.b16 %v37
  %v105 = vunpack.c.l.b16 %v38
  %v106 = vunpack.c.l.b16 %v39
  %v107 = vunpack.c.l.b16 %v40
  %v108 = vpack.c.b16 %v105, %v104
  %v109 = vpack.c.b16 %v107, %v106
  %vm112 = vcmask 261120
  %v114 = vsel %vm112, %v89, 0
  %v117 = vsel %vm112, %v90, 0
  %v120 = vsel %vm112, %v91, 0
  %v123 = vsel %vm112, %v92, 0
  %v126 = vsel %vm112, %v93, 0
  %v129 = vsel %vm112, %v94, 0
  %v132 = vsel %vm112, %v95, 0
  %v135 = vsel %vm112, %v96, 0
  %v138 = vsel %vm112, %v97, 0
  %v141 = vsel %vm112, %v98, 0
  %v144 = vsel %vm112, %v99, 0
  %146 = vmatpush.bf16.msra.mxu0 0
  %147 = vmatpush.bf16.msra.mxu0 0
  %148 = vmatpush.bf16.msra.mxu0 0
  %149 = vmatpush.bf16.msra.mxu0 0
  %150 = vmatpush.bf16.msra.mxu0 0
  %151 = vmatpush.bf16.msra.mxu0 0
  %152 = vmatpush.bf16.msra.mxu0 %v109
  %153 = vmatpush.bf16.msra.mxu0 %v108
  %154 = vmatmul.bf16.gmra.mxu0 %v114
  %v155 = vpop.f32.mrf.mxu0
  %v156 = vadd.f32 %v43, %v155
  %v157 = vpop.f32.mrf.mxu0
  %v158 = vadd.f32 %v43, %v157
  %159 = vmatmul.bf16.gmra.mxu0 %v117
  %v160 = vpop.f32.mrf.mxu0
  %v161 = vadd.f32 %v43, %v160
  %v162 = vpop.f32.mrf.mxu0
  %v163 = vadd.f32 %v43, %v162
  %164 = vmatmul.bf16.gmra.mxu0 %v120
  %v165 = vpop.f32.mrf.mxu0
  %v166 = vadd.f32 %v43, %v165
  %v167 = vpop.f32.mrf.mxu0
  %v168 = vadd.f32 %v43, %v167
  %169 = vmatmul.bf16.gmra.mxu0 %v123
  %v170 = vpop.f32.mrf.mxu0
  %v171 = vadd.f32 %v43, %v170
  %v172 = vpop.f32.mrf.mxu0
  %v173 = vadd.f32 %v43, %v172
  %174 = vmatmul.bf16.gmra.mxu0 %v126
  %v175 = vpop.f32.mrf.mxu0
  %v176 = vadd.f32 %v43, %v175
  %v177 = vpop.f32.mrf.mxu0
  %v178 = vadd.f32 %v43, %v177
  %179 = vmatmul.bf16.gmra.mxu0 %v129
  %v180 = vpop.f32.mrf.mxu0
  %v181 = vadd.f32 %v43, %v180
  %v182 = vpop.f32.mrf.mxu0
  %v183 = vadd.f32 %v43, %v182
  %184 = vmatmul.bf16.gmra.mxu0 %v132
  %v185 = vpop.f32.mrf.mxu0
  %v186 = vadd.f32 %v43, %v185
  %v187 = vpop.f32.mrf.mxu0
  %v188 = vadd.f32 %v43, %v187
  %189 = vmatmul.bf16.gmra.mxu0 %v135
  %v190 = vpop.f32.mrf.mxu0
  %v191 = vadd.f32 %v43, %v190
  %v192 = vpop.f32.mrf.mxu0
  %v193 = vadd.f32 %v43, %v192
  %194 = vmatmul.bf16.gmra.mxu0 %v138
  %v195 = vpop.f32.mrf.mxu0
  %v196 = vadd.f32 %v43, %v195
  %v197 = vpop.f32.mrf.mxu0
  %v198 = vadd.f32 %v43, %v197
  %199 = vmatmul.bf16.gmra.mxu0 %v141
  %v200 = vpop.f32.mrf.mxu0
  %v201 = vadd.f32 %v43, %v200
  %v202 = vpop.f32.mrf.mxu0
  %v203 = vadd.f32 %v43, %v202
  %204 = vmatmul.bf16.gmra.mxu0 %v144
  %v205 = vpop.f32.mrf.mxu0
  %v206 = vadd.f32 %v43, %v205
  %v207 = vpop.f32.mrf.mxu0
  %v208 = vadd.f32 %v43, %v207
  %209 = vdwg.mxu0
  %v210 = vmax.f32 %v156, 0.0
  %v211 = vmax.f32 %v158, 0.0
  %v212 = vmax.f32 %v161, 0.0
  %v213 = vmax.f32 %v163, 0.0
  %v214 = vmax.f32 %v166, 0.0
  %v215 = vmax.f32 %v168, 0.0
  %v216 = vmax.f32 %v171, 0.0
  %v217 = vmax.f32 %v173, 0.0
  %v218 = vmax.f32 %v176, 0.0
  %v219 = vmax.f32 %v178, 0.0
  %v220 = vmax.f32 %v181, 0.0
  %v221 = vmax.f32 %v183, 0.0
  %v222 = vmax.f32 %v186, 0.0
  %v223 = vmax.f32 %v188, 0.0
  %v224 = vmax.f32 %v191, 0.0
  %v225 = vmax.f32 %v193, 0.0
  %v226 = vmax.f32 %v196, 0.0
  %v227 = vmax.f32 %v198, 0.0
  %v228 = vmax.f32 %v201, 0.0
  %v229 = vmax.f32 %v203, 0.0
  %v230 = vmax.f32 %v206, 0.0
  %v231 = vmax.f32 %v208, 0.0
  %v232 = vpack.c.bf16 %v210, %v210
  %v233 = vpack.c.bf16 %v211, %v211
  %v234 = vpack.c.bf16 %v212, %v212
  %v235 = vpack.c.bf16 %v213, %v213
  %v236 = vpack.c.bf16 %v214, %v214
  %v237 = vpack.c.bf16 %v215, %v215
  %v238 = vpack.c.bf16 %v216, %v216
  %v239 = vpack.c.bf16 %v217, %v217
  %v240 = vpack.c.bf16 %v218, %v218
  %v241 = vpack.c.bf16 %v219, %v219
  %v242 = vpack.c.bf16 %v220, %v220
  %v243 = vpack.c.bf16 %v221, %v221
  %v244 = vpack.c.bf16 %v222, %v222
  %v245 = vpack.c.bf16 %v223, %v223
  %v246 = vpack.c.bf16 %v224, %v224
  %v247 = vpack.c.bf16 %v225, %v225
  %v248 = vpack.c.bf16 %v226, %v226
  %v249 = vpack.c.bf16 %v227, %v227
  %v250 = vpack.c.bf16 %v228, %v228
  %v251 = vpack.c.bf16 %v229, %v229
  %v252 = vpack.c.bf16 %v230, %v230
  %v253 = vpack.c.bf16 %v231, %v231
  %254 = vst [vmem:[%s3] sm:$0xf] %v232
  %255 = vst [vmem:[%s3 + $0x4] sm:$0xf] %v233
  %256 = vst [vmem:[%s3 + $0x8] sm:$0xf] %v234
  %257 = vst [vmem:[%s3 + $0xc] sm:$0xf] %v235
  %258 = vst [vmem:[%s3 + $0x10] sm:$0xf] %v236
  %259 = vst [vmem:[%s3 + $0x14] sm:$0xf] %v237
  %260 = vst [vmem:[%s3 + $0x18] sm:$0xf] %v238
  %261 = vst [vmem:[%s3 + $0x1c] sm:$0xf] %v239
  %262 = vst [vmem:[%s3 + $0x20] sm:$0xf] %v240
  %263 = vst [vmem:[%s3 + $0x24] sm:$0xf] %v241
  %264 = vst [vmem:[%s3 + $0x28] sm:$0xf] %v242
  %265 = vst [vmem:[%s3 + $0x2c] sm:$0xf] %v243
  %266 = vst [vmem:[%s3 + $0x30] sm:$0xf] %v244
  %267 = vst [vmem:[%s3 + $0x34] sm:$0xf] %v245
  %268 = vst [vmem:[%s3 + $0x38] sm:$0xf] %v246
  %269 = vst [vmem:[%s3 + $0x3c] sm:$0xf] %v247
  %270 = vst [vmem:[%s3 + $0x40] sm:$0xf] %v248
  %271 = vst [vmem:[%s3 + $0x44] sm:$0xf] %v249
  %272 = vst [vmem:[%s3 + $0x48] sm:$0xf] %v250
  %273 = vst [vmem:[%s3 + $0x4c] sm:$0xf] %v251
  %274 = vst [vmem:[%s3 + $0x50] sm:$0xf] %v252
  %275 = vst [vmem:[%s3 + $0x54] sm:$0xf] %v253
  // Predicated region
  $region14: #{_lambda_.6} parent=0 // pred_check
    _
  $region15: #{_lambda_.6} parent=0 // pred_check_branch
    %277 = sbr.rel (0) target = $region17
  $region16: #{_lambda_.6} parent=0 // pred_region
    _
  $region17: #{_lambda_.6} parent=0 // pred_fallthru
    _
  // Predicated region
  $region18: #{_lambda_.6} parent=0 // pred_check
    _
  $region19: #{_lambda_.6} parent=0 // pred_check_branch
    %279 = sbr.rel (0) target = $region21
  $region20: #{_lambda_.6} parent=0 // pred_region
    _
  $region21: #{_lambda_.6} parent=0 // pred_fallthru
    _

// kernel: _lambda_.8
$region0: #{_lambda_.8}
  #allocation0 [shape = 'u32[]', space=smem, size = 0x4, offset = 0x4, fixed_abs, tag = 'smem constant byte address 0x4 - core index']
  #allocation1 [shape = 'u32[72,128]{1,0:T(1,128)}', space=vmem, size = 0x9000, scoped, tag = 'internal scratch']
  %s0 = inlined_call_operand.vmem [shape: bf16[64,64], index: 0, kind: input, shape index: {}]
  %s1 = inlined_call_operand.vmem [shape: bf16[64,384], index: 1, kind: input, shape index: {}]
  %s2 = inlined_call_operand.vmem [shape: f32[1,384], index: 2, kind: input, shape index: {}]
  %s3 = inlined_call_operand.vmem [shape: f32[64,384], index: 3, kind: output, shape index: {}]
  %s4 = sld [smem:[#allocation0]]
  $region120: #{_lambda_.8} parent=0
    _
  %s6 = ssub.s32 1, %s4
  %s7 = scalar_select 0, %s6, %s4
  $region1: #{_lambda_.8} parent=0
    #allocation2 [shape = 'u8[32768]{0}', space=vmem, size = 0x8000, scoped, tag = 'input window, operand 1']
    #allocation3 [shape = 'u8[65536]{0}', space=vmem, size = 0x10000, scoped, tag = 'output window, operand 0']
    loop: start=0, step=1, limit=5
    $region2: #{_lambda_.8} parent=1 // loop_pre_header
      _
    $region3: #{_lambda_.8} parent=1 // loop_header
      %s9 = sphi 0, %s13
      %p10 = scmp.ge.s32.totalorder %s9, 5
      %s16 = sphi 0, %s28
      %s17 = sphi 0, %s24
      %s18 = sphi 0, %s16
      %s19 = sphi 0, %s17
      %s20 = sphi 0, %s18
      %s21 = sphi 0, %s19
      %s31 = sphi 0, %s33
      %s34 = sphi 0, %s31
      %s35 = sphi 0, %s34
      %s51 = sphi 0, %s35
      %s57 = sphi 0, %s59
      %s60 = sphi 0, %s57
      %s61 = sphi 0, %s60
      %s77 = sphi 0, %s61
      %s83 = sphi 0, %s85
      %s86 = sphi 0, %s83
      %s87 = sphi 0, %s86
      %s103 = sphi 0, %s87
      %s111 = sphi 0, %s113
      %s114 = sphi 0, %s111
      %s115 = sphi 0, %s114
      %s131 = sphi 0, %s115
    $region4: #{_lambda_.8} parent=1 // loop_header_branch
      %12 = sbr.rel (%p10) target = $region8
    $region5: #{_lambda_.8} parent=1 // loop_body
      %s14 = ssub.s32 %s9, 1
      %s15 = ssub.s32 %s9, 2
      %s22 = sadd.s32 1, %s17
      %p23 = scmp.ge.s32.totalorder %s22, 3
      %s24 = scalar_select %p23, 0, %s22
      %s25 = sadd.s32 1, %s16
      %s26 = scalar_select %p23, %s25, %s16
      %p27 = scmp.ge.s32.totalorder %s26, 1
      %s28 = scalar_select %p27, 0, %s26
      %s29 = ssub.s32 %s16, %s28
      %p30 = scmp.eq.s32.totalorder %s29, 0
      %s32 = sadd.s32 %s31, 1
      %s33 = scalar_select %p30, %s31, %s32
      %p36 = pneg %p30
      %p37 = scmp.eq.s32.totalorder %s9, 2
      %p38 = por %p36, %p37
      %p39 = scmp.ne.s32.totalorder %s31, %s34
      %p40 = scmp.eq.s32.totalorder %s9, 0
      %p41 = por %p39, %p40
      %p42 = scmp.ne.s32.totalorder %s31, %s34
      %p43 = scmp.eq.s32.totalorder %s14, 2
      %p44 = por %p42, %p43
      %p45 = scmp.ne.s32.totalorder %s34, %s35
      %p46 = scmp.eq.s32.totalorder %s14, 0
      %p47 = por %p45, %p46
      %p48 = scmp.ne.s32.totalorder %s34, %s35
      %p49 = scmp.eq.s32.totalorder %s15, 2
      %p50 = por %p48, %p49
      %p52 = scmp.ne.s32.totalorder %s35, %s51
      %p53 = scmp.eq.s32.totalorder %s15, 0
      %p54 = por %p52, %p53
      %s55 = ssub.s32 %s17, %s24
      %p56 = scmp.eq.s32.totalorder %s55, 0
      %s58 = sadd.s32 %s57, 1
      %s59 = scalar_select %p56, %s57, %s58
      %p62 = pneg %p56
      %p63 = scmp.eq.s32.totalorder %s9, 2
      %p64 = por %p62, %p63
      %p65 = scmp.ne.s32.totalorder %s57, %s60
      %p66 = scmp.eq.s32.totalorder %s9, 0
      %p67 = por %p65, %p66
      %p68 = scmp.ne.s32.totalorder %s57, %s60
      %p69 = scmp.eq.s32.totalorder %s14, 2
      %p70 = por %p68, %p69
      %p71 = scmp.ne.s32.totalorder %s60, %s61
      %p72 = scmp.eq.s32.totalorder %s14, 0
      %p73 = por %p71, %p72
      %p74 = scmp.ne.s32.totalorder %s60, %s61
      %p75 = scmp.eq.s32.totalorder %s15, 2
      %p76 = por %p74, %p75
      %p78 = scmp.ne.s32.totalorder %s61, %s77
      %p79 = scmp.eq.s32.totalorder %s15, 0
      %p80 = por %p78, %p79
      %s81 = ssub.s32 %s17, %s24
      %p82 = scmp.eq.s32.totalorder %s81, 0
      %s84 = sadd.s32 %s83, 1
      %s85 = scalar_select %p82, %s83, %s84
      %p88 = pneg %p82
      %p89 = scmp.eq.s32.totalorder %s9, 2
      %p90 = por %p88, %p89
      %p91 = scmp.ne.s32.totalorder %s83, %s86
      %p92 = scmp.eq.s32.totalorder %s9, 0
      %p93 = por %p91, %p92
      %p94 = scmp.ne.s32.totalorder %s83, %s86
      %p95 = scmp.eq.s32.totalorder %s14, 2
      %p96 = por %p94, %p95
      %p97 = scmp.ne.s32.totalorder %s86, %s87
      %p98 = scmp.eq.s32.totalorder %s14, 0
      %p99 = por %p97, %p98
      %p100 = scmp.ne.s32.totalorder %s86, %s87
      %p101 = scmp.eq.s32.totalorder %s15, 2
      %p102 = por %p100, %p101
      %p104 = scmp.ne.s32.totalorder %s87, %s103
      %p105 = scmp.eq.s32.totalorder %s15, 0
      %p106 = por %p104, %p105
      %s107 = ssub.s32 %s16, %s28
      %s108 = ssub.s32 %s17, %s24
      %s109 = sor.u32 %s107, %s108
      %p110 = scmp.eq.s32.totalorder %s109, 0
      %s112 = sadd.s32 %s111, 1
      %s113 = scalar_select %p110, %s111, %s112
      %p116 = pneg %p110
      %p117 = scmp.eq.s32.totalorder %s9, 2
      %p118 = por %p116, %p117
      %p119 = scmp.ne.s32.totalorder %s111, %s114
      %p120 = scmp.eq.s32.totalorder %s9, 0
      %p121 = por %p119, %p120
      %p122 = scmp.ne.s32.totalorder %s111, %s114
      %p123 = scmp.eq.s32.totalorder %s14, 2
      %p124 = por %p122, %p123
      %p125 = scmp.ne.s32.totalorder %s114, %s115
      %p126 = scmp.eq.s32.totalorder %s14, 0
      %p127 = por %p125, %p126
      %p128 = scmp.ne.s32.totalorder %s114, %s115
      %p129 = scmp.eq.s32.totalorder %s15, 2
      %p130 = por %p128, %p129
      %p132 = scmp.ne.s32.totalorder %s115, %s131
      %p133 = scmp.eq.s32.totalorder %s15, 0
      %p134 = por %p132, %p133
      %p135 = scmp.le.s32.totalorder 1, %s9
      %p136 = scmp.lt.s32.totalorder %s9, 4
      %p137 = pnand %p135, %p136
      %p138 = pneg %p137
      // Predicated region
      $region9: #{_lambda_.8} parent=5 // pred_check
        _
      $region10: #{_lambda_.8} parent=5 // pred_check_branch
        %140 = sbr.rel (%p137) target = $region12
      $region11: #{_lambda_.8} parent=5 // pred_region
        %s141 = ssub.s32 %s9, 1
        // Predicated region
        $region13: #{_lambda_.8} parent=11 // pred_check
          %p142 = pneg %p47
        $region14: #{_lambda_.8} parent=11 // pred_check_branch
          %144 = sbr.rel (%p142) target = $region16
        $region15: #{_lambda_.8} parent=11 // pred_region
          %s145 = smul.u32 8, %s18
          %p146 = scmp.lt.s32.totalorder %s145, 7
          %s147 = scalar_select %p146, %s145, 7
          %s148 = smul.addr %s147, 4
          %s149 = scalar_lea.vmem %s0, %s148
          %s150 = smul.u32 8, %s18
        $region16: #{_lambda_.8} parent=11 // pred_fallthru
          _
      $region12: #{_lambda_.8} parent=5 // pred_fallthru
        _
      %p151 = scmp.lt.s32.totalorder %s9, 3
      // Predicated region
      $region17: #{_lambda_.8} parent=5 // pred_check
        %p152 = pneg %p151
      $region18: #{_lambda_.8} parent=5 // pred_check_branch
        %154 = sbr.rel (%p152) target = $region20
      $region19: #{_lambda_.8} parent=5 // pred_region
        // Predicated region
        $region21: #{_lambda_.8} parent=19 // pred_check
          %p155 = pneg %p67
        $region22: #{_lambda_.8} parent=19 // pred_check_branch
          %157 = sbr.rel (%p155) target = $region24
        $region23: #{_lambda_.8} parent=19 // pred_region
          %s158 = sand.u32 %s57, 1
          %s159 = sand.u32 %s57, 1
          %s160 = smul.addr %s159, 32
          %s161 = scalar_lea.vmem [#allocation2], %s160
          %s162 = smul.addr %s17, 4
          %s163 = scalar_lea.vmem %s1, %s162
          // Predicated region
          $region25: #{_lambda_.8} parent=23 // pred_check
            _
          $region26: #{_lambda_.8} parent=23 // pred_check_branch
            %165 = sbr.rel (0) target = $region28
          $region27: #{_lambda_.8} parent=23 // pred_region
            // Predicated region
            $region29: #{_lambda_.8} parent=27 // pred_check
              _
            $region30: #{_lambda_.8} parent=27 // pred_check_branch
              %167 = sbr.rel target = $region32
            $region31: #{_lambda_.8} parent=27 // pred_region
              // Predicated region
              $region44: #{_lambda_.8} parent=31 // pred_check
                _
              $region45: #{_lambda_.8} parent=31 // pred_check_branch
                %197 = sbr.rel (0) target = $region47
              $region46: #{_lambda_.8} parent=31 // pred_region
                loop: start=0, step=1, limit=1
                $region48: #{_lambda_.8} parent=46 // loop_pre_header
                  _
                $region49: #{_lambda_.8} parent=46 // loop_header
                  %s199 = sphi 0, %s203
                  %p200 = scmp.ge.s32.totalorder %s199, 1
                  %s204 = sphi %s163, %s163
                  %s205 = sphi %s161, %s161
                $region50: #{_lambda_.8} parent=46 // loop_header_branch
                  %202 = sbr.rel (%p200) target = $region54
                $region51: #{_lambda_.8} parent=46 // loop_body
                  _
                $region52: #{_lambda_.8} parent=46 // loop_footer
                  %s203 = sadd.s32 1, %s199
                $region53: #{_lambda_.8} parent=46 // loop_footer_branch
                  %198 = sbr.rel target = $region49
                $region54: #{_lambda_.8} parent=46 // loop_exit
                  _
                %s207 = ssub.s32 16, 1
                loop: start=0, step=1, limit=1
                $region55: #{_lambda_.8} parent=46 // loop_pre_header
                  _
                $region56: #{_lambda_.8} parent=46 // loop_header
                  %s209 = sphi 0, %s213
                  %p210 = scmp.ge.s32.totalorder %s209, 1
                  %s214 = sphi %s163, %s163
                  %s215 = sphi %s161, %s161
                $region57: #{_lambda_.8} parent=46 // loop_header_branch
                  %212 = sbr.rel (%p210) target = $region61
                $region58: #{_lambda_.8} parent=46 // loop_body
                  %v216 = vld [vmem:[%s214] sm:%s207]
                  %217 = vst [vmem:[%s215] sm:%s207] %v216
                  %v218 = vld [vmem:[%s214 + $0xc] sm:%s207]
                  %219 = vst [vmem:[%s215 + $0x4] sm:%s207] %v218
                  %v220 = vld [vmem:[%s214 + $0x18] sm:%s207]
                  %221 = vst [vmem:[%s215 + $0x8] sm:%s207] %v220
                  %v222 = vld [vmem:[%s214 + $0x24] sm:%s207]
                  %223 = vst [vmem:[%s215 + $0xc] sm:%s207] %v222
                  %v224 = vld [vmem:[%s214 + $0x30] sm:%s207]
                  %225 = vst [vmem:[%s215 + $0x10] sm:%s207] %v224
                  %v226 = vld [vmem:[%s214 + $0x3c] sm:%s207]
                  %227 = vst [vmem:[%s215 + $0x14] sm:%s207] %v226
                  %v228 = vld [vmem:[%s214 + $0x48] sm:%s207]
                  %229 = vst [vmem:[%s215 + $0x18] sm:%s207] %v228
                  %v230 = vld [vmem:[%s214 + $0x54] sm:%s207]
                  %231 = vst [vmem:[%s215 + $0x1c] sm:%s207] %v230
                $region59: #{_lambda_.8} parent=46 // loop_footer
                  %s213 = sadd.s32 1, %s209
                $region60: #{_lambda_.8} parent=46 // loop_footer_branch
                  %208 = sbr.rel target = $region56
                $region61: #{_lambda_.8} parent=46 // loop_exit
                  _
              $region47: #{_lambda_.8} parent=31 // pred_fallthru
                _
            $region32: #{_lambda_.8} parent=27 // pred_fallthru
              _
            // Predicated region
            $region33: #{_lambda_.8} parent=27 // pred_check
              _
            $region34: #{_lambda_.8} parent=27 // pred_check_branch
              %169 = sbr.rel (0) target = $region36
            $region35: #{_lambda_.8} parent=27 // pred_region
              %s171 = ssub.s32 16, 1
              loop: start=0, step=1, limit=1
              $region37: #{_lambda_.8} parent=35 // loop_pre_header
                _
              $region38: #{_lambda_.8} parent=35 // loop_header
                %s173 = sphi 0, %s177
                %p174 = scmp.ge.s32.totalorder %s173, 1
                %s178 = sphi %s163, %s163
                %s179 = sphi %s161, %s161
              $region39: #{_lambda_.8} parent=35 // loop_header_branch
                %176 = sbr.rel (%p174) target = $region43
              $region40: #{_lambda_.8} parent=35 // loop_body
                %v180 = vld [vmem:[%s178] sm:%s171]
                %181 = vst [vmem:[%s179] sm:%s171] %v180
                %v182 = vld [vmem:[%s178 + $0xc] sm:%s171]
                %183 = vst [vmem:[%s179 + $0x4] sm:%s171] %v182
                %v184 = vld [vmem:[%s178 + $0x18] sm:%s171]
                %185 = vst [vmem:[%s179 + $0x8] sm:%s171] %v184
                %v186 = vld [vmem:[%s178 + $0x24] sm:%s171]
                %187 = vst [vmem:[%s179 + $0xc] sm:%s171] %v186
                %v188 = vld [vmem:[%s178 + $0x30] sm:%s171]
                %189 = vst [vmem:[%s179 + $0x10] sm:%s171] %v188
                %v190 = vld [vmem:[%s178 + $0x3c] sm:%s171]
                %191 = vst [vmem:[%s179 + $0x14] sm:%s171] %v190
                %v192 = vld [vmem:[%s178 + $0x48] sm:%s171]
                %193 = vst [vmem:[%s179 + $0x18] sm:%s171] %v192
                %v194 = vld [vmem:[%s178 + $0x54] sm:%s171]
                %195 = vst [vmem:[%s179 + $0x1c] sm:%s171] %v194
              $region41: #{_lambda_.8} parent=35 // loop_footer
                %s177 = sadd.s32 1, %s173
              $region42: #{_lambda_.8} parent=35 // loop_footer_branch
                %172 = sbr.rel target = $region38
              $region43: #{_lambda_.8} parent=35 // loop_exit
                _
            $region36: #{_lambda_.8} parent=27 // pred_fallthru
              _
          $region28: #{_lambda_.8} parent=23 // pred_fallthru
            _
          %232 = vnop
        $region24: #{_lambda_.8} parent=19 // pred_fallthru
          _
        // Predicated region
        $region62: #{_lambda_.8} parent=19 // pred_check
          %p233 = pneg %p93
        $region63: #{_lambda_.8} parent=19 // pred_check_branch
          %235 = sbr.rel (%p233) target = $region65
        $region64: #{_lambda_.8} parent=19 // pred_region
          %p236 = scmp.lt.s32.totalorder %s17, 2
          %s237 = scalar_select %p236, %s17, 2
          %s238 = scalar_lea.vmem %s2, %s237
        $region65: #{_lambda_.8} parent=19 // pred_fallthru
          _
      $region20: #{_lambda_.8} parent=5 // pred_fallthru
        _
      %p239 = scmp.le.s32.totalorder 1, %s9
      %p240 = scmp.lt.s32.totalorder %s9, 4
      %p241 = pnand %p239, %p240
      %p242 = pneg %p241
      // Predicated region
      $region66: #{_lambda_.8} parent=5 // pred_check
        _
      $region67: #{_lambda_.8} parent=5 // pred_check_branch
        %244 = sbr.rel (%p241) target = $region69
      $region68: #{_lambda_.8} parent=5 // pred_region
        %s245 = ssub.s32 %s9, 1
        %s246 = sand.u32 %s60, 1
        %s247 = sand.u32 %s60, 1
        %s248 = smul.addr %s247, 32
        %s249 = scalar_lea.vmem [#allocation2], %s248
        // Predicated region
        $region70: #{_lambda_.8} parent=68 // pred_check
          %p250 = pneg %p73
        $region71: #{_lambda_.8} parent=68 // pred_check_branch
          %252 = sbr.rel (%p250) target = $region73
        $region72: #{_lambda_.8} parent=68 // pred_region
          _
        $region73: #{_lambda_.8} parent=68 // pred_fallthru
          _
        %s253 = smul.u32 8, %s18
        %p254 = scmp.lt.s32.totalorder %s253, 7
        %s255 = scalar_select %p254, %s253, 7
        %s256 = smul.addr %s255, 4
        %s257 = scalar_lea.vmem %s0, %s256
        %p258 = pneg %p47
        %p259 = pneg %p44
        %s260 = sand.u32 %s60, 1
        %s261 = sand.u32 %s60, 1
        %s262 = smul.addr %s261, 32
        %s263 = scalar_lea.vmem [#allocation2], %s262
        %p264 = pneg %p73
        %p265 = pneg %p70
        %p266 = scmp.lt.s32.totalorder %s19, 2
        %s267 = scalar_select %p266, %s19, 2
        %s268 = scalar_lea.vmem %s2, %s267
        %p269 = pneg %p99
        %p270 = pneg %p96
        %p271 = pneg %p127
        %p272 = pneg %p124
        %s273 = sand.u32 %s114, 1
        %s274 = sand.u32 %s114, 1
        %s275 = smul.addr %s274, 64
        %s276 = scalar_lea.vmem [#allocation3], %s275
        %s277 = smul.u32 8, %s18
        %p278 = scmp.lt.s32.totalorder %s277, 7
        %s279 = scalar_select %p278, %s277, 7
        %s280 = smul.addr %s279, 4
        %s281 = scalar_lea.vmem %s0, %s280
        %s282 = smul.u32 8, %s18
        %p283 = scmp.lt.s32.totalorder %s19, 2
        %s284 = scalar_select %p283, %s19, 2
        %s285 = scalar_lea.vmem %s2, %s284
        %s286 = smul.u32 8, %s18
        %v288 = vld [vmem:[%s281] sm:$0xf]
        %v289 = vld [vmem:[%s281 + $0x4] sm:$0xf]
        %v290 = vld [vmem:[%s281 + $0x8] sm:$0xf]
        %v291 = vld [vmem:[%s281 + $0xc] sm:$0xf]
        %v292 = vld [vmem:[%s281 + $0x10] sm:$0xf]
        %v293 = vld [vmem:[%s281 + $0x14] sm:$0xf]
        %v294 = vld [vmem:[%s281 + $0x18] sm:$0xf]
        %v295 = vld [vmem:[%s281 + $0x1c] sm:$0xf]
        %v296 = vld [vmem:[%s249] sm:$0xf]
        %v297 = vld [vmem:[%s249 + $0x4] sm:$0xf]
        %v298 = vld [vmem:[%s249 + $0x8] sm:$0xf]
        %v299 = vld [vmem:[%s249 + $0xc] sm:$0xf]
        %v300 = vld [vmem:[%s249 + $0x10] sm:$0xf]
        %v301 = vld [vmem:[%s249 + $0x14] sm:$0xf]
        %v302 = vld [vmem:[%s249 + $0x18] sm:$0xf]
        %v303 = vld [vmem:[%s249 + $0x1c] sm:$0xf]
        %v304 = vld [vmem:[%s285] sm:$0x1]
        %v306 = vperm.slane %v304, 0
        %v316 = vunpack.c.l.b16 %v288
        %v317 = vunpack.c.l.b16 %v289
        %v318 = vunpack.c.l.b16 %v290
        %v319 = vunpack.c.l.b16 %v291
        %v320 = vunpack.c.l.b16 %v292
        %v321 = vunpack.c.l.b16 %v293
        %v322 = vunpack.c.l.b16 %v294
        %v323 = vunpack.c.l.b16 %v295
        %v324 = vpack.c.b16 %v317, %v316
        %v325 = vpack.c.b16 %v319, %v318
        %v326 = vpack.c.b16 %v321, %v320
        %v327 = vpack.c.b16 %v323, %v322
        %v336 = vunpack.c.l.b16 %v296
        %v337 = vunpack.c.l.b16 %v297
        %v338 = vunpack.c.l.b16 %v298
        %v339 = vunpack.c.l.b16 %v299
        %v340 = vunpack.c.l.b16 %v300
        %v341 = vunpack.c.l.b16 %v301
        %v342 = vunpack.c.l.b16 %v302
        %v343 = vunpack.c.l.b16 %v303
        %v344 = vpack.c.b16 %v337, %v336
        %v345 = vpack.c.b16 %v339, %v338
        %v346 = vpack.c.b16 %v341, %v340
        %v347 = vpack.c.b16 %v343, %v342
        %vm352 = vcmask 523264
        %v354 = vsel %vm352, %v324, 0
        %v357 = vsel %vm352, %v325, 0
        %v360 = vsel %vm352, %v326, 0
        %v363 = vsel %vm352, %v327, 0
        %365 = vmatpush.bf16.msra.mxu0 0
        %366 = vmatpush.bf16.msra.mxu0 0
        %367 = vmatpush.bf16.msra.mxu0 0
        %368 = vmatpush.bf16.msra.mxu0 0
        %369 = vmatpush.bf16.msra.mxu0 %v347
        %370 = vmatpush.bf16.msra.mxu0 %v346
        %371 = vmatpush.bf16.msra.mxu0 %v345
        %372 = vmatpush.bf16.msra.mxu0 %v344
        %373 = vmatmul.bf16.gmra.mxu0 %v354
        %v374 = vpop.f32.mrf.mxu0
        %v375 = vadd.f32 %v306, %v374
        %v376 = vpop.f32.mrf.mxu0
        %v377 = vadd.f32 %v306, %v376
        %378 = vmatmul.bf16.gmra.mxu0 %v357
        %v379 = vpop.f32.mrf.mxu0
        %v380 = vadd.f32 %v306, %v379
        %v381 = vpop.f32.mrf.mxu0
        %v382 = vadd.f32 %v306, %v381
        %383 = vmatmul.bf16.gmra.mxu0 %v360
        %v384 = vpop.f32.mrf.mxu0
        %v385 = vadd.f32 %v306, %v384
        %v386 = vpop.f32.mrf.mxu0
        %v387 = vadd.f32 %v306, %v386
        %388 = vmatmul.bf16.gmra.mxu0 %v363
        %v389 = vpop.f32.mrf.mxu0
        %v390 = vadd.f32 %v306, %v389
        %v391 = vpop.f32.mrf.mxu0
        %v392 = vadd.f32 %v306, %v391
        %393 = vdwg.mxu0
        %394 = vst [vmem:[%s276] sm:$0xff] %v375
        %395 = vst [vmem:[%s276 + $0x8] sm:$0xff] %v377
        %396 = vst [vmem:[%s276 + $0x10] sm:$0xff] %v380
        %397 = vst [vmem:[%s276 + $0x18] sm:$0xff] %v382
        %398 = vst [vmem:[%s276 + $0x20] sm:$0xff] %v385
        %399 = vst [vmem:[%s276 + $0x28] sm:$0xff] %v387
        %400 = vst [vmem:[%s276 + $0x30] sm:$0xff] %v390
        %401 = vst [vmem:[%s276 + $0x38] sm:$0xff] %v392
        %s402 = sand.u32 %s114, 1
        %s403 = sand.u32 %s114, 1
        %s404 = smul.addr %s403, 64
        %s405 = scalar_lea.vmem [#allocation3], %s404
        // Predicated region
        $region74: #{_lambda_.8} parent=68 // pred_check
          %p406 = pneg %p124
        $region75: #{_lambda_.8} parent=68 // pred_check_branch
          %408 = sbr.rel (%p406) target = $region77
        $region76: #{_lambda_.8} parent=68 // pred_region
          %s409 = smul.u32 8, %s18
          %s410 = smul.addr %s409, 3
          %s411 = sadd.s32 %s19, %s410
          %s412 = smul.addr %s411, 8
          %s413 = scalar_lea.vmem %s3, %s412
          // Predicated region
          $region78: #{_lambda_.8} parent=76 // pred_check
            _
          $region79: #{_lambda_.8} parent=76 // pred_check_branch
            %415 = sbr.rel (0) target = $region81
          $region80: #{_lambda_.8} parent=76 // pred_region
            // Predicated region
            $region82: #{_lambda_.8} parent=80 // pred_check
              _
            $region83: #{_lambda_.8} parent=80 // pred_check_branch
              %417 = sbr.rel (0) target = $region85
            $region84: #{_lambda_.8} parent=80 // pred_region
              // Predicated region
              $region97: #{_lambda_.8} parent=84 // pred_check
                _
              $region98: #{_lambda_.8} parent=84 // pred_check_branch
                %447 = sbr.rel (0) target = $region100
              $region99: #{_lambda_.8} parent=84 // pred_region
                loop: start=0, step=1, limit=1
                $region101: #{_lambda_.8} parent=99 // loop_pre_header
                  _
                $region102: #{_lambda_.8} parent=99 // loop_header
                  %s449 = sphi 0, %s453
                  %p450 = scmp.ge.s32.totalorder %s449, 1
                  %s454 = sphi %s405, %s405
                  %s455 = sphi %s413, %s413
                $region103: #{_lambda_.8} parent=99 // loop_header_branch
                  %452 = sbr.rel (%p450) target = $region107
                $region104: #{_lambda_.8} parent=99 // loop_body
                  %v456 = vld [vmem:[%s454] sm:$0xff]
                  %457 = vst [vmem:[%s455] sm:$0xff] %v456
                  %v458 = vld [vmem:[%s454 + $0x8] sm:$0xff]
                  %459 = vst [vmem:[%s455 + $0x18] sm:$0xff] %v458
                  %v460 = vld [vmem:[%s454 + $0x10] sm:$0xff]
                  %461 = vst [vmem:[%s455 + $0x30] sm:$0xff] %v460
                  %v462 = vld [vmem:[%s454 + $0x18] sm:$0xff]
                  %463 = vst [vmem:[%s455 + $0x48] sm:$0xff] %v462
                  %v464 = vld [vmem:[%s454 + $0x20] sm:$0xff]
                  %465 = vst [vmem:[%s455 + $0x60] sm:$0xff] %v464
                  %v466 = vld [vmem:[%s454 + $0x28] sm:$0xff]
                  %467 = vst [vmem:[%s455 + $0x78] sm:$0xff] %v466
                  %v468 = vld [vmem:[%s454 + $0x30] sm:$0xff]
                  %469 = vst [vmem:[%s455 + $0x90] sm:$0xff] %v468
                  %v470 = vld [vmem:[%s454 + $0x38] sm:$0xff]
                  %471 = vst [vmem:[%s455 + $0xa8] sm:$0xff] %v470
                $region105: #{_lambda_.8} parent=99 // loop_footer
                  %s453 = sadd.s32 1, %s449
                $region106: #{_lambda_.8} parent=99 // loop_footer_branch
                  %448 = sbr.rel target = $region102
                $region107: #{_lambda_.8} parent=99 // loop_exit
                  _
              $region100: #{_lambda_.8} parent=84 // pred_fallthru
                _
              // Predicated region
              $region108: #{_lambda_.8} parent=84 // pred_check
                _
              $region109: #{_lambda_.8} parent=84 // pred_check_branch
                %473 = sbr.rel target = $region111
              $region110: #{_lambda_.8} parent=84 // pred_region
                _
              $region111: #{_lambda_.8} parent=84 // pred_fallthru
                _
            $region85: #{_lambda_.8} parent=80 // pred_fallthru
              _
            // Predicated region
            $region86: #{_lambda_.8} parent=80 // pred_check
              _
            $region87: #{_lambda_.8} parent=80 // pred_check_branch
              %419 = sbr.rel target = $region89
            $region88: #{_lambda_.8} parent=80 // pred_region
              %s421 = ssub.s32 256, 1
              loop: start=0, step=1, limit=1
              $region90: #{_lambda_.8} parent=88 // loop_pre_header
                _
              $region91: #{_lambda_.8} parent=88 // loop_header
                %s423 = sphi 0, %s427
                %p424 = scmp.ge.s32.totalorder %s423, 1
                %s428 = sphi %s405, %s405
                %s429 = sphi %s413, %s413
              $region92: #{_lambda_.8} parent=88 // loop_header_branch
                %426 = sbr.rel (%p424) target = $region96
              $region93: #{_lambda_.8} parent=88 // loop_body
                %v430 = vld [vmem:[%s428] sm:%s421]
                %431 = vst [vmem:[%s429] sm:%s421] %v430
                %v432 = vld [vmem:[%s428 + $0x8] sm:%s421]
                %433 = vst [vmem:[%s429 + $0x18] sm:%s421] %v432
                %v434 = vld [vmem:[%s428 + $0x10] sm:%s421]
                %435 = vst [vmem:[%s429 + $0x30] sm:%s421] %v434
                %v436 = vld [vmem:[%s428 + $0x18] sm:%s421]
                %437 = vst [vmem:[%s429 + $0x48] sm:%s421] %v436
                %v438 = vld [vmem:[%s428 + $0x20] sm:%s421]
                %439 = vst [vmem:[%s429 + $0x60] sm:%s421] %v438
                %v440 = vld [vmem:[%s428 + $0x28] sm:%s421]
                %441 = vst [vmem:[%s429 + $0x78] sm:%s421] %v440
                %v442 = vld [vmem:[%s428 + $0x30] sm:%s421]
                %443 = vst [vmem:[%s429 + $0x90] sm:%s421] %v442
                %v444 = vld [vmem:[%s428 + $0x38] sm:%s421]
                %445 = vst [vmem:[%s429 + $0xa8] sm:%s421] %v444
              $region94: #{_lambda_.8} parent=88 // loop_footer
                %s427 = sadd.s32 1, %s423
              $region95: #{_lambda_.8} parent=88 // loop_footer_branch
                %422 = sbr.rel target = $region91
              $region96: #{_lambda_.8} parent=88 // loop_exit
                _
            $region89: #{_lambda_.8} parent=80 // pred_fallthru
              _
          $region81: #{_lambda_.8} parent=76 // pred_fallthru
            _
          %474 = vnop
        $region77: #{_lambda_.8} parent=68 // pred_fallthru
          _
      $region69: #{_lambda_.8} parent=5 // pred_fallthru
        _
      %p475 = scmp.le.s32.totalorder 2, %s9
      // Predicated region
      $region112: #{_lambda_.8} parent=5 // pred_check
        %p476 = pneg %p475
      $region113: #{_lambda_.8} parent=5 // pred_check_branch
        %478 = sbr.rel (%p476) target = $region115
      $region114: #{_lambda_.8} parent=5 // pred_region
        %s479 = ssub.s32 %s9, 2
        // Predicated region
        $region116: #{_lambda_.8} parent=114 // pred_check
          %p480 = pneg %p130
        $region117: #{_lambda_.8} parent=114 // pred_check_branch
          %482 = sbr.rel (%p480) target = $region119
        $region118: #{_lambda_.8} parent=114 // pred_region
          %s483 = sand.u32 %s115, 1
          %s484 = sand.u32 %s115, 1
          %s485 = smul.addr %s484, 64
          %s486 = scalar_lea.vmem [#allocation3], %s485
        $region119: #{_lambda_.8} parent=114 // pred_fallthru
          _
      $region115: #{_lambda_.8} parent=5 // pred_fallthru
        _
    $region6: #{_lambda_.8} parent=1 // loop_footer
      %s13 = sadd.s32 1, %s9
    $region7: #{_lambda_.8} parent=1 // loop_footer_branch
      %8 = sbr.rel target = $region3
    $region8: #{_lambda_.8} parent=1 // loop_exit
      _

// kernel: _lambda_.7
$region0: #{_lambda_.7}
  #allocation0 [shape = 'u32[]', space=smem, size = 0x4, offset = 0x4, fixed_abs, tag = 'smem constant byte address 0x4 - core index']
  #allocation1 [shape = 'u32[72,128]{1,0:T(1,128)}', space=vmem, size = 0x9000, scoped, tag = 'internal scratch']
  %s0 = inlined_call_operand.vmem [shape: bf16[64,480], index: 0, kind: input, shape index: {}]
  %s1 = inlined_call_operand.vmem [shape: bf16[480,128], index: 1, kind: input, shape index: {}]
  %s2 = inlined_call_operand.vmem [shape: f32[1,128], index: 2, kind: input, shape index: {}]
  %s3 = inlined_call_operand.vmem [shape: bf16[64,128], index: 3, kind: output, shape index: {}]
  %s4 = sld [smem:[#allocation0]]
  $region22: #{_lambda_.7} parent=0
    _
  %s6 = ssub.s32 1, %s4
  %s7 = scalar_select 0, %s6, %s4
  // Predicated region
  $region2: #{_lambda_.7} parent=0 // pred_check
    _
  $region3: #{_lambda_.7} parent=0 // pred_check_branch
    %9 = sbr.rel (0) target = $region5
  $region4: #{_lambda_.7} parent=0 // pred_region
    _
  $region5: #{_lambda_.7} parent=0 // pred_fallthru
    _
  // Predicated region
  $region6: #{_lambda_.7} parent=0 // pred_check
    _
  $region7: #{_lambda_.7} parent=0 // pred_check_branch
    %11 = sbr.rel (0) target = $region9
  $region8: #{_lambda_.7} parent=0 // pred_region
    _
  $region9: #{_lambda_.7} parent=0 // pred_fallthru
    _
  // Predicated region
  $region10: #{_lambda_.7} parent=0 // pred_check
    _
  $region11: #{_lambda_.7} parent=0 // pred_check_branch
    %13 = sbr.rel (0) target = $region13
  $region12: #{_lambda_.7} parent=0 // pred_region
    _
  $region13: #{_lambda_.7} parent=0 // pred_fallthru
    _
  %v15 = vld [vmem:[%s0] sm:$0xff]
  %v16 = vld [vmem:[%s0 + $0x8] sm:$0xff]
  %v17 = vld [vmem:[%s0 + $0x10] sm:$0xff]
  %v18 = vld [vmem:[%s0 + $0x18] sm:$0xff]
  %v19 = vld [vmem:[%s0 + $0x20] sm:$0xff]
  %v20 = vld [vmem:[%s0 + $0x28] sm:$0xff]
  %v21 = vld [vmem:[%s0 + $0x30] sm:$0xff]
  %v22 = vld [vmem:[%s0 + $0x38] sm:$0xff]
  %v23 = vld [vmem:[%s0 + $0x40] sm:$0xff]
  %v24 = vld [vmem:[%s0 + $0x48] sm:$0xff]
  %v25 = vld [vmem:[%s0 + $0x50] sm:$0xff]
  %v26 = vld [vmem:[%s0 + $0x58] sm:$0xff]
  %v27 = vld [vmem:[%s0 + $0x60] sm:$0xff]
  %v28 = vld [vmem:[%s0 + $0x68] sm:$0xff]
  %v29 = vld [vmem:[%s0 + $0x70] sm:$0xff]
  %v30 = vld [vmem:[%s0 + $0x78] sm:$0xff]
  %v31 = vld [vmem:[%s1] sm:$0xf]
  %v32 = vld [vmem:[%s1 + $0x4] sm:$0xf]
  %v33 = vld [vmem:[%s1 + $0x8] sm:$0xf]
  %v34 = vld [vmem:[%s1 + $0xc] sm:$0xf]
  %v35 = vld [vmem:[%s1 + $0x10] sm:$0xf]
  %v36 = vld [vmem:[%s1 + $0x14] sm:$0xf]
  %v37 = vld [vmem:[%s1 + $0x18] sm:$0xf]
  %v38 = vld [vmem:[%s1 + $0x1c] sm:$0xf]
  %v39 = vld [vmem:[%s1 + $0x20] sm:$0xf]
  %v40 = vld [vmem:[%s1 + $0x24] sm:$0xf]
  %v41 = vld [vmem:[%s1 + $0x28] sm:$0xf]
  %v42 = vld [vmem:[%s1 + $0x2c] sm:$0xf]
  %v43 = vld [vmem:[%s1 + $0x30] sm:$0xf]
  %v44 = vld [vmem:[%s1 + $0x34] sm:$0xf]
  %v45 = vld [vmem:[%s1 + $0x38] sm:$0xf]
  %v46 = vld [vmem:[%s1 + $0x3c] sm:$0xf]
  %v47 = vld [vmem:[%s1 + $0x40] sm:$0xf]
  %v48 = vld [vmem:[%s1 + $0x44] sm:$0xf]
  %v49 = vld [vmem:[%s1 + $0x48] sm:$0xf]
  %v50 = vld [vmem:[%s1 + $0x4c] sm:$0xf]
  %v51 = vld [vmem:[%s1 + $0x50] sm:$0xf]
  %v52 = vld [vmem:[%s1 + $0x54] sm:$0xf]
  %v53 = vld [vmem:[%s1 + $0x58] sm:$0xf]
  %v54 = vld [vmem:[%s1 + $0x5c] sm:$0xf]
  %v55 = vld [vmem:[%s1 + $0x60] sm:$0xf]
  %v56 = vld [vmem:[%s1 + $0x64] sm:$0xf]
  %v57 = vld [vmem:[%s1 + $0x68] sm:$0xf]
  %v58 = vld [vmem:[%s1 + $0x6c] sm:$0xf]
  %v59 = vld [vmem:[%s1 + $0x70] sm:$0xf]
  %v60 = vld [vmem:[%s1 + $0x74] sm:$0xf]
  %v61 = vld [vmem:[%s1 + $0x78] sm:$0xf]
  %v62 = vld [vmem:[%s1 + $0x7c] sm:$0xf]
  %v63 = vld [vmem:[%s1 + $0x80] sm:$0xf]
  %v64 = vld [vmem:[%s1 + $0x84] sm:$0xf]
  %v65 = vld [vmem:[%s1 + $0x88] sm:$0xf]
  %v66 = vld [vmem:[%s1 + $0x8c] sm:$0xf]
  %v67 = vld [vmem:[%s1 + $0x90] sm:$0xf]
  %v68 = vld [vmem:[%s1 + $0x94] sm:$0xf]
  %v69 = vld [vmem:[%s1 + $0x98] sm:$0xf]
  %v70 = vld [vmem:[%s1 + $0x9c] sm:$0xf]
  %v71 = vld [vmem:[%s1 + $0xa0] sm:$0xf]
  %v72 = vld [vmem:[%s1 + $0xa4] sm:$0xf]
  %v73 = vld [vmem:[%s1 + $0xa8] sm:$0xf]
  %v74 = vld [vmem:[%s1 + $0xac] sm:$0xf]
  %v75 = vld [vmem:[%s1 + $0xb0] sm:$0xf]
  %v76 = vld [vmem:[%s1 + $0xb4] sm:$0xf]
  %v77 = vld [vmem:[%s1 + $0xb8] sm:$0xf]
  %v78 = vld [vmem:[%s1 + $0xbc] sm:$0xf]
  %v79 = vld [vmem:[%s1 + $0xc0] sm:$0xf]
  %v80 = vld [vmem:[%s1 + $0xc4] sm:$0xf]
  %v81 = vld [vmem:[%s1 + $0xc8] sm:$0xf]
  %v82 = vld [vmem:[%s1 + $0xcc] sm:$0xf]
  %v83 = vld [vmem:[%s1 + $0xd0] sm:$0xf]
  %v84 = vld [vmem:[%s1 + $0xd4] sm:$0xf]
  %v85 = vld [vmem:[%s1 + $0xd8] sm:$0xf]
  %v86 = vld [vmem:[%s1 + $0xdc] sm:$0xf]
  %v87 = vld [vmem:[%s1 + $0xe0] sm:$0xf]
  %v88 = vld [vmem:[%s1 + $0xe4] sm:$0xf]
  %v89 = vld [vmem:[%s1 + $0xe8] sm:$0xf]
  %v90 = vld [vmem:[%s1 + $0xec] sm:$0xf]
  %v91 = vld [vmem:[%s2] sm:$0x1]
  %v93 = vperm.slane %v91, 0
  %v111 = vunpack.c.l.b16 %v15
  %v112 = vunpack.c.h.b16 %v15
  %v113 = vunpack.c.l.b16 %v16
  %v114 = vunpack.c.h.b16 %v16
  %v115 = vunpack.c.l.b16 %v17
  %v116 = vunpack.c.h.b16 %v17
  %v117 = vunpack.c.l.b16 %v18
  %v118 = vunpack.c.h.b16 %v18
  %v119 = vunpack.c.l.b16 %v19
  %v120 = vunpack.c.h.b16 %v19
  %v121 = vunpack.c.l.b16 %v20
  %v122 = vunpack.c.h.b16 %v20
  %v123 = vunpack.c.l.b16 %v21
  %v124 = vunpack.c.h.b16 %v21
  %v125 = vunpack.c.l.b16 %v22
  %v126 = vunpack.c.h.b16 %v22
  %v127 = vunpack.c.l.b16 %v23
  %v128 = vunpack.c.h.b16 %v23
  %v129 = vunpack.c.l.b16 %v24
  %v130 = vunpack.c.h.b16 %v24
  %v131 = vunpack.c.l.b16 %v25
  %v132 = vunpack.c.h.b16 %v25
  %v133 = vunpack.c.l.b16 %v26
  %v134 = vunpack.c.h.b16 %v26
  %v135 = vunpack.c.l.b16 %v27
  %v136 = vunpack.c.h.b16 %v27
  %v137 = vunpack.c.l.b16 %v28
  %v138 = vunpack.c.h.b16 %v28
  %v139 = vunpack.c.l.b16 %v29
  %v140 = vunpack.c.h.b16 %v29
  %v141 = vunpack.c.l.b16 %v30
  %v142 = vunpack.c.h.b16 %v30
  %v143 = vpack.c.b16 %v115, %v111
  %v144 = vpack.c.b16 %v116, %v112
  %v145 = vpack.c.b16 %v117, %v113
  %v146 = vpack.c.b16 %v118, %v114
  %v147 = vpack.c.b16 %v123, %v119
  %v148 = vpack.c.b16 %v124, %v120
  %v149 = vpack.c.b16 %v125, %v121
  %v150 = vpack.c.b16 %v126, %v122
  %v151 = vpack.c.b16 %v131, %v127
  %v152 = vpack.c.b16 %v132, %v128
  %v153 = vpack.c.b16 %v133, %v129
  %v154 = vpack.c.b16 %v134, %v130
  %v155 = vpack.c.b16 %v139, %v135
  %v156 = vpack.c.b16 %v140, %v136
  %v157 = vpack.c.b16 %v141, %v137
  %v158 = vpack.c.b16 %v142, %v138
  %v231 = vunpack.c.l.b16 %v31
  %v232 = vunpack.c.l.b16 %v32
  %v233 = vunpack.c.l.b16 %v33
  %v234 = vunpack.c.l.b16 %v34
  %v235 = vunpack.c.l.b16 %v35
  %v236 = vunpack.c.l.b16 %v36
  %v237 = vunpack.c.l.b16 %v37
  %v238 = vunpack.c.l.b16 %v38
  %v239 = vunpack.c.l.b16 %v39
  %v240 = vunpack.c.l.b16 %v40
  %v241 = vunpack.c.l.b16 %v41
  %v242 = vunpack.c.l.b16 %v42
  %v243 = vunpack.c.l.b16 %v43
  %v244 = vunpack.c.l.b16 %v44
  %v245 = vunpack.c.l.b16 %v45
  %v246 = vunpack.c.l.b16 %v46
  %v247 = vunpack.c.l.b16 %v47
  %v248 = vunpack.c.l.b16 %v48
  %v249 = vunpack.c.l.b16 %v49
  %v250 = vunpack.c.l.b16 %v50
  %v251 = vunpack.c.l.b16 %v51
  %v252 = vunpack.c.l.b16 %v52
  %v253 = vunpack.c.l.b16 %v53
  %v254 = vunpack.c.l.b16 %v54
  %v255 = vunpack.c.l.b16 %v55
  %v256 = vunpack.c.l.b16 %v56
  %v257 = vunpack.c.l.b16 %v57
  %v258 = vunpack.c.l.b16 %v58
  %v259 = vunpack.c.l.b16 %v59
  %v260 = vunpack.c.l.b16 %v60
  %v261 = vunpack.c.l.b16 %v61
  %v262 = vunpack.c.l.b16 %v62
  %v263 = vunpack.c.l.b16 %v63
  %v264 = vunpack.c.l.b16 %v64
  %v265 = vunpack.c.l.b16 %v65
  %v266 = vunpack.c.l.b16 %v66
  %v267 = vunpack.c.l.b16 %v67
  %v268 = vunpack.c.l.b16 %v68
  %v269 = vunpack.c.l.b16 %v69
  %v270 = vunpack.c.l.b16 %v70
  %v271 = vunpack.c.l.b16 %v71
  %v272 = vunpack.c.l.b16 %v72
  %v273 = vunpack.c.l.b16 %v73
  %v274 = vunpack.c.l.b16 %v74
  %v275 = vunpack.c.l.b16 %v75
  %v276 = vunpack.c.l.b16 %v76
  %v277 = vunpack.c.l.b16 %v77
  %v278 = vunpack.c.l.b16 %v78
  %v279 = vunpack.c.l.b16 %v79
  %v280 = vunpack.c.l.b16 %v80
  %v281 = vunpack.c.l.b16 %v81
  %v282 = vunpack.c.l.b16 %v82
  %v283 = vunpack.c.l.b16 %v83
  %v284 = vunpack.c.l.b16 %v84
  %v285 = vunpack.c.l.b16 %v85
  %v286 = vunpack.c.l.b16 %v86
  %v287 = vunpack.c.l.b16 %v87
  %v288 = vunpack.c.l.b16 %v88
  %v289 = vunpack.c.l.b16 %v89
  %v290 = vunpack.c.l.b16 %v90
  %v291 = vpack.c.b16 %v232, %v231
  %v292 = vpack.c.b16 %v234, %v233
  %v293 = vpack.c.b16 %v236, %v235
  %v294 = vpack.c.b16 %v238, %v237
  %v295 = vpack.c.b16 %v240, %v239
  %v296 = vpack.c.b16 %v242, %v241
  %v297 = vpack.c.b16 %v244, %v243
  %v298 = vpack.c.b16 %v246, %v245
  %v299 = vpack.c.b16 %v248, %v247
  %v300 = vpack.c.b16 %v250, %v249
  %v301 = vpack.c.b16 %v252, %v251
  %v302 = vpack.c.b16 %v254, %v253
  %v303 = vpack.c.b16 %v256, %v255
  %v304 = vpack.c.b16 %v258, %v257
  %v305 = vpack.c.b16 %v260, %v259
  %v306 = vpack.c.b16 %v262, %v261
  %v307 = vpack.c.b16 %v264, %v263
  %v308 = vpack.c.b16 %v266, %v265
  %v309 = vpack.c.b16 %v268, %v267
  %v310 = vpack.c.b16 %v270, %v269
  %v311 = vpack.c.b16 %v272, %v271
  %v312 = vpack.c.b16 %v274, %v273
  %v313 = vpack.c.b16 %v276, %v275
  %v314 = vpack.c.b16 %v278, %v277
  %v315 = vpack.c.b16 %v280, %v279
  %v316 = vpack.c.b16 %v282, %v281
  %v317 = vpack.c.b16 %v284, %v283
  %v318 = vpack.c.b16 %v286, %v285
  %v319 = vpack.c.b16 %v288, %v287
  %v320 = vpack.c.b16 %v290, %v289
  %vm351 = vcmask 785408
  %v353 = vsel %vm351, %v146, 0
  %v356 = vsel %vm351, %v150, 0
  %v359 = vsel %vm351, %v154, 0
  %v362 = vsel %vm351, %v158, 0
  %364 = vmatpush.bf16.msra.mxu0 %v298
  %365 = vmatpush.bf16.msra.mxu0 %v297
  %366 = vmatpush.bf16.msra.mxu0 %v296
  %367 = vmatpush.bf16.msra.mxu0 %v295
  %368 = vmatpush.bf16.msra.mxu0 %v294
  %369 = vmatpush.bf16.msra.mxu0 %v293
  %370 = vmatpush.bf16.msra.mxu0 %v292
  %371 = vmatpush.bf16.msra.mxu0 %v291
  %372 = vmatmul.bf16.gmra.mxu0 %v143
  %v373 = vpop.f32.mrf.mxu0
  %v374 = vadd.f32 %v93, %v373
  %v375 = vpop.f32.mrf.mxu0
  %v376 = vadd.f32 %v93, %v375
  %377 = vmatmul.bf16.gmra.mxu0 %v147
  %v378 = vpop.f32.mrf.mxu0
  %v379 = vadd.f32 %v93, %v378
  %v380 = vpop.f32.mrf.mxu0
  %v381 = vadd.f32 %v93, %v380
  %382 = vmatmul.bf16.gmra.mxu0 %v151
  %v383 = vpop.f32.mrf.mxu0
  %v384 = vadd.f32 %v93, %v383
  %v385 = vpop.f32.mrf.mxu0
  %v386 = vadd.f32 %v93, %v385
  %387 = vmatmul.bf16.gmra.mxu0 %v155
  %v388 = vpop.f32.mrf.mxu0
  %v389 = vadd.f32 %v93, %v388
  %v390 = vpop.f32.mrf.mxu0
  %v391 = vadd.f32 %v93, %v390
  %392 = vdwg.mxu0
  %393 = vmatpush.bf16.msra.mxu0 %v306
  %394 = vmatpush.bf16.msra.mxu0 %v305
  %395 = vmatpush.bf16.msra.mxu0 %v304
  %396 = vmatpush.bf16.msra.mxu0 %v303
  %397 = vmatpush.bf16.msra.mxu0 %v302
  %398 = vmatpush.bf16.msra.mxu0 %v301
  %399 = vmatpush.bf16.msra.mxu0 %v300
  %400 = vmatpush.bf16.msra.mxu0 %v299
  %401 = vmatmul.bf16.gmra.mxu0 %v144
  %v402 = vpop.f32.mrf.mxu0
  %v403 = vadd.f32 %v374, %v402
  %v404 = vpop.f32.mrf.mxu0
  %v405 = vadd.f32 %v376, %v404
  %406 = vmatmul.bf16.gmra.mxu0 %v148
  %v407 = vpop.f32.mrf.mxu0
  %v408 = vadd.f32 %v379, %v407
  %v409 = vpop.f32.mrf.mxu0
  %v410 = vadd.f32 %v381, %v409
  %411 = vmatmul.bf16.gmra.mxu0 %v152
  %v412 = vpop.f32.mrf.mxu0
  %v413 = vadd.f32 %v384, %v412
  %v414 = vpop.f32.mrf.mxu0
  %v415 = vadd.f32 %v386, %v414
  %416 = vmatmul.bf16.gmra.mxu0 %v156
  %v417 = vpop.f32.mrf.mxu0
  %v418 = vadd.f32 %v389, %v417
  %v419 = vpop.f32.mrf.mxu0
  %v420 = vadd.f32 %v391, %v419
  %421 = vdwg.mxu0
  %422 = vmatpush.bf16.msra.mxu0 %v314
  %423 = vmatpush.bf16.msra.mxu0 %v313
  %424 = vmatpush.bf16.msra.mxu0 %v312
  %425 = vmatpush.bf16.msra.mxu0 %v311
  %426 = vmatpush.bf16.msra.mxu0 %v310
  %427 = vmatpush.bf16.msra.mxu0 %v309
  %428 = vmatpush.bf16.msra.mxu0 %v308
  %429 = vmatpush.bf16.msra.mxu0 %v307
  %430 = vmatmul.bf16.gmra.mxu0 %v145
  %v431 = vpop.f32.mrf.mxu0
  %v432 = vadd.f32 %v403, %v431
  %v433 = vpop.f32.mrf.mxu0
  %v434 = vadd.f32 %v405, %v433
  %435 = vmatmul.bf16.gmra.mxu0 %v149
  %v436 = vpop.f32.mrf.mxu0
  %v437 = vadd.f32 %v408, %v436
  %v438 = vpop.f32.mrf.mxu0
  %v439 = vadd.f32 %v410, %v438
  %440 = vmatmul.bf16.gmra.mxu0 %v153
  %v441 = vpop.f32.mrf.mxu0
  %v442 = vadd.f32 %v413, %v441
  %v443 = vpop.f32.mrf.mxu0
  %v444 = vadd.f32 %v415, %v443
  %445 = vmatmul.bf16.gmra.mxu0 %v157
  %v446 = vpop.f32.mrf.mxu0
  %v447 = vadd.f32 %v418, %v446
  %v448 = vpop.f32.mrf.mxu0
  %v449 = vadd.f32 %v420, %v448
  %450 = vdwg.mxu0
  %451 = vmatpush.bf16.msra.mxu0 0
  %452 = vmatpush.bf16.msra.mxu0 0
  %453 = vmatpush.bf16.msra.mxu0 %v320
  %454 = vmatpush.bf16.msra.mxu0 %v319
  %455 = vmatpush.bf16.msra.mxu0 %v318
  %456 = vmatpush.bf16.msra.mxu0 %v317
  %457 = vmatpush.bf16.msra.mxu0 %v316
  %458 = vmatpush.bf16.msra.mxu0 %v315
  %459 = vmatmul.bf16.gmra.mxu0 %v353
  %v460 = vpop.f32.mrf.mxu0
  %v461 = vadd.f32 %v432, %v460
  %v462 = vpop.f32.mrf.mxu0
  %v463 = vadd.f32 %v434, %v462
  %464 = vmatmul.bf16.gmra.mxu0 %v356
  %v465 = vpop.f32.mrf.mxu0
  %v466 = vadd.f32 %v437, %v465
  %v467 = vpop.f32.mrf.mxu0
  %v468 = vadd.f32 %v439, %v467
  %469 = vmatmul.bf16.gmra.mxu0 %v359
  %v470 = vpop.f32.mrf.mxu0
  %v471 = vadd.f32 %v442, %v470
  %v472 = vpop.f32.mrf.mxu0
  %v473 = vadd.f32 %v444, %v472
  %474 = vmatmul.bf16.gmra.mxu0 %v362
  %v475 = vpop.f32.mrf.mxu0
  %v476 = vadd.f32 %v447, %v475
  %v477 = vpop.f32.mrf.mxu0
  %v478 = vadd.f32 %v449, %v477
  %479 = vdwg.mxu0
  %v480 = vmax.f32 %v461, 0.0
  %v481 = vmax.f32 %v463, 0.0
  %v482 = vmax.f32 %v466, 0.0
  %v483 = vmax.f32 %v468, 0.0
  %v484 = vmax.f32 %v471, 0.0
  %v485 = vmax.f32 %v473, 0.0
  %v486 = vmax.f32 %v476, 0.0
  %v487 = vmax.f32 %v478, 0.0
  %v488 = vpack.c.bf16 %v480, %v480
  %v489 = vpack.c.bf16 %v481, %v481
  %v490 = vpack.c.bf16 %v482, %v482
  %v491 = vpack.c.bf16 %v483, %v483
  %v492 = vpack.c.bf16 %v484, %v484
  %v493 = vpack.c.bf16 %v485, %v485
  %v494 = vpack.c.bf16 %v486, %v486
  %v495 = vpack.c.bf16 %v487, %v487
  %496 = vst [vmem:[%s3] sm:$0xf] %v488
  %497 = vst [vmem:[%s3 + $0x4] sm:$0xf] %v489
  %498 = vst [vmem:[%s3 + $0x8] sm:$0xf] %v490
  %499 = vst [vmem:[%s3 + $0xc] sm:$0xf] %v491
  %500 = vst [vmem:[%s3 + $0x10] sm:$0xf] %v492
  %501 = vst [vmem:[%s3 + $0x14] sm:$0xf] %v493
  %502 = vst [vmem:[%s3 + $0x18] sm:$0xf] %v494
  %503 = vst [vmem:[%s3 + $0x1c] sm:$0xf] %v495
  // Predicated region
  $region14: #{_lambda_.7} parent=0 // pred_check
    _
  $region15: #{_lambda_.7} parent=0 // pred_check_branch
    %505 = sbr.rel (0) target = $region17
  $region16: #{_lambda_.7} parent=0 // pred_region
    _
  $region17: #{_lambda_.7} parent=0 // pred_fallthru
    _
  // Predicated region
  $region18: #{_lambda_.7} parent=0 // pred_check
    _
  $region19: #{_lambda_.7} parent=0 // pred_check_branch
    %507 = sbr.rel (0) target = $region21
  $region20: #{_lambda_.7} parent=0 // pred_region
    _
  $region21: #{_lambda_.7} parent=0 // pred_fallthru
    _

// kernel: _lambda_.9
$region0: #{_lambda_.9}
  #allocation0 [shape = 'u32[]', space=smem, size = 0x4, offset = 0x4, fixed_abs, tag = 'smem constant byte address 0x4 - core index']
  #allocation1 [shape = 'u32[72,128]{1,0:T(1,128)}', space=vmem, size = 0x9000, scoped, tag = 'internal scratch']
  #allocation2 [shape = 'f32[3,16,128]{2,1,0:T(8,128)}', space=vmem, size = 0x6000, scoped, tag = 'scratch operand']
  %s0 = inlined_call_operand.vmem [shape: f32[3,32,384], index: 0, kind: input, shape index: {}]
  %s1 = inlined_call_operand.vmem [shape: bf16[128,384], index: 1, kind: input, shape index: {}]
  %s2 = inlined_call_operand.vmem [shape: f32[1,128], index: 2, kind: input, shape index: {}]
  %s3 = inlined_call_operand.vmem [shape: bf16[128,64], index: 3, kind: input, shape index: {}]
  %s4 = inlined_call_operand.vmem [shape: f32[1,64], index: 4, kind: input, shape index: {}]
  %s5 = inlined_call_operand.vmem [shape: bf16[3,32,64], index: 5, kind: output, shape index: {}]
  %s6 = sld [smem:[#allocation0]]
  $region120: #{_lambda_.9} parent=0
    _
  %s8 = ssub.s32 1, %s6
  %s9 = scalar_select 0, %s8, %s6
  $region1: #{_lambda_.9} parent=0
    #allocation3 [shape = 'u8[147456]{0}', space=vmem, size = 0x24000, scoped, tag = 'input window, operand 0']
    #allocation4 [shape = 'u8[24576]{0}', space=vmem, size = 0x6000, scoped, tag = 'output window, operand 0']
    loop: start=0, step=1, limit=4
    $region2: #{_lambda_.9} parent=1 // loop_pre_header
      _
    $region3: #{_lambda_.9} parent=1 // loop_header
      %s11 = sphi 0, %s15
      %p12 = scmp.ge.s32.totalorder %s11, 4
      %s21 = sphi 0, %s23
      %s24 = sphi 0, %s21
      %s25 = sphi 0, %s24
      %s41 = sphi 0, %s25
      %s45 = sphi 0, %s45
      %s47 = sphi 0, %s45
      %s48 = sphi 0, %s47
      %s62 = sphi 0, %s48
      %s66 = sphi 0, %s66
      %s68 = sphi 0, %s66
      %s69 = sphi 0, %s68
      %s83 = sphi 0, %s69
      %s87 = sphi 0, %s87
      %s89 = sphi 0, %s87
      %s90 = sphi 0, %s89
      %s104 = sphi 0, %s90
      %s108 = sphi 0, %s108
      %s110 = sphi 0, %s108
      %s111 = sphi 0, %s110
      %s125 = sphi 0, %s111
      %s131 = sphi 0, %s133
      %s134 = sphi 0, %s131
      %s135 = sphi 0, %s134
      %s151 = sphi 0, %s135
    $region4: #{_lambda_.9} parent=1 // loop_header_branch
      %14 = sbr.rel (%p12) target = $region8
    $region5: #{_lambda_.9} parent=1 // loop_body
      %s16 = ssub.s32 %s11, 1
      %s17 = ssub.s32 %s11, 2
      %s18 = sadd.s32 %s11, 1
      %s19 = ssub.s32 %s11, %s18
      %p20 = scmp.eq.s32.totalorder %s19, 0
      %s22 = sadd.s32 %s21, 1
      %s23 = scalar_select %p20, %s21, %s22
      %p26 = pneg %p20
      %p27 = scmp.eq.s32.totalorder %s11, 1
      %p28 = por %p26, %p27
      %p29 = scmp.ne.s32.totalorder %s21, %s24
      %p30 = scmp.eq.s32.totalorder %s11, 0
      %p31 = por %p29, %p30
      %p32 = scmp.ne.s32.totalorder %s21, %s24
      %p33 = scmp.eq.s32.totalorder %s16, 1
      %p34 = por %p32, %p33
      %p35 = scmp.ne.s32.totalorder %s24, %s25
      %p36 = scmp.eq.s32.totalorder %s16, 0
      %p37 = por %p35, %p36
      %p38 = scmp.ne.s32.totalorder %s24, %s25
      %p39 = scmp.eq.s32.totalorder %s17, 1
      %p40 = por %p38, %p39
      %p42 = scmp.ne.s32.totalorder %s25, %s41
      %p43 = scmp.eq.s32.totalorder %s17, 0
      %p44 = por %p42, %p43
      %s46 = sadd.s32 %s45, 1
      %p49 = scmp.eq.s32.totalorder %s11, 1
      %p50 = scmp.ne.s32.totalorder %s45, %s47
      %p51 = scmp.eq.s32.totalorder %s11, 0
      %p52 = por %p50, %p51
      %p53 = scmp.ne.s32.totalorder %s45, %s47
      %p54 = scmp.eq.s32.totalorder %s16, 1
      %p55 = por %p53, %p54
      %p56 = scmp.ne.s32.totalorder %s47, %s48
      %p57 = scmp.eq.s32.totalorder %s16, 0
      %p58 = por %p56, %p57
      %p59 = scmp.ne.s32.totalorder %s47, %s48
      %p60 = scmp.eq.s32.totalorder %s17, 1
      %p61 = por %p59, %p60
      %p63 = scmp.ne.s32.totalorder %s48, %s62
      %p64 = scmp.eq.s32.totalorder %s17, 0
      %p65 = por %p63, %p64
      %s67 = sadd.s32 %s66, 1
      %p70 = scmp.eq.s32.totalorder %s11, 1
      %p71 = scmp.ne.s32.totalorder %s66, %s68
      %p72 = scmp.eq.s32.totalorder %s11, 0
      %p73 = por %p71, %p72
      %p74 = scmp.ne.s32.totalorder %s66, %s68
      %p75 = scmp.eq.s32.totalorder %s16, 1
      %p76 = por %p74, %p75
      %p77 = scmp.ne.s32.totalorder %s68, %s69
      %p78 = scmp.eq.s32.totalorder %s16, 0
      %p79 = por %p77, %p78
      %p80 = scmp.ne.s32.totalorder %s68, %s69
      %p81 = scmp.eq.s32.totalorder %s17, 1
      %p82 = por %p80, %p81
      %p84 = scmp.ne.s32.totalorder %s69, %s83
      %p85 = scmp.eq.s32.totalorder %s17, 0
      %p86 = por %p84, %p85
      %s88 = sadd.s32 %s87, 1
      %p91 = scmp.eq.s32.totalorder %s11, 1
      %p92 = scmp.ne.s32.totalorder %s87, %s89
      %p93 = scmp.eq.s32.totalorder %s11, 0
      %p94 = por %p92, %p93
      %p95 = scmp.ne.s32.totalorder %s87, %s89
      %p96 = scmp.eq.s32.totalorder %s16, 1
      %p97 = por %p95, %p96
      %p98 = scmp.ne.s32.totalorder %s89, %s90
      %p99 = scmp.eq.s32.totalorder %s16, 0
      %p100 = por %p98, %p99
      %p101 = scmp.ne.s32.totalorder %s89, %s90
      %p102 = scmp.eq.s32.totalorder %s17, 1
      %p103 = por %p101, %p102
      %p105 = scmp.ne.s32.totalorder %s90, %s104
      %p106 = scmp.eq.s32.totalorder %s17, 0
      %p107 = por %p105, %p106
      %s109 = sadd.s32 %s108, 1
      %p112 = scmp.eq.s32.totalorder %s11, 1
      %p113 = scmp.ne.s32.totalorder %s108, %s110
      %p114 = scmp.eq.s32.totalorder %s11, 0
      %p115 = por %p113, %p114
      %p116 = scmp.ne.s32.totalorder %s108, %s110
      %p117 = scmp.eq.s32.totalorder %s16, 1
      %p118 = por %p116, %p117
      %p119 = scmp.ne.s32.totalorder %s110, %s111
      %p120 = scmp.eq.s32.totalorder %s16, 0
      %p121 = por %p119, %p120
      %p122 = scmp.ne.s32.totalorder %s110, %s111
      %p123 = scmp.eq.s32.totalorder %s17, 1
      %p124 = por %p122, %p123
      %p126 = scmp.ne.s32.totalorder %s111, %s125
      %p127 = scmp.eq.s32.totalorder %s17, 0
      %p128 = por %p126, %p127
      %s129 = ssub.s32 %s11, %s18
      %p130 = scmp.eq.s32.totalorder %s129, 0
      %s132 = sadd.s32 %s131, 1
      %s133 = scalar_select %p130, %s131, %s132
      %p136 = pneg %p130
      %p137 = scmp.eq.s32.totalorder %s11, 1
      %p138 = por %p136, %p137
      %p139 = scmp.ne.s32.totalorder %s131, %s134
      %p140 = scmp.eq.s32.totalorder %s11, 0
      %p141 = por %p139, %p140
      %p142 = scmp.ne.s32.totalorder %s131, %s134
      %p143 = scmp.eq.s32.totalorder %s16, 1
      %p144 = por %p142, %p143
      %p145 = scmp.ne.s32.totalorder %s134, %s135
      %p146 = scmp.eq.s32.totalorder %s16, 0
      %p147 = por %p145, %p146
      %p148 = scmp.ne.s32.totalorder %s134, %s135
      %p149 = scmp.eq.s32.totalorder %s17, 1
      %p150 = por %p148, %p149
      %p152 = scmp.ne.s32.totalorder %s135, %s151
      %p153 = scmp.eq.s32.totalorder %s17, 0
      %p154 = por %p152, %p153
      %p155 = scmp.le.s32.totalorder 1, %s11
      %p156 = scmp.lt.s32.totalorder %s11, 3
      %p157 = pnand %p155, %p156
      %p158 = pneg %p157
      // Predicated region
      $region9: #{_lambda_.9} parent=5 // pred_check
        _
      $region10: #{_lambda_.9} parent=5 // pred_check_branch
        %160 = sbr.rel (%p157) target = $region12
      $region11: #{_lambda_.9} parent=5 // pred_region
        %s161 = ssub.s32 %s11, 1
        // Predicated region
        $region13: #{_lambda_.9} parent=11 // pred_check
          %p162 = pneg %p58
        $region14: #{_lambda_.9} parent=11 // pred_check_branch
          %164 = sbr.rel (%p162) target = $region16
        $region15: #{_lambda_.9} parent=11 // pred_region
          _
        $region16: #{_lambda_.9} parent=11 // pred_fallthru
          _
        // Predicated region
        $region17: #{_lambda_.9} parent=11 // pred_check
          %p165 = pneg %p79
        $region18: #{_lambda_.9} parent=11 // pred_check_branch
          %167 = sbr.rel (%p165) target = $region20
        $region19: #{_lambda_.9} parent=11 // pred_region
          _
        $region20: #{_lambda_.9} parent=11 // pred_fallthru
          _
        // Predicated region
        $region21: #{_lambda_.9} parent=11 // pred_check
          %p168 = pneg %p100
        $region22: #{_lambda_.9} parent=11 // pred_check_branch
          %170 = sbr.rel (%p168) target = $region24
        $region23: #{_lambda_.9} parent=11 // pred_region
          _
        $region24: #{_lambda_.9} parent=11 // pred_fallthru
          _
        // Predicated region
        $region25: #{_lambda_.9} parent=11 // pred_check
          %p171 = pneg %p121
        $region26: #{_lambda_.9} parent=11 // pred_check_branch
          %173 = sbr.rel (%p171) target = $region28
        $region27: #{_lambda_.9} parent=11 // pred_region
          _
        $region28: #{_lambda_.9} parent=11 // pred_fallthru
          _
      $region12: #{_lambda_.9} parent=5 // pred_fallthru
        _
      %p174 = scmp.lt.s32.totalorder %s11, 2
      // Predicated region
      $region29: #{_lambda_.9} parent=5 // pred_check
        %p175 = pneg %p174
      $region30: #{_lambda_.9} parent=5 // pred_check_branch
        %177 = sbr.rel (%p175) target = $region32
      $region31: #{_lambda_.9} parent=5 // pred_region
        // Predicated region
        $region33: #{_lambda_.9} parent=31 // pred_check
          %p178 = pneg %p31
        $region34: #{_lambda_.9} parent=31 // pred_check_branch
          %180 = sbr.rel (%p178) target = $region36
        $region35: #{_lambda_.9} parent=31 // pred_region
          %s181 = sand.u32 %s21, 1
          %s182 = sand.u32 %s21, 1
          %s183 = smul.addr %s182, 144
          %s184 = scalar_lea.vmem [#allocation3], %s183
          %s185 = smul.u32 2, %s11
          %s186 = smul.addr %s185, 3
          %s187 = smul.addr %s186, 8
          %s188 = scalar_lea.vmem %s0, %s187
          // Predicated region
          $region37: #{_lambda_.9} parent=35 // pred_check
            _
          $region38: #{_lambda_.9} parent=35 // pred_check_branch
            %190 = sbr.rel (0) target = $region40
          $region39: #{_lambda_.9} parent=35 // pred_region
            // Predicated region
            $region41: #{_lambda_.9} parent=39 // pred_check
              _
            $region42: #{_lambda_.9} parent=39 // pred_check_branch
              %192 = sbr.rel (0) target = $region44
            $region43: #{_lambda_.9} parent=39 // pred_region
              loop: start=0, step=1, limit=1
              $region45: #{_lambda_.9} parent=43 // loop_pre_header
                _
              $region46: #{_lambda_.9} parent=43 // loop_header
                %s194 = sphi 0, %s198
                %p195 = scmp.ge.s32.totalorder %s194, 1
                %s199 = sphi %s188, %s188
                %s200 = sphi %s184, %s184
              $region47: #{_lambda_.9} parent=43 // loop_header_branch
                %197 = sbr.rel (%p195) target = $region51
              $region48: #{_lambda_.9} parent=43 // loop_body
                %v201 = vld [vmem:[%s199] sm:$0xff]
                %202 = vst [vmem:[%s200] sm:$0xff] %v201
                %v203 = vld [vmem:[%s199 + $0x8] sm:$0xff]
                %204 = vst [vmem:[%s200 + $0x8] sm:$0xff] %v203
                %v205 = vld [vmem:[%s199 + $0x10] sm:$0xff]
                %206 = vst [vmem:[%s200 + $0x10] sm:$0xff] %v205
                %v207 = vld [vmem:[%s199 + $0x18] sm:$0xff]
                %208 = vst [vmem:[%s200 + $0x18] sm:$0xff] %v207
                %v209 = vld [vmem:[%s199 + $0x20] sm:$0xff]
                %210 = vst [vmem:[%s200 + $0x20] sm:$0xff] %v209
                %v211 = vld [vmem:[%s199 + $0x28] sm:$0xff]
                %212 = vst [vmem:[%s200 + $0x28] sm:$0xff] %v211
                %v213 = vld [vmem:[%s199 + $0x60] sm:$0xff]
                %214 = vst [vmem:[%s200 + $0x30] sm:$0xff] %v213
                %v215 = vld [vmem:[%s199 + $0x68] sm:$0xff]
                %216 = vst [vmem:[%s200 + $0x38] sm:$0xff] %v215
                %v217 = vld [vmem:[%s199 + $0x70] sm:$0xff]
                %218 = vst [vmem:[%s200 + $0x40] sm:$0xff] %v217
                %v219 = vld [vmem:[%s199 + $0x78] sm:$0xff]
                %220 = vst [vmem:[%s200 + $0x48] sm:$0xff] %v219
                %v221 = vld [vmem:[%s199 + $0x80] sm:$0xff]
                %222 = vst [vmem:[%s200 + $0x50] sm:$0xff] %v221
                %v223 = vld [vmem:[%s199 + $0x88] sm:$0xff]
                %224 = vst [vmem:[%s200 + $0x58] sm:$0xff] %v223
                %v225 = vld [vmem:[%s199 + $0xc0] sm:$0xff]
                %226 = vst [vmem:[%s200 + $0x60] sm:$0xff] %v225
                %v227 = vld [vmem:[%s199 + $0xc8] sm:$0xff]
                %228 = vst [vmem:[%s200 + $0x68] sm:$0xff] %v227
                %v229 = vld [vmem:[%s199 + $0xd0] sm:$0xff]
                %230 = vst [vmem:[%s200 + $0x70] sm:$0xff] %v229
                %v231 = vld [vmem:[%s199 + $0xd8] sm:$0xff]
                %232 = vst [vmem:[%s200 + $0x78] sm:$0xff] %v231
                %v233 = vld [vmem:[%s199 + $0xe0] sm:$0xff]
                %234 = vst [vmem:[%s200 + $0x80] sm:$0xff] %v233
                %v235 = vld [vmem:[%s199 + $0xe8] sm:$0xff]
                %236 = vst [vmem:[%s200 + $0x88] sm:$0xff] %v235
              $region49: #{_lambda_.9} parent=43 // loop_footer
                %s198 = sadd.s32 1, %s194
              $region50: #{_lambda_.9} parent=43 // loop_footer_branch
                %193 = sbr.rel target = $region46
              $region51: #{_lambda_.9} parent=43 // loop_exit
                _
            $region44: #{_lambda_.9} parent=39 // pred_fallthru
              _
            // Predicated region
            $region52: #{_lambda_.9} parent=39 // pred_check
              _
            $region53: #{_lambda_.9} parent=39 // pred_check_branch
              %238 = sbr.rel target = $region55
            $region54: #{_lambda_.9} parent=39 // pred_region
              _
            $region55: #{_lambda_.9} parent=39 // pred_fallthru
              _
          $region40: #{_lambda_.9} parent=35 // pred_fallthru
            _
          %239 = vnop
        $region36: #{_lambda_.9} parent=31 // pred_fallthru
          _
      $region32: #{_lambda_.9} parent=5 // pred_fallthru
        _
      %p240 = scmp.le.s32.totalorder 1, %s11
      %p241 = scmp.lt.s32.totalorder %s11, 3
      %p242 = pnand %p240, %p241
      %p243 = pneg %p242
      // Predicated region
      $region56: #{_lambda_.9} parent=5 // pred_check
        _
      $region57: #{_lambda_.9} parent=5 // pred_check_branch
        %245 = sbr.rel (%p242) target = $region59
      $region58: #{_lambda_.9} parent=5 // pred_region
        %s246 = ssub.s32 %s11, 1
        %s247 = sand.u32 %s24, 1
        %s248 = sand.u32 %s24, 1
        %s249 = smul.addr %s248, 144
        %s250 = scalar_lea.vmem [#allocation3], %s249
        // Predicated region
        $region60: #{_lambda_.9} parent=58 // pred_check
          %p251 = pneg %p37
        $region61: #{_lambda_.9} parent=58 // pred_check_branch
          %253 = sbr.rel (%p251) target = $region63
        $region62: #{_lambda_.9} parent=58 // pred_region
          _
        $region63: #{_lambda_.9} parent=58 // pred_fallthru
          _
        %s254 = sand.u32 %s24, 1
        %s255 = sand.u32 %s24, 1
        %s256 = smul.addr %s255, 144
        %s257 = scalar_lea.vmem [#allocation3], %s256
        %p258 = pneg %p37
        %p259 = pneg %p34
        %p260 = pneg %p58
        %p261 = pneg %p55
        %p262 = pneg %p79
        %p263 = pneg %p76
        %p264 = pneg %p100
        %p265 = pneg %p97
        %p266 = pneg %p121
        %p267 = pneg %p118
        %p268 = pneg %p147
        %p269 = pneg %p144
        %s270 = sand.u32 %s134, 1
        %s271 = sand.u32 %s134, 1
        %s272 = smul.addr %s271, 24
        %s273 = scalar_lea.vmem [#allocation4], %s272
        %s274 = smul.u32 2, %s16
        %s275 = smul.u32 2, %s16
        %v276 = vld [vmem:[%s1] sm:$0xff]
        %v277 = vld [vmem:[%s1 + $0x8] sm:$0xf]
        %v278 = vld [vmem:[%s1 + $0xc] sm:$0xff]
        %v279 = vld [vmem:[%s1 + $0x14] sm:$0xf]
        %v280 = vld [vmem:[%s1 + $0x18] sm:$0xff]
        %v281 = vld [vmem:[%s1 + $0x20] sm:$0xf]
        %v282 = vld [vmem:[%s1 + $0x24] sm:$0xff]
        %v283 = vld [vmem:[%s1 + $0x2c] sm:$0xf]
        %v284 = vld [vmem:[%s1 + $0x30] sm:$0xff]
        %v285 = vld [vmem:[%s1 + $0x38] sm:$0xf]
        %v286 = vld [vmem:[%s1 + $0x3c] sm:$0xff]
        %v287 = vld [vmem:[%s1 + $0x44] sm:$0xf]
        %v288 = vld [vmem:[%s1 + $0x48] sm:$0xff]
        %v289 = vld [vmem:[%s1 + $0x50] sm:$0xf]
        %v290 = vld [vmem:[%s1 + $0x54] sm:$0xff]
        %v291 = vld [vmem:[%s1 + $0x5c] sm:$0xf]
        %v292 = vld [vmem:[%s1 + $0x60] sm:$0xff]
        %v293 = vld [vmem:[%s1 + $0x68] sm:$0xf]
        %v294 = vld [vmem:[%s1 + $0x6c] sm:$0xff]
        %v295 = vld [vmem:[%s1 + $0x74] sm:$0xf]
        %v296 = vld [vmem:[%s1 + $0x78] sm:$0xff]
        %v297 = vld [vmem:[%s1 + $0x80] sm:$0xf]
        %v298 = vld [vmem:[%s1 + $0x84] sm:$0xff]
        %v299 = vld [vmem:[%s1 + $0x8c] sm:$0xf]
        %v300 = vld [vmem:[%s1 + $0x90] sm:$0xff]
        %v301 = vld [vmem:[%s1 + $0x98] sm:$0xf]
        %v302 = vld [vmem:[%s1 + $0x9c] sm:$0xff]
        %v303 = vld [vmem:[%s1 + $0xa4] sm:$0xf]
        %v304 = vld [vmem:[%s1 + $0xa8] sm:$0xff]
        %v305 = vld [vmem:[%s1 + $0xb0] sm:$0xf]
        %v306 = vld [vmem:[%s1 + $0xb4] sm:$0xff]
        %v307 = vld [vmem:[%s1 + $0xbc] sm:$0xf]
        %v308 = vld [vmem:[%s2] sm:$0x1]
        %v310 = vperm.slane %v308, 0
        %v312 = vlaneseq
        %v313 = vand.u32 %v312, 127
        %v314 = vadd.s32 %v313, 128
        %v315 = vadd.s32 %v313, 256
        %vm316 = vcmp.lt.s32.totalorder %v313, 0
        %v317 = vsub.s32 0, %v313
        %v318 = vsel %vm316, %v317, %v313
        %v319 = vshrl.u32 %v318, 7
        %v320 = vand.u32 %v318, 127
        %v321 = vsub.s32 0, %v320
        %v322 = vsel %vm316, %v321, %v320
        %vm323 = vcmp.lt.s32.totalorder %v314, 0
        %v324 = vsub.s32 0, %v314
        %v325 = vsel %vm323, %v324, %v314
        %v326 = vshrl.u32 %v325, 7
        %v327 = vand.u32 %v325, 127
        %v328 = vsub.s32 0, %v327
        %v329 = vsel %vm323, %v328, %v327
        %vm330 = vcmp.lt.s32.totalorder %v315, 0
        %v331 = vsub.s32 0, %v315
        %v332 = vsel %vm330, %v331, %v315
        %v333 = vshrl.u32 %v332, 7
        %v334 = vand.u32 %v332, 127
        %v335 = vsub.s32 0, %v334
        %v336 = vsel %vm330, %v335, %v334
        %vm337 = vcmp.ne.s32.totalorder %v322, 0
        %vm338 = vcmp.ne.s32.totalorder %v329, 0
        %vm339 = vcmp.ne.s32.totalorder %v336, 0
        %vm340 = vcmp.lt.s32.totalorder %v322, 0
        %vm341 = vcmp.lt.s32.totalorder %v329, 0
        %vm342 = vcmp.lt.s32.totalorder %v336, 0
        %vm343 = vmand %vm340, %vm337
        %vm344 = vmand %vm341, %vm338
        %vm345 = vmand %vm342, %vm339
        %v346 = vadd.s32 %v322, 128
        %v347 = vadd.s32 %v329, 128
        %v348 = vadd.s32 %v336, 128
        %v349 = vsel %vm343, %v346, %v322
        %v350 = vsel %vm344, %v347, %v329
        %v351 = vsel %vm345, %v348, %v336
        %vm352 = vcmp.lt.s32.totalorder %v349, 64
        %vm353 = vcmp.lt.s32.totalorder %v350, 64
        %vm354 = vcmp.lt.s32.totalorder %v351, 64
        loop: start=0, step=1, limit=3
        $region64: #{_lambda_.9} parent=58 // loop_pre_header
          _
        $region65: #{_lambda_.9} parent=58 // loop_header
          %s356 = sphi 0, %s360
          %p357 = scmp.ge.s32.totalorder %s356, 3
          %v361 = vphi 0.0, %v653
          %v362 = vphi 0.0, %v654
        $region66: #{_lambda_.9} parent=58 // loop_header_branch
          %359 = sbr.rel (%p357) target = $region70
        $region67: #{_lambda_.9} parent=58 // loop_body
          %s363 = ssub.s32 2, %s356
          %s364 = smul.u32 %s356, 6
          %s365 = smul.addr %s364, 8
          %s366 = scalar_lea.vmem %s250, %s365 [#allocation3]
          %v367 = vld [vmem:[%s366] sm:$0xff]
          %v368 = vld [vmem:[%s366 + $0x8] sm:$0xff]
          %v369 = vld [vmem:[%s366 + $0x10] sm:$0xff]
          %v370 = vld [vmem:[%s366 + $0x18] sm:$0xff]
          %v371 = vld [vmem:[%s366 + $0x20] sm:$0xff]
          %v372 = vld [vmem:[%s366 + $0x28] sm:$0xff]
          %s373 = smul.u32 %s363, 6
          %s374 = smul.addr %s373, 8
          %s375 = scalar_lea.vmem %s250, %s374 [#allocation3]
          %v376 = vld [vmem:[%s375] sm:$0xff]
          %v377 = vld [vmem:[%s375 + $0x8] sm:$0xff]
          %v378 = vld [vmem:[%s375 + $0x10] sm:$0xff]
          %v379 = vld [vmem:[%s375 + $0x18] sm:$0xff]
          %v380 = vld [vmem:[%s375 + $0x20] sm:$0xff]
          %v381 = vld [vmem:[%s375 + $0x28] sm:$0xff]
          %v382 = vsel %vm352, %v367, %v376
          %v383 = vsel %vm353, %v368, %v377
          %v384 = vsel %vm354, %v369, %v378
          %v385 = vsel %vm352, %v370, %v379
          %v386 = vsel %vm353, %v371, %v380
          %v387 = vsel %vm354, %v372, %v381
          %v388 = vpack.c.bf16 %v362, %v361
          %v421 = vunpack.c.l.b16 %v276
          %v422 = vunpack.c.h.b16 %v276
          %v423 = vunpack.c.l.b16 %v277
          %v424 = vunpack.c.l.b16 %v278
          %v425 = vunpack.c.h.b16 %v278
          %v426 = vunpack.c.l.b16 %v279
          %v427 = vunpack.c.l.b16 %v280
          %v428 = vunpack.c.h.b16 %v280
          %v429 = vunpack.c.l.b16 %v281
          %v430 = vunpack.c.l.b16 %v282
          %v431 = vunpack.c.h.b16 %v282
          %v432 = vunpack.c.l.b16 %v283
          %v433 = vunpack.c.l.b16 %v284
          %v434 = vunpack.c.h.b16 %v284
          %v435 = vunpack.c.l.b16 %v285
          %v436 = vunpack.c.l.b16 %v286
          %v437 = vunpack.c.h.b16 %v286
          %v438 = vunpack.c.l.b16 %v287
          %v439 = vunpack.c.l.b16 %v288
          %v440 = vunpack.c.h.b16 %v288
          %v441 = vunpack.c.l.b16 %v289
          %v442 = vunpack.c.l.b16 %v290
          %v443 = vunpack.c.h.b16 %v290
          %v444 = vunpack.c.l.b16 %v291
          %v445 = vunpack.c.l.b16 %v292
          %v446 = vunpack.c.h.b16 %v292
          %v447 = vunpack.c.l.b16 %v293
          %v448 = vunpack.c.l.b16 %v294
          %v449 = vunpack.c.h.b16 %v294
          %v450 = vunpack.c.l.b16 %v295
          %v451 = vunpack.c.l.b16 %v296
          %v452 = vunpack.c.h.b16 %v296
          %v453 = vunpack.c.l.b16 %v297
          %v454 = vunpack.c.l.b16 %v298
          %v455 = vunpack.c.h.b16 %v298
          %v456 = vunpack.c.l.b16 %v299
          %v457 = vunpack.c.l.b16 %v300
          %v458 = vunpack.c.h.b16 %v300
          %v459 = vunpack.c.l.b16 %v301
          %v460 = vunpack.c.l.b16 %v302
          %v461 = vunpack.c.h.b16 %v302
          %v462 = vunpack.c.l.b16 %v303
          %v463 = vunpack.c.l.b16 %v304
          %v464 = vunpack.c.h.b16 %v304
          %v465 = vunpack.c.l.b16 %v305
          %v466 = vunpack.c.l.b16 %v306
          %v467 = vunpack.c.h.b16 %v306
          %v468 = vunpack.c.l.b16 %v307
          %v469 = vpack.c.b16 %v424, %v421
          %v470 = vpack.c.b16 %v425, %v422
          %v471 = vpack.c.b16 %v426, %v423
          %v472 = vpack.c.b16 %v430, %v427
          %v473 = vpack.c.b16 %v431, %v428
          %v474 = vpack.c.b16 %v432, %v429
          %v475 = vpack.c.b16 %v436, %v433
          %v476 = vpack.c.b16 %v437, %v434
          %v477 = vpack.c.b16 %v438, %v435
          %v478 = vpack.c.b16 %v442, %v439
          %v479 = vpack.c.b16 %v443, %v440
          %v480 = vpack.c.b16 %v444, %v441
          %v481 = vpack.c.b16 %v448, %v445
          %v482 = vpack.c.b16 %v449, %v446
          %v483 = vpack.c.b16 %v450, %v447
          %v484 = vpack.c.b16 %v454, %v451
          %v485 = vpack.c.b16 %v455, %v452
          %v486 = vpack.c.b16 %v456, %v453
          %v487 = vpack.c.b16 %v460, %v457
          %v488 = vpack.c.b16 %v461, %v458
          %v489 = vpack.c.b16 %v462, %v459
          %v490 = vpack.c.b16 %v466, %v463
          %v491 = vpack.c.b16 %v467, %v464
          %v492 = vpack.c.b16 %v468, %v465
          %517 = vmatpush.bf16.msra.mxu0 %v490
          %518 = vmatpush.bf16.msra.mxu0 %v487
          %519 = vmatpush.bf16.msra.mxu0 %v484
          %520 = vmatpush.bf16.msra.mxu0 %v481
          %521 = vmatpush.bf16.msra.mxu0 %v478
          %522 = vmatpush.bf16.msra.mxu0 %v475
          %523 = vmatpush.bf16.msra.mxu0 %v472
          %524 = vmatpush.bf16.msra.mxu0 %v469
          %525 = vmatmul.bf16.gmra.mxu0 %v388
          %v526 = vpop.f32.mrf.mxu0
          %v527 = vadd.f32 0.0, %v526
          %v528 = vpop.f32.mrf.mxu0
          %v529 = vadd.f32 0.0, %v528
          %530 = vdwg.mxu0
          %531 = vmatpush.bf16.msra.mxu0 %v491
          %532 = vmatpush.bf16.msra.mxu0 %v488
          %533 = vmatpush.bf16.msra.mxu0 %v485
          %534 = vmatpush.bf16.msra.mxu0 %v482
          %535 = vmatpush.bf16.msra.mxu0 %v479
          %536 = vmatpush.bf16.msra.mxu0 %v476
          %537 = vmatpush.bf16.msra.mxu0 %v473
          %538 = vmatpush.bf16.msra.mxu0 %v470
          %539 = vmatmul.bf16.gmra.mxu0 %v388
          %v540 = vpop.f32.mrf.mxu0
          %v541 = vadd.f32 0.0, %v540
          %v542 = vpop.f32.mrf.mxu0
          %v543 = vadd.f32 0.0, %v542
          %544 = vdwg.mxu0
          %545 = vmatpush.bf16.msra.mxu0 %v492
          %546 = vmatpush.bf16.msra.mxu0 %v489
          %547 = vmatpush.bf16.msra.mxu0 %v486
          %548 = vmatpush.bf16.msra.mxu0 %v483
          %549 = vmatpush.bf16.msra.mxu0 %v480
          %550 = vmatpush.bf16.msra.mxu0 %v477
          %551 = vmatpush.bf16.msra.mxu0 %v474
          %552 = vmatpush.bf16.msra.mxu0 %v471
          %553 = vmatmul.bf16.gmra.mxu0 %v388
          %v554 = vpop.f32.mrf.mxu0
          %v555 = vadd.f32 0.0, %v554
          %v556 = vpop.f32.mrf.mxu0
          %v557 = vadd.f32 0.0, %v556
          %558 = vdwg.mxu0
          %v559 = vadd.f32 %v382, %v527
          %v560 = vadd.f32 %v385, %v529
          %v561 = vxor.u32 %v559, 2147483648
          %v562 = vxor.u32 %v560, 2147483648
          %v563 = vmul.f32 %v561, 1.442695
          %v564 = vpow.pop %v563
          %v565 = vmul.f32 %v562, 1.442695
          %v566 = vpow.pop %v565
          %v567 = vadd.f32 %v564, 1.0
          %v568 = vadd.f32 %v566, 1.0
          %v569 = vrcp.pop %v567
          %v570 = vmul.f32 %v567, %v569
          %v571 = vsub.f32 1.0, %v570
          %v572 = vmul.f32 %v569, %v571
          %v573 = vadd.f32 %v569, %v572
          %vm574 = vweird.f32 %v567
          %vm575 = vweird.f32 %v569
          %vm576 = vmor %vm574, %vm575
          %v577 = vsel %vm576, %v569, %v573
          %v578 = vand.u32 2147483647, %v567
          %vm579 = vcmp.eq.f32.partialorder %v578, 8.507059e+37
          %v580 = vand.u32 %v567, 2147483648
          %v581 = vor.u32 1.1754944e-38, %v580
          %v582 = vsel %vm579, %v581, %v577
          %v583 = vmul.f32 1.0, %v582
          %v584 = vrcp.pop %v568
          %v585 = vmul.f32 %v568, %v584
          %v586 = vsub.f32 1.0, %v585
          %v587 = vmul.f32 %v584, %v586
          %v588 = vadd.f32 %v584, %v587
          %vm589 = vweird.f32 %v568
          %vm590 = vweird.f32 %v584
          %vm591 = vmor %vm589, %vm590
          %v592 = vsel %vm591, %v584, %v588
          %v593 = vand.u32 2147483647, %v568
          %vm594 = vcmp.eq.f32.partialorder %v593, 8.507059e+37
          %v595 = vand.u32 %v568, 2147483648
          %v596 = vor.u32 1.1754944e-38, %v595
          %v597 = vsel %vm594, %v596, %v592
          %v598 = vmul.f32 1.0, %v597
          %v599 = vadd.f32 %v383, %v541
          %v600 = vadd.f32 %v386, %v543
          %v601 = vxor.u32 %v599, 2147483648
          %v602 = vxor.u32 %v600, 2147483648
          %v603 = vmul.f32 %v601, 1.442695
          %v604 = vpow.pop %v603
          %v605 = vmul.f32 %v602, 1.442695
          %v606 = vpow.pop %v605
          %v607 = vadd.f32 %v604, 1.0
          %v608 = vadd.f32 %v606, 1.0
          %v609 = vrcp.pop %v607
          %v610 = vmul.f32 %v607, %v609
          %v611 = vsub.f32 1.0, %v610
          %v612 = vmul.f32 %v609, %v611
          %v613 = vadd.f32 %v609, %v612
          %vm614 = vweird.f32 %v607
          %vm615 = vweird.f32 %v609
          %vm616 = vmor %vm614, %vm615
          %v617 = vsel %vm616, %v609, %v613
          %v618 = vand.u32 2147483647, %v607
          %vm619 = vcmp.eq.f32.partialorder %v618, 8.507059e+37
          %v620 = vand.u32 %v607, 2147483648
          %v621 = vor.u32 1.1754944e-38, %v620
          %v622 = vsel %vm619, %v621, %v617
          %v623 = vmul.f32 1.0, %v622
          %v624 = vrcp.pop %v608
          %v625 = vmul.f32 %v608, %v624
          %v626 = vsub.f32 1.0, %v625
          %v627 = vmul.f32 %v624, %v626
          %v628 = vadd.f32 %v624, %v627
          %vm629 = vweird.f32 %v608
          %vm630 = vweird.f32 %v624
          %vm631 = vmor %vm629, %vm630
          %v632 = vsel %vm631, %v624, %v628
          %v633 = vand.u32 2147483647, %v608
          %vm634 = vcmp.eq.f32.partialorder %v633, 8.507059e+37
          %v635 = vand.u32 %v608, 2147483648
          %v636 = vor.u32 1.1754944e-38, %v635
          %v637 = vsel %vm634, %v636, %v632
          %v638 = vmul.f32 1.0, %v637
          %v639 = vadd.f32 %v555, %v310
          %v640 = vadd.f32 %v557, %v310
          %v641 = vmul.f32 %v583, %v639
          %v642 = vmul.f32 %v598, %v640
          %v643 = vadd.f32 %v384, %v641
          %v644 = vadd.f32 %v387, %v642
          %v645 = vtanh.pop %v643
          %v646 = vtanh.pop %v644
          %v647 = vsub.f32 1.0, %v623
          %v648 = vsub.f32 1.0, %v638
          %v649 = vmul.f32 %v647, %v645
          %v650 = vmul.f32 %v648, %v646
          %v651 = vmul.f32 %v623, %v361
          %v652 = vmul.f32 %v638, %v362
          %v653 = vadd.f32 %v649, %v651
          %v654 = vadd.f32 %v650, %v652
          %s655 = smul.u32 %s356, 16
          %s656 = scalar_lea.vmem [#allocation2], %s655
          %vm657 = vcmask 523264
          %658 = vst.msk [vmem:[%s656] sm:$0xff] %vm657, %v653
          %659 = vst.msk [vmem:[%s656 + $0x8] sm:$0xff] %vm657, %v654
          %s660 = smul.u32 %s363, 16
          %s661 = scalar_lea.vmem [#allocation2], %s660
          %vm662 = vcmask 1048064
          %663 = vst.msk [vmem:[%s661] sm:$0xff] %vm662, %v653
          %664 = vst.msk [vmem:[%s661 + $0x8] sm:$0xff] %vm662, %v654
        $region68: #{_lambda_.9} parent=58 // loop_footer
          %s360 = sadd.s32 1, %s356
        $region69: #{_lambda_.9} parent=58 // loop_footer_branch
          %355 = sbr.rel target = $region65
        $region70: #{_lambda_.9} parent=58 // loop_exit
          _
        %v665 = vld [vmem:[#allocation2] sm:$0xff]
        %v666 = vld [vmem:[#allocation2 + $0x8] sm:$0xff]
        %v667 = vld [vmem:[#allocation2 + $0x10] sm:$0xff]
        %v668 = vld [vmem:[#allocation2 + $0x18] sm:$0xff]
        %v669 = vld [vmem:[#allocation2 + $0x20] sm:$0xff]
        %v670 = vld [vmem:[#allocation2 + $0x28] sm:$0xff]
        %v671 = vpack.c.bf16 %v666, %v665
        %v672 = vpack.c.bf16 %v668, %v667
        %v673 = vpack.c.bf16 %v670, %v669
        %v674 = vld [vmem:[%s3] sm:$0xf]
        %v675 = vld [vmem:[%s3 + $0x4] sm:$0xf]
        %v676 = vld [vmem:[%s3 + $0x8] sm:$0xf]
        %v677 = vld [vmem:[%s3 + $0xc] sm:$0xf]
        %v678 = vld [vmem:[%s3 + $0x10] sm:$0xf]
        %v679 = vld [vmem:[%s3 + $0x14] sm:$0xf]
        %v680 = vld [vmem:[%s3 + $0x18] sm:$0xf]
        %v681 = vld [vmem:[%s3 + $0x1c] sm:$0xf]
        %v682 = vld [vmem:[%s3 + $0x20] sm:$0xf]
        %v683 = vld [vmem:[%s3 + $0x24] sm:$0xf]
        %v684 = vld [vmem:[%s3 + $0x28] sm:$0xf]
        %v685 = vld [vmem:[%s3 + $0x2c] sm:$0xf]
        %v686 = vld [vmem:[%s3 + $0x30] sm:$0xf]
        %v687 = vld [vmem:[%s3 + $0x34] sm:$0xf]
        %v688 = vld [vmem:[%s3 + $0x38] sm:$0xf]
        %v689 = vld [vmem:[%s3 + $0x3c] sm:$0xf]
        %v690 = vld [vmem:[%s4] sm:$0x1]
        %v692 = vperm.slane %v690, 0
        %v710 = vunpack.c.l.b16 %v674
        %v711 = vunpack.c.l.b16 %v675
        %v712 = vunpack.c.l.b16 %v676
        %v713 = vunpack.c.l.b16 %v677
        %v714 = vunpack.c.l.b16 %v678
        %v715 = vunpack.c.l.b16 %v679
        %v716 = vunpack.c.l.b16 %v680
        %v717 = vunpack.c.l.b16 %v681
        %v718 = vunpack.c.l.b16 %v682
        %v719 = vunpack.c.l.b16 %v683
        %v720 = vunpack.c.l.b16 %v684
        %v721 = vunpack.c.l.b16 %v685
        %v722 = vunpack.c.l.b16 %v686
        %v723 = vunpack.c.l.b16 %v687
        %v724 = vunpack.c.l.b16 %v688
        %v725 = vunpack.c.l.b16 %v689
        %v726 = vpack.c.b16 %v711, %v710
        %v727 = vpack.c.b16 %v713, %v712
        %v728 = vpack.c.b16 %v715, %v714
        %v729 = vpack.c.b16 %v717, %v716
        %v730 = vpack.c.b16 %v719, %v718
        %v731 = vpack.c.b16 %v721, %v720
        %v732 = vpack.c.b16 %v723, %v722
        %v733 = vpack.c.b16 %v725, %v724
        %742 = vmatpush.bf16.msra.mxu0 %v733
        %743 = vmatpush.bf16.msra.mxu0 %v732
        %744 = vmatpush.bf16.msra.mxu0 %v731
        %745 = vmatpush.bf16.msra.mxu0 %v730
        %746 = vmatpush.bf16.msra.mxu0 %v729
        %747 = vmatpush.bf16.msra.mxu0 %v728
        %748 = vmatpush.bf16.msra.mxu0 %v727
        %749 = vmatpush.bf16.msra.mxu0 %v726
        %750 = vmatmul.bf16.gmra.mxu0 %v671
        %v751 = vpop.f32.mrf.mxu0
        %v752 = vadd.f32 %v692, %v751
        %v753 = vpop.f32.mrf.mxu0
        %v754 = vadd.f32 %v692, %v753
        %755 = vmatmul.bf16.gmra.mxu0 %v672
        %v756 = vpop.f32.mrf.mxu0
        %v757 = vadd.f32 %v692, %v756
        %v758 = vpop.f32.mrf.mxu0
        %v759 = vadd.f32 %v692, %v758
        %760 = vmatmul.bf16.gmra.mxu0 %v673
        %v761 = vpop.f32.mrf.mxu0
        %v762 = vadd.f32 %v692, %v761
        %v763 = vpop.f32.mrf.mxu0
        %v764 = vadd.f32 %v692, %v763
        %765 = vdwg.mxu0
        %v766 = vpack.c.bf16 %v752, %v752
        %v767 = vpack.c.bf16 %v754, %v754
        %v768 = vpack.c.bf16 %v757, %v757
        %v769 = vpack.c.bf16 %v759, %v759
        %v770 = vpack.c.bf16 %v762, %v762
        %v771 = vpack.c.bf16 %v764, %v764
        %vm772 = vcmask 519168
        %773 = vst.msk [vmem:[%s273] sm:$0xf] %vm772, %v766
        %774 = vst.msk [vmem:[%s273 + $0x4] sm:$0xf] %vm772, %v767
        %775 = vst.msk [vmem:[%s273 + $0x8] sm:$0xf] %vm772, %v768
        %776 = vst.msk [vmem:[%s273 + $0xc] sm:$0xf] %vm772, %v769
        %777 = vst.msk [vmem:[%s273 + $0x10] sm:$0xf] %vm772, %v770
        %778 = vst.msk [vmem:[%s273 + $0x14] sm:$0xf] %vm772, %v771
        %s779 = sand.u32 %s134, 1
        %s780 = sand.u32 %s134, 1
        %s781 = smul.addr %s780, 24
        %s782 = scalar_lea.vmem [#allocation4], %s781
        // Predicated region
        $region71: #{_lambda_.9} parent=58 // pred_check
          %p783 = pneg %p144
        $region72: #{_lambda_.9} parent=58 // pred_check_branch
          %785 = sbr.rel (%p783) target = $region74
        $region73: #{_lambda_.9} parent=58 // pred_region
          %s786 = smul.u32 2, %s16
          %s787 = smul.addr %s786, 4
          %s788 = scalar_lea.vmem %s5, %s787
          // Predicated region
          $region75: #{_lambda_.9} parent=73 // pred_check
            _
          $region76: #{_lambda_.9} parent=73 // pred_check_branch
            %790 = sbr.rel (0) target = $region78
          $region77: #{_lambda_.9} parent=73 // pred_region
            // Predicated region
            $region79: #{_lambda_.9} parent=77 // pred_check
              _
            $region80: #{_lambda_.9} parent=77 // pred_check_branch
              %792 = sbr.rel target = $region82
            $region81: #{_lambda_.9} parent=77 // pred_region
              // Predicated region
              $region94: #{_lambda_.9} parent=81 // pred_check
                _
              $region95: #{_lambda_.9} parent=81 // pred_check_branch
                %818 = sbr.rel (0) target = $region97
              $region96: #{_lambda_.9} parent=81 // pred_region
                loop: start=0, step=1, limit=1
                $region98: #{_lambda_.9} parent=96 // loop_pre_header
                  _
                $region99: #{_lambda_.9} parent=96 // loop_header
                  %s820 = sphi 0, %s824
                  %p821 = scmp.ge.s32.totalorder %s820, 1
                  %s825 = sphi %s782, %s782
                  %s826 = sphi %s788, %s788
                $region100: #{_lambda_.9} parent=96 // loop_header_branch
                  %823 = sbr.rel (%p821) target = $region104
                $region101: #{_lambda_.9} parent=96 // loop_body
                  _
                $region102: #{_lambda_.9} parent=96 // loop_footer
                  %s824 = sadd.s32 1, %s820
                $region103: #{_lambda_.9} parent=96 // loop_footer_branch
                  %819 = sbr.rel target = $region99
                $region104: #{_lambda_.9} parent=96 // loop_exit
                  _
                %s828 = ssub.s32 16, 1
                loop: start=0, step=1, limit=1
                $region105: #{_lambda_.9} parent=96 // loop_pre_header
                  _
                $region106: #{_lambda_.9} parent=96 // loop_header
                  %s830 = sphi 0, %s834
                  %p831 = scmp.ge.s32.totalorder %s830, 1
                  %s835 = sphi %s782, %s782
                  %s836 = sphi %s788, %s788
                $region107: #{_lambda_.9} parent=96 // loop_header_branch
                  %833 = sbr.rel (%p831) target = $region111
                $region108: #{_lambda_.9} parent=96 // loop_body
                  %v837 = vld [vmem:[%s835] sm:%s828]
                  %838 = vst [vmem:[%s836] sm:%s828] %v837
                  %v839 = vld [vmem:[%s835 + $0x4] sm:%s828]
                  %840 = vst [vmem:[%s836 + $0x4] sm:%s828] %v839
                  %v841 = vld [vmem:[%s835 + $0x8] sm:%s828]
                  %842 = vst [vmem:[%s836 + $0x10] sm:%s828] %v841
                  %v843 = vld [vmem:[%s835 + $0xc] sm:%s828]
                  %844 = vst [vmem:[%s836 + $0x14] sm:%s828] %v843
                  %v845 = vld [vmem:[%s835 + $0x10] sm:%s828]
                  %846 = vst [vmem:[%s836 + $0x20] sm:%s828] %v845
                  %v847 = vld [vmem:[%s835 + $0x14] sm:%s828]
                  %848 = vst [vmem:[%s836 + $0x24] sm:%s828] %v847
                $region109: #{_lambda_.9} parent=96 // loop_footer
                  %s834 = sadd.s32 1, %s830
                $region110: #{_lambda_.9} parent=96 // loop_footer_branch
                  %829 = sbr.rel target = $region106
                $region111: #{_lambda_.9} parent=96 // loop_exit
                  _
              $region97: #{_lambda_.9} parent=81 // pred_fallthru
                _
            $region82: #{_lambda_.9} parent=77 // pred_fallthru
              _
            // Predicated region
            $region83: #{_lambda_.9} parent=77 // pred_check
              _
            $region84: #{_lambda_.9} parent=77 // pred_check_branch
              %794 = sbr.rel (0) target = $region86
            $region85: #{_lambda_.9} parent=77 // pred_region
              %s796 = ssub.s32 16, 1
              loop: start=0, step=1, limit=1
              $region87: #{_lambda_.9} parent=85 // loop_pre_header
                _
              $region88: #{_lambda_.9} parent=85 // loop_header
                %s798 = sphi 0, %s802
                %p799 = scmp.ge.s32.totalorder %s798, 1
                %s803 = sphi %s782, %s782
                %s804 = sphi %s788, %s788
              $region89: #{_lambda_.9} parent=85 // loop_header_branch
                %801 = sbr.rel (%p799) target = $region93
              $region90: #{_lambda_.9} parent=85 // loop_body
                %v805 = vld [vmem:[%s803] sm:%s796]
                %806 = vst [vmem:[%s804] sm:%s796] %v805
                %v807 = vld [vmem:[%s803 + $0x4] sm:%s796]
                %808 = vst [vmem:[%s804 + $0x4] sm:%s796] %v807
                %v809 = vld [vmem:[%s803 + $0x8] sm:%s796]
                %810 = vst [vmem:[%s804 + $0x10] sm:%s796] %v809
                %v811 = vld [vmem:[%s803 + $0xc] sm:%s796]
                %812 = vst [vmem:[%s804 + $0x14] sm:%s796] %v811
                %v813 = vld [vmem:[%s803 + $0x10] sm:%s796]
                %814 = vst [vmem:[%s804 + $0x20] sm:%s796] %v813
                %v815 = vld [vmem:[%s803 + $0x14] sm:%s796]
                %816 = vst [vmem:[%s804 + $0x24] sm:%s796] %v815
              $region91: #{_lambda_.9} parent=85 // loop_footer
                %s802 = sadd.s32 1, %s798
              $region92: #{_lambda_.9} parent=85 // loop_footer_branch
                %797 = sbr.rel target = $region88
              $region93: #{_lambda_.9} parent=85 // loop_exit
                _
            $region86: #{_lambda_.9} parent=77 // pred_fallthru
              _
          $region78: #{_lambda_.9} parent=73 // pred_fallthru
            _
          %849 = vnop
        $region74: #{_lambda_.9} parent=58 // pred_fallthru
          _
      $region59: #{_lambda_.9} parent=5 // pred_fallthru
        _
      %p850 = scmp.le.s32.totalorder 2, %s11
      // Predicated region
      $region112: #{_lambda_.9} parent=5 // pred_check
        %p851 = pneg %p850
      $region113: #{_lambda_.9} parent=5 // pred_check_branch
        %853 = sbr.rel (%p851) target = $region115
      $region114: #{_lambda_.9} parent=5 // pred_region
        %s854 = ssub.s32 %s11, 2
        // Predicated region
        $region116: #{_lambda_.9} parent=114 // pred_check
          %p855 = pneg %p150
        $region117: #{_lambda_.9} parent=114 // pred_check_branch
          %857 = sbr.rel (%p855) target = $region119
        $region118: #{_lambda_.9} parent=114 // pred_region
          %s858 = sand.u32 %s135, 1
          %s859 = sand.u32 %s135, 1
          %s860 = smul.addr %s859, 24
          %s861 = scalar_lea.vmem [#allocation4], %s860
        $region119: #{_lambda_.9} parent=114 // pred_fallthru
          _
      $region115: #{_lambda_.9} parent=5 // pred_fallthru
        _
    $region6: #{_lambda_.9} parent=1 // loop_footer
      %s15 = sadd.s32 1, %s11
    $region7: #{_lambda_.9} parent=1 // loop_footer_branch
      %10 = sbr.rel target = $region3
    $region8: #{_lambda_.9} parent=1 // loop_exit
      _

// kernel: _lambda_.10
$region0: #{_lambda_.10}
  #allocation0 [shape = 'u32[]', space=smem, size = 0x4, offset = 0x4, fixed_abs, tag = 'smem constant byte address 0x4 - core index']
  #allocation1 [shape = 'u32[72,128]{1,0:T(1,128)}', space=vmem, size = 0x9000, scoped, tag = 'internal scratch']
  %s0 = inlined_call_operand.vmem [shape: bf16[208,960], index: 0, kind: input, shape index: {}]
  %s1 = inlined_call_operand.vmem [shape: bf16[960,128], index: 1, kind: input, shape index: {}]
  %s2 = inlined_call_operand.vmem [shape: f32[1,128], index: 2, kind: input, shape index: {}]
  %s3 = inlined_call_operand.vmem [shape: bf16[208,128], index: 3, kind: output, shape index: {}]
  %s4 = sld [smem:[#allocation0]]
  $region22: #{_lambda_.10} parent=0
    _
  %s6 = ssub.s32 1, %s4
  %s7 = scalar_select 0, %s6, %s4
  // Predicated region
  $region2: #{_lambda_.10} parent=0 // pred_check
    _
  $region3: #{_lambda_.10} parent=0 // pred_check_branch
    %9 = sbr.rel (0) target = $region5
  $region4: #{_lambda_.10} parent=0 // pred_region
    _
  $region5: #{_lambda_.10} parent=0 // pred_fallthru
    _
  // Predicated region
  $region6: #{_lambda_.10} parent=0 // pred_check
    _
  $region7: #{_lambda_.10} parent=0 // pred_check_branch
    %11 = sbr.rel (0) target = $region9
  $region8: #{_lambda_.10} parent=0 // pred_region
    _
  $region9: #{_lambda_.10} parent=0 // pred_fallthru
    _
  // Predicated region
  $region10: #{_lambda_.10} parent=0 // pred_check
    _
  $region11: #{_lambda_.10} parent=0 // pred_check_branch
    %13 = sbr.rel (0) target = $region13
  $region12: #{_lambda_.10} parent=0 // pred_region
    _
  $region13: #{_lambda_.10} parent=0 // pred_fallthru
    _
  %v15 = vld [vmem:[%s0] sm:$0xff]
  %v16 = vld [vmem:[%s0 + $0x8] sm:$0xff]
  %v17 = vld [vmem:[%s0 + $0x10] sm:$0xff]
  %v18 = vld [vmem:[%s0 + $0x18] sm:$0xff]
  %v19 = vld [vmem:[%s0 + $0x20] sm:$0xff]
  %v20 = vld [vmem:[%s0 + $0x28] sm:$0xff]
  %v21 = vld [vmem:[%s0 + $0x30] sm:$0xff]
  %v22 = vld [vmem:[%s0 + $0x38] sm:$0xff]
  %v23 = vld [vmem:[%s0 + $0x40] sm:$0xff]
  %v24 = vld [vmem:[%s0 + $0x48] sm:$0xff]
  %v25 = vld [vmem:[%s0 + $0x50] sm:$0xff]
  %v26 = vld [vmem:[%s0 + $0x58] sm:$0xff]
  %v27 = vld [vmem:[%s0 + $0x60] sm:$0xff]
  %v28 = vld [vmem:[%s0 + $0x68] sm:$0xff]
  %v29 = vld [vmem:[%s0 + $0x70] sm:$0xff]
  %v30 = vld [vmem:[%s0 + $0x78] sm:$0xff]
  %v31 = vld [vmem:[%s0 + $0x80] sm:$0xff]
  %v32 = vld [vmem:[%s0 + $0x88] sm:$0xff]
  %v33 = vld [vmem:[%s0 + $0x90] sm:$0xff]
  %v34 = vld [vmem:[%s0 + $0x98] sm:$0xff]
  %v35 = vld [vmem:[%s0 + $0xa0] sm:$0xff]
  %v36 = vld [vmem:[%s0 + $0xa8] sm:$0xff]
  %v37 = vld [vmem:[%s0 + $0xb0] sm:$0xff]
  %v38 = vld [vmem:[%s0 + $0xb8] sm:$0xff]
  %v39 = vld [vmem:[%s0 + $0xc0] sm:$0xff]
  %v40 = vld [vmem:[%s0 + $0xc8] sm:$0xff]
  %v41 = vld [vmem:[%s0 + $0xd0] sm:$0xff]
  %v42 = vld [vmem:[%s0 + $0xd8] sm:$0xff]
  %v43 = vld [vmem:[%s0 + $0xe0] sm:$0xff]
  %v44 = vld [vmem:[%s0 + $0xe8] sm:$0xff]
  %v45 = vld [vmem:[%s0 + $0xf0] sm:$0xff]
  %v46 = vld [vmem:[%s0 + $0xf8] sm:$0xff]
  %v47 = vld [vmem:[%s0 + $0x100] sm:$0xff]
  %v48 = vld [vmem:[%s0 + $0x108] sm:$0xff]
  %v49 = vld [vmem:[%s0 + $0x110] sm:$0xff]
  %v50 = vld [vmem:[%s0 + $0x118] sm:$0xff]
  %v51 = vld [vmem:[%s0 + $0x120] sm:$0xff]
  %v52 = vld [vmem:[%s0 + $0x128] sm:$0xff]
  %v53 = vld [vmem:[%s0 + $0x130] sm:$0xff]
  %v54 = vld [vmem:[%s0 + $0x138] sm:$0xff]
  %v55 = vld [vmem:[%s0 + $0x140] sm:$0xff]
  %v56 = vld [vmem:[%s0 + $0x148] sm:$0xff]
  %v57 = vld [vmem:[%s0 + $0x150] sm:$0xff]
  %v58 = vld [vmem:[%s0 + $0x158] sm:$0xff]
  %v59 = vld [vmem:[%s0 + $0x160] sm:$0xff]
  %v60 = vld [vmem:[%s0 + $0x168] sm:$0xff]
  %v61 = vld [vmem:[%s0 + $0x170] sm:$0xff]
  %v62 = vld [vmem:[%s0 + $0x178] sm:$0xff]
  %v63 = vld [vmem:[%s0 + $0x180] sm:$0xff]
  %v64 = vld [vmem:[%s0 + $0x188] sm:$0xff]
  %v65 = vld [vmem:[%s0 + $0x190] sm:$0xff]
  %v66 = vld [vmem:[%s0 + $0x198] sm:$0xff]
  %v67 = vld [vmem:[%s0 + $0x1a0] sm:$0xff]
  %v68 = vld [vmem:[%s0 + $0x1a8] sm:$0xff]
  %v69 = vld [vmem:[%s0 + $0x1b0] sm:$0xff]
  %v70 = vld [vmem:[%s0 + $0x1b8] sm:$0xff]
  %v71 = vld [vmem:[%s0 + $0x1c0] sm:$0xff]
  %v72 = vld [vmem:[%s0 + $0x1c8] sm:$0xff]
  %v73 = vld [vmem:[%s0 + $0x1d0] sm:$0xff]
  %v74 = vld [vmem:[%s0 + $0x1d8] sm:$0xff]
  %v75 = vld [vmem:[%s0 + $0x1e0] sm:$0xff]
  %v76 = vld [vmem:[%s0 + $0x1e8] sm:$0xff]
  %v77 = vld [vmem:[%s0 + $0x1f0] sm:$0xff]
  %v78 = vld [vmem:[%s0 + $0x1f8] sm:$0xff]
  %v79 = vld [vmem:[%s0 + $0x200] sm:$0xff]
  %v80 = vld [vmem:[%s0 + $0x208] sm:$0xff]
  %v81 = vld [vmem:[%s0 + $0x210] sm:$0xff]
  %v82 = vld [vmem:[%s0 + $0x218] sm:$0xff]
  %v83 = vld [vmem:[%s0 + $0x220] sm:$0xff]
  %v84 = vld [vmem:[%s0 + $0x228] sm:$0xff]
  %v85 = vld [vmem:[%s0 + $0x230] sm:$0xff]
  %v86 = vld [vmem:[%s0 + $0x238] sm:$0xff]
  %v87 = vld [vmem:[%s0 + $0x240] sm:$0xff]
  %v88 = vld [vmem:[%s0 + $0x248] sm:$0xff]
  %v89 = vld [vmem:[%s0 + $0x250] sm:$0xff]
  %v90 = vld [vmem:[%s0 + $0x258] sm:$0xff]
  %v91 = vld [vmem:[%s0 + $0x260] sm:$0xff]
  %v92 = vld [vmem:[%s0 + $0x268] sm:$0xff]
  %v93 = vld [vmem:[%s0 + $0x270] sm:$0xff]
  %v94 = vld [vmem:[%s0 + $0x278] sm:$0xff]
  %v95 = vld [vmem:[%s0 + $0x280] sm:$0xff]
  %v96 = vld [vmem:[%s0 + $0x288] sm:$0xff]
  %v97 = vld [vmem:[%s0 + $0x290] sm:$0xff]
  %v98 = vld [vmem:[%s0 + $0x298] sm:$0xff]
  %v99 = vld [vmem:[%s0 + $0x2a0] sm:$0xff]
  %v100 = vld [vmem:[%s0 + $0x2a8] sm:$0xff]
  %v101 = vld [vmem:[%s0 + $0x2b0] sm:$0xff]
  %v102 = vld [vmem:[%s0 + $0x2b8] sm:$0xff]
  %v103 = vld [vmem:[%s0 + $0x2c0] sm:$0xff]
  %v104 = vld [vmem:[%s0 + $0x2c8] sm:$0xff]
  %v105 = vld [vmem:[%s0 + $0x2d0] sm:$0xff]
  %v106 = vld [vmem:[%s0 + $0x2d8] sm:$0xff]
  %v107 = vld [vmem:[%s0 + $0x2e0] sm:$0xff]
  %v108 = vld [vmem:[%s0 + $0x2e8] sm:$0xff]
  %v109 = vld [vmem:[%s0 + $0x2f0] sm:$0xff]
  %v110 = vld [vmem:[%s0 + $0x2f8] sm:$0xff]
  %v111 = vld [vmem:[%s0 + $0x300] sm:$0xff]
  %v112 = vld [vmem:[%s0 + $0x308] sm:$0xff]
  %v113 = vld [vmem:[%s0 + $0x310] sm:$0xff]
  %v114 = vld [vmem:[%s0 + $0x318] sm:$0xff]
  %v115 = vld [vmem:[%s0 + $0x320] sm:$0xff]
  %v116 = vld [vmem:[%s0 + $0x328] sm:$0xff]
  %v117 = vld [vmem:[%s0 + $0x330] sm:$0xff]
  %v118 = vld [vmem:[%s0 + $0x338] sm:$0xff]
  %v119 = vld [vmem:[%s1] sm:$0xf]
  %v120 = vld [vmem:[%s1 + $0x4] sm:$0xf]
  %v121 = vld [vmem:[%s1 + $0x8] sm:$0xf]
  %v122 = vld [vmem:[%s1 + $0xc] sm:$0xf]
  %v123 = vld [vmem:[%s1 + $0x10] sm:$0xf]
  %v124 = vld [vmem:[%s1 + $0x14] sm:$0xf]
  %v125 = vld [vmem:[%s1 + $0x18] sm:$0xf]
  %v126 = vld [vmem:[%s1 + $0x1c] sm:$0xf]
  %v127 = vld [vmem:[%s1 + $0x20] sm:$0xf]
  %v128 = vld [vmem:[%s1 + $0x24] sm:$0xf]
  %v129 = vld [vmem:[%s1 + $0x28] sm:$0xf]
  %v130 = vld [vmem:[%s1 + $0x2c] sm:$0xf]
  %v131 = vld [vmem:[%s1 + $0x30] sm:$0xf]
  %v132 = vld [vmem:[%s1 + $0x34] sm:$0xf]
  %v133 = vld [vmem:[%s1 + $0x38] sm:$0xf]
  %v134 = vld [vmem:[%s1 + $0x3c] sm:$0xf]
  %v135 = vld [vmem:[%s1 + $0x40] sm:$0xf]
  %v136 = vld [vmem:[%s1 + $0x44] sm:$0xf]
  %v137 = vld [vmem:[%s1 + $0x48] sm:$0xf]
  %v138 = vld [vmem:[%s1 + $0x4c] sm:$0xf]
  %v139 = vld [vmem:[%s1 + $0x50] sm:$0xf]
  %v140 = vld [vmem:[%s1 + $0x54] sm:$0xf]
  %v141 = vld [vmem:[%s1 + $0x58] sm:$0xf]
  %v142 = vld [vmem:[%s1 + $0x5c] sm:$0xf]
  %v143 = vld [vmem:[%s1 + $0x60] sm:$0xf]
  %v144 = vld [vmem:[%s1 + $0x64] sm:$0xf]
  %v145 = vld [vmem:[%s1 + $0x68] sm:$0xf]
  %v146 = vld [vmem:[%s1 + $0x6c] sm:$0xf]
  %v147 = vld [vmem:[%s1 + $0x70] sm:$0xf]
  %v148 = vld [vmem:[%s1 + $0x74] sm:$0xf]
  %v149 = vld [vmem:[%s1 + $0x78] sm:$0xf]
  %v150 = vld [vmem:[%s1 + $0x7c] sm:$0xf]
  %v151 = vld [vmem:[%s1 + $0x80] sm:$0xf]
  %v152 = vld [vmem:[%s1 + $0x84] sm:$0xf]
  %v153 = vld [vmem:[%s1 + $0x88] sm:$0xf]
  %v154 = vld [vmem:[%s1 + $0x8c] sm:$0xf]
  %v155 = vld [vmem:[%s1 + $0x90] sm:$0xf]
  %v156 = vld [vmem:[%s1 + $0x94] sm:$0xf]
  %v157 = vld [vmem:[%s1 + $0x98] sm:$0xf]
  %v158 = vld [vmem:[%s1 + $0x9c] sm:$0xf]
  %v159 = vld [vmem:[%s1 + $0xa0] sm:$0xf]
  %v160 = vld [vmem:[%s1 + $0xa4] sm:$0xf]
  %v161 = vld [vmem:[%s1 + $0xa8] sm:$0xf]
  %v162 = vld [vmem:[%s1 + $0xac] sm:$0xf]
  %v163 = vld [vmem:[%s1 + $0xb0] sm:$0xf]
  %v164 = vld [vmem:[%s1 + $0xb4] sm:$0xf]
  %v165 = vld [vmem:[%s1 + $0xb8] sm:$0xf]
  %v166 = vld [vmem:[%s1 + $0xbc] sm:$0xf]
  %v167 = vld [vmem:[%s1 + $0xc0] sm:$0xf]
  %v168 = vld [vmem:[%s1 + $0xc4] sm:$0xf]
  %v169 = vld [vmem:[%s1 + $0xc8] sm:$0xf]
  %v170 = vld [vmem:[%s1 + $0xcc] sm:$0xf]
  %v171 = vld [vmem:[%s1 + $0xd0] sm:$0xf]
  %v172 = vld [vmem:[%s1 + $0xd4] sm:$0xf]
  %v173 = vld [vmem:[%s1 + $0xd8] sm:$0xf]
  %v174 = vld [vmem:[%s1 + $0xdc] sm:$0xf]
  %v175 = vld [vmem:[%s1 + $0xe0] sm:$0xf]
  %v176 = vld [vmem:[%s1 + $0xe4] sm:$0xf]
  %v177 = vld [vmem:[%s1 + $0xe8] sm:$0xf]
  %v178 = vld [vmem:[%s1 + $0xec] sm:$0xf]
  %v179 = vld [vmem:[%s1 + $0xf0] sm:$0xf]
  %v180 = vld [vmem:[%s1 + $0xf4] sm:$0xf]
  %v181 = vld [vmem:[%s1 + $0xf8] sm:$0xf]
  %v182 = vld [vmem:[%s1 + $0xfc] sm:$0xf]
  %v183 = vld [vmem:[%s1 + $0x100] sm:$0xf]
  %v184 = vld [vmem:[%s1 + $0x104] sm:$0xf]
  %v185 = vld [vmem:[%s1 + $0x108] sm:$0xf]
  %v186 = vld [vmem:[%s1 + $0x10c] sm:$0xf]
  %v187 = vld [vmem:[%s1 + $0x110] sm:$0xf]
  %v188 = vld [vmem:[%s1 + $0x114] sm:$0xf]
  %v189 = vld [vmem:[%s1 + $0x118] sm:$0xf]
  %v190 = vld [vmem:[%s1 + $0x11c] sm:$0xf]
  %v191 = vld [vmem:[%s1 + $0x120] sm:$0xf]
  %v192 = vld [vmem:[%s1 + $0x124] sm:$0xf]
  %v193 = vld [vmem:[%s1 + $0x128] sm:$0xf]
  %v194 = vld [vmem:[%s1 + $0x12c] sm:$0xf]
  %v195 = vld [vmem:[%s1 + $0x130] sm:$0xf]
  %v196 = vld [vmem:[%s1 + $0x134] sm:$0xf]
  %v197 = vld [vmem:[%s1 + $0x138] sm:$0xf]
  %v198 = vld [vmem:[%s1 + $0x13c] sm:$0xf]
  %v199 = vld [vmem:[%s1 + $0x140] sm:$0xf]
  %v200 = vld [vmem:[%s1 + $0x144] sm:$0xf]
  %v201 = vld [vmem:[%s1 + $0x148] sm:$0xf]
  %v202 = vld [vmem:[%s1 + $0x14c] sm:$0xf]
  %v203 = vld [vmem:[%s1 + $0x150] sm:$0xf]
  %v204 = vld [vmem:[%s1 + $0x154] sm:$0xf]
  %v205 = vld [vmem:[%s1 + $0x158] sm:$0xf]
  %v206 = vld [vmem:[%s1 + $0x15c] sm:$0xf]
  %v207 = vld [vmem:[%s1 + $0x160] sm:$0xf]
  %v208 = vld [vmem:[%s1 + $0x164] sm:$0xf]
  %v209 = vld [vmem:[%s1 + $0x168] sm:$0xf]
  %v210 = vld [vmem:[%s1 + $0x16c] sm:$0xf]
  %v211 = vld [vmem:[%s1 + $0x170] sm:$0xf]
  %v212 = vld [vmem:[%s1 + $0x174] sm:$0xf]
  %v213 = vld [vmem:[%s1 + $0x178] sm:$0xf]
  %v214 = vld [vmem:[%s1 + $0x17c] sm:$0xf]
  %v215 = vld [vmem:[%s1 + $0x180] sm:$0xf]
  %v216 = vld [vmem:[%s1 + $0x184] sm:$0xf]
  %v217 = vld [vmem:[%s1 + $0x188] sm:$0xf]
  %v218 = vld [vmem:[%s1 + $0x18c] sm:$0xf]
  %v219 = vld [vmem:[%s1 + $0x190] sm:$0xf]
  %v220 = vld [vmem:[%s1 + $0x194] sm:$0xf]
  %v221 = vld [vmem:[%s1 + $0x198] sm:$0xf]
  %v222 = vld [vmem:[%s1 + $0x19c] sm:$0xf]
  %v223 = vld [vmem:[%s1 + $0x1a0] sm:$0xf]
  %v224 = vld [vmem:[%s1 + $0x1a4] sm:$0xf]
  %v225 = vld [vmem:[%s1 + $0x1a8] sm:$0xf]
  %v226 = vld [vmem:[%s1 + $0x1ac] sm:$0xf]
  %v227 = vld [vmem:[%s1 + $0x1b0] sm:$0xf]
  %v228 = vld [vmem:[%s1 + $0x1b4] sm:$0xf]
  %v229 = vld [vmem:[%s1 + $0x1b8] sm:$0xf]
  %v230 = vld [vmem:[%s1 + $0x1bc] sm:$0xf]
  %v231 = vld [vmem:[%s1 + $0x1c0] sm:$0xf]
  %v232 = vld [vmem:[%s1 + $0x1c4] sm:$0xf]
  %v233 = vld [vmem:[%s1 + $0x1c8] sm:$0xf]
  %v234 = vld [vmem:[%s1 + $0x1cc] sm:$0xf]
  %v235 = vld [vmem:[%s1 + $0x1d0] sm:$0xf]
  %v236 = vld [vmem:[%s1 + $0x1d4] sm:$0xf]
  %v237 = vld [vmem:[%s1 + $0x1d8] sm:$0xf]
  %v238 = vld [vmem:[%s1 + $0x1dc] sm:$0xf]
  %v239 = vld [vmem:[%s2] sm:$0x1]
  %v241 = vperm.slane %v239, 0
  %v347 = vunpack.c.l.b16 %v15
  %v348 = vunpack.c.h.b16 %v15
  %v349 = vunpack.c.l.b16 %v16
  %v350 = vunpack.c.h.b16 %v16
  %v351 = vunpack.c.l.b16 %v17
  %v352 = vunpack.c.h.b16 %v17
  %v353 = vunpack.c.l.b16 %v18
  %v354 = vunpack.c.h.b16 %v18
  %v355 = vunpack.c.l.b16 %v19
  %v356 = vunpack.c.h.b16 %v19
  %v357 = vunpack.c.l.b16 %v20
  %v358 = vunpack.c.h.b16 %v20
  %v359 = vunpack.c.l.b16 %v21
  %v360 = vunpack.c.h.b16 %v21
  %v361 = vunpack.c.l.b16 %v22
  %v362 = vunpack.c.h.b16 %v22
  %v363 = vunpack.c.l.b16 %v23
  %v364 = vunpack.c.h.b16 %v23
  %v365 = vunpack.c.l.b16 %v24
  %v366 = vunpack.c.h.b16 %v24
  %v367 = vunpack.c.l.b16 %v25
  %v368 = vunpack.c.h.b16 %v25
  %v369 = vunpack.c.l.b16 %v26
  %v370 = vunpack.c.h.b16 %v26
  %v371 = vunpack.c.l.b16 %v27
  %v372 = vunpack.c.h.b16 %v27
  %v373 = vunpack.c.l.b16 %v28
  %v374 = vunpack.c.h.b16 %v28
  %v375 = vunpack.c.l.b16 %v29
  %v376 = vunpack.c.h.b16 %v29
  %v377 = vunpack.c.l.b16 %v30
  %v378 = vunpack.c.h.b16 %v30
  %v379 = vunpack.c.l.b16 %v31
  %v380 = vunpack.c.h.b16 %v31
  %v381 = vunpack.c.l.b16 %v32
  %v382 = vunpack.c.h.b16 %v32
  %v383 = vunpack.c.l.b16 %v33
  %v384 = vunpack.c.h.b16 %v33
  %v385 = vunpack.c.l.b16 %v34
  %v386 = vunpack.c.h.b16 %v34
  %v387 = vunpack.c.l.b16 %v35
  %v388 = vunpack.c.h.b16 %v35
  %v389 = vunpack.c.l.b16 %v36
  %v390 = vunpack.c.h.b16 %v36
  %v391 = vunpack.c.l.b16 %v37
  %v392 = vunpack.c.h.b16 %v37
  %v393 = vunpack.c.l.b16 %v38
  %v394 = vunpack.c.h.b16 %v38
  %v395 = vunpack.c.l.b16 %v39
  %v396 = vunpack.c.h.b16 %v39
  %v397 = vunpack.c.l.b16 %v40
  %v398 = vunpack.c.h.b16 %v40
  %v399 = vunpack.c.l.b16 %v41
  %v400 = vunpack.c.h.b16 %v41
  %v401 = vunpack.c.l.b16 %v42
  %v402 = vunpack.c.h.b16 %v42
  %v403 = vunpack.c.l.b16 %v43
  %v404 = vunpack.c.h.b16 %v43
  %v405 = vunpack.c.l.b16 %v44
  %v406 = vunpack.c.h.b16 %v44
  %v407 = vunpack.c.l.b16 %v45
  %v408 = vunpack.c.h.b16 %v45
  %v409 = vunpack.c.l.b16 %v46
  %v410 = vunpack.c.h.b16 %v46
  %v411 = vunpack.c.l.b16 %v47
  %v412 = vunpack.c.h.b16 %v47
  %v413 = vunpack.c.l.b16 %v48
  %v414 = vunpack.c.h.b16 %v48
  %v415 = vunpack.c.l.b16 %v49
  %v416 = vunpack.c.h.b16 %v49
  %v417 = vunpack.c.l.b16 %v50
  %v418 = vunpack.c.h.b16 %v50
  %v419 = vunpack.c.l.b16 %v51
  %v420 = vunpack.c.h.b16 %v51
  %v421 = vunpack.c.l.b16 %v52
  %v422 = vunpack.c.h.b16 %v52
  %v423 = vunpack.c.l.b16 %v53
  %v424 = vunpack.c.h.b16 %v53
  %v425 = vunpack.c.l.b16 %v54
  %v426 = vunpack.c.h.b16 %v54
  %v427 = vunpack.c.l.b16 %v55
  %v428 = vunpack.c.h.b16 %v55
  %v429 = vunpack.c.l.b16 %v56
  %v430 = vunpack.c.h.b16 %v56
  %v431 = vunpack.c.l.b16 %v57
  %v432 = vunpack.c.h.b16 %v57
  %v433 = vunpack.c.l.b16 %v58
  %v434 = vunpack.c.h.b16 %v58
  %v435 = vunpack.c.l.b16 %v59
  %v436 = vunpack.c.h.b16 %v59
  %v437 = vunpack.c.l.b16 %v60
  %v438 = vunpack.c.h.b16 %v60
  %v439 = vunpack.c.l.b16 %v61
  %v440 = vunpack.c.h.b16 %v61
  %v441 = vunpack.c.l.b16 %v62
  %v442 = vunpack.c.h.b16 %v62
  %v443 = vunpack.c.l.b16 %v63
  %v444 = vunpack.c.h.b16 %v63
  %v445 = vunpack.c.l.b16 %v64
  %v446 = vunpack.c.h.b16 %v64
  %v447 = vunpack.c.l.b16 %v65
  %v448 = vunpack.c.h.b16 %v65
  %v449 = vunpack.c.l.b16 %v66
  %v450 = vunpack.c.h.b16 %v66
  %v451 = vunpack.c.l.b16 %v67
  %v452 = vunpack.c.h.b16 %v67
  %v453 = vunpack.c.l.b16 %v68
  %v454 = vunpack.c.h.b16 %v68
  %v455 = vunpack.c.l.b16 %v69
  %v456 = vunpack.c.h.b16 %v69
  %v457 = vunpack.c.l.b16 %v70
  %v458 = vunpack.c.h.b16 %v70
  %v459 = vunpack.c.l.b16 %v71
  %v460 = vunpack.c.h.b16 %v71
  %v461 = vunpack.c.l.b16 %v72
  %v462 = vunpack.c.h.b16 %v72
  %v463 = vunpack.c.l.b16 %v73
  %v464 = vunpack.c.h.b16 %v73
  %v465 = vunpack.c.l.b16 %v74
  %v466 = vunpack.c.h.b16 %v74
  %v467 = vunpack.c.l.b16 %v75
  %v468 = vunpack.c.h.b16 %v75
  %v469 = vunpack.c.l.b16 %v76
  %v470 = vunpack.c.h.b16 %v76
  %v471 = vunpack.c.l.b16 %v77
  %v472 = vunpack.c.h.b16 %v77
  %v473 = vunpack.c.l.b16 %v78
  %v474 = vunpack.c.h.b16 %v78
  %v475 = vunpack.c.l.b16 %v79
  %v476 = vunpack.c.h.b16 %v79
  %v477 = vunpack.c.l.b16 %v80
  %v478 = vunpack.c.h.b16 %v80
  %v479 = vunpack.c.l.b16 %v81
  %v480 = vunpack.c.h.b16 %v81
  %v481 = vunpack.c.l.b16 %v82
  %v482 = vunpack.c.h.b16 %v82
  %v483 = vunpack.c.l.b16 %v83
  %v484 = vunpack.c.h.b16 %v83
  %v485 = vunpack.c.l.b16 %v84
  %v486 = vunpack.c.h.b16 %v84
  %v487 = vunpack.c.l.b16 %v85
  %v488 = vunpack.c.h.b16 %v85
  %v489 = vunpack.c.l.b16 %v86
  %v490 = vunpack.c.h.b16 %v86
  %v491 = vunpack.c.l.b16 %v87
  %v492 = vunpack.c.h.b16 %v87
  %v493 = vunpack.c.l.b16 %v88
  %v494 = vunpack.c.h.b16 %v88
  %v495 = vunpack.c.l.b16 %v89
  %v496 = vunpack.c.h.b16 %v89
  %v497 = vunpack.c.l.b16 %v90
  %v498 = vunpack.c.h.b16 %v90
  %v499 = vunpack.c.l.b16 %v91
  %v500 = vunpack.c.h.b16 %v91
  %v501 = vunpack.c.l.b16 %v92
  %v502 = vunpack.c.h.b16 %v92
  %v503 = vunpack.c.l.b16 %v93
  %v504 = vunpack.c.h.b16 %v93
  %v505 = vunpack.c.l.b16 %v94
  %v506 = vunpack.c.h.b16 %v94
  %v507 = vunpack.c.l.b16 %v95
  %v508 = vunpack.c.h.b16 %v95
  %v509 = vunpack.c.l.b16 %v96
  %v510 = vunpack.c.h.b16 %v96
  %v511 = vunpack.c.l.b16 %v97
  %v512 = vunpack.c.h.b16 %v97
  %v513 = vunpack.c.l.b16 %v98
  %v514 = vunpack.c.h.b16 %v98
  %v515 = vunpack.c.l.b16 %v99
  %v516 = vunpack.c.h.b16 %v99
  %v517 = vunpack.c.l.b16 %v100
  %v518 = vunpack.c.h.b16 %v100
  %v519 = vunpack.c.l.b16 %v101
  %v520 = vunpack.c.h.b16 %v101
  %v521 = vunpack.c.l.b16 %v102
  %v522 = vunpack.c.h.b16 %v102
  %v523 = vunpack.c.l.b16 %v103
  %v524 = vunpack.c.h.b16 %v103
  %v525 = vunpack.c.l.b16 %v104
  %v526 = vunpack.c.h.b16 %v104
  %v527 = vunpack.c.l.b16 %v105
  %v528 = vunpack.c.h.b16 %v105
  %v529 = vunpack.c.l.b16 %v106
  %v530 = vunpack.c.h.b16 %v106
  %v531 = vunpack.c.l.b16 %v107
  %v532 = vunpack.c.h.b16 %v107
  %v533 = vunpack.c.l.b16 %v108
  %v534 = vunpack.c.h.b16 %v108
  %v535 = vunpack.c.l.b16 %v109
  %v536 = vunpack.c.h.b16 %v109
  %v537 = vunpack.c.l.b16 %v110
  %v538 = vunpack.c.h.b16 %v110
  %v539 = vunpack.c.l.b16 %v111
  %v540 = vunpack.c.h.b16 %v111
  %v541 = vunpack.c.l.b16 %v112
  %v542 = vunpack.c.h.b16 %v112
  %v543 = vunpack.c.l.b16 %v113
  %v544 = vunpack.c.h.b16 %v113
  %v545 = vunpack.c.l.b16 %v114
  %v546 = vunpack.c.h.b16 %v114
  %v547 = vunpack.c.l.b16 %v115
  %v548 = vunpack.c.h.b16 %v115
  %v549 = vunpack.c.l.b16 %v116
  %v550 = vunpack.c.h.b16 %v116
  %v551 = vunpack.c.l.b16 %v117
  %v552 = vunpack.c.h.b16 %v117
  %v553 = vunpack.c.l.b16 %v118
  %v554 = vunpack.c.h.b16 %v118
  %v555 = vpack.c.b16 %v355, %v347
  %v556 = vpack.c.b16 %v356, %v348
  %v557 = vpack.c.b16 %v357, %v349
  %v558 = vpack.c.b16 %v358, %v350
  %v559 = vpack.c.b16 %v359, %v351
  %v560 = vpack.c.b16 %v360, %v352
  %v561 = vpack.c.b16 %v361, %v353
  %v562 = vpack.c.b16 %v362, %v354
  %v563 = vpack.c.b16 %v371, %v363
  %v564 = vpack.c.b16 %v372, %v364
  %v565 = vpack.c.b16 %v373, %v365
  %v566 = vpack.c.b16 %v374, %v366
  %v567 = vpack.c.b16 %v375, %v367
  %v568 = vpack.c.b16 %v376, %v368
  %v569 = vpack.c.b16 %v377, %v369
  %v570 = vpack.c.b16 %v378, %v370
  %v571 = vpack.c.b16 %v387, %v379
  %v572 = vpack.c.b16 %v388, %v380
  %v573 = vpack.c.b16 %v389, %v381
  %v574 = vpack.c.b16 %v390, %v382
  %v575 = vpack.c.b16 %v391, %v383
  %v576 = vpack.c.b16 %v392, %v384
  %v577 = vpack.c.b16 %v393, %v385
  %v578 = vpack.c.b16 %v394, %v386
  %v579 = vpack.c.b16 %v403, %v395
  %v580 = vpack.c.b16 %v404, %v396
  %v581 = vpack.c.b16 %v405, %v397
  %v582 = vpack.c.b16 %v406, %v398
  %v583 = vpack.c.b16 %v407, %v399
  %v584 = vpack.c.b16 %v408, %v400
  %v585 = vpack.c.b16 %v409, %v401
  %v586 = vpack.c.b16 %v410, %v402
  %v587 = vpack.c.b16 %v419, %v411
  %v588 = vpack.c.b16 %v420, %v412
  %v589 = vpack.c.b16 %v421, %v413
  %v590 = vpack.c.b16 %v422, %v414
  %v591 = vpack.c.b16 %v423, %v415
  %v592 = vpack.c.b16 %v424, %v416
  %v593 = vpack.c.b16 %v425, %v417
  %v594 = vpack.c.b16 %v426, %v418
  %v595 = vpack.c.b16 %v435, %v427
  %v596 = vpack.c.b16 %v436, %v428
  %v597 = vpack.c.b16 %v437, %v429
  %v598 = vpack.c.b16 %v438, %v430
  %v599 = vpack.c.b16 %v439, %v431
  %v600 = vpack.c.b16 %v440, %v432
  %v601 = vpack.c.b16 %v441, %v433
  %v602 = vpack.c.b16 %v442, %v434
  %v603 = vpack.c.b16 %v451, %v443
  %v604 = vpack.c.b16 %v452, %v444
  %v605 = vpack.c.b16 %v453, %v445
  %v606 = vpack.c.b16 %v454, %v446
  %v607 = vpack.c.b16 %v455, %v447
  %v608 = vpack.c.b16 %v456, %v448
  %v609 = vpack.c.b16 %v457, %v449
  %v610 = vpack.c.b16 %v458, %v450
  %v611 = vpack.c.b16 %v467, %v459
  %v612 = vpack.c.b16 %v468, %v460
  %v613 = vpack.c.b16 %v469, %v461
  %v614 = vpack.c.b16 %v470, %v462
  %v615 = vpack.c.b16 %v471, %v463
  %v616 = vpack.c.b16 %v472, %v464
  %v617 = vpack.c.b16 %v473, %v465
  %v618 = vpack.c.b16 %v474, %v466
  %v619 = vpack.c.b16 %v483, %v475
  %v620 = vpack.c.b16 %v484, %v476
  %v621 = vpack.c.b16 %v485, %v477
  %v622 = vpack.c.b16 %v486, %v478
  %v623 = vpack.c.b16 %v487, %v479
  %v624 = vpack.c.b16 %v488, %v480
  %v625 = vpack.c.b16 %v489, %v481
  %v626 = vpack.c.b16 %v490, %v482
  %v627 = vpack.c.b16 %v499, %v491
  %v628 = vpack.c.b16 %v500, %v492
  %v629 = vpack.c.b16 %v501, %v493
  %v630 = vpack.c.b16 %v502, %v494
  %v631 = vpack.c.b16 %v503, %v495
  %v632 = vpack.c.b16 %v504, %v496
  %v633 = vpack.c.b16 %v505, %v497
  %v634 = vpack.c.b16 %v506, %v498
  %v635 = vpack.c.b16 %v515, %v507
  %v636 = vpack.c.b16 %v516, %v508
  %v637 = vpack.c.b16 %v517, %v509
  %v638 = vpack.c.b16 %v518, %v510
  %v639 = vpack.c.b16 %v519, %v511
  %v640 = vpack.c.b16 %v520, %v512
  %v641 = vpack.c.b16 %v521, %v513
  %v642 = vpack.c.b16 %v522, %v514
  %v643 = vpack.c.b16 %v531, %v523
  %v644 = vpack.c.b16 %v532, %v524
  %v645 = vpack.c.b16 %v533, %v525
  %v646 = vpack.c.b16 %v534, %v526
  %v647 = vpack.c.b16 %v535, %v527
  %v648 = vpack.c.b16 %v536, %v528
  %v649 = vpack.c.b16 %v537, %v529
  %v650 = vpack.c.b16 %v538, %v530
  %v651 = vpack.c.b16 %v547, %v539
  %v652 = vpack.c.b16 %v548, %v540
  %v653 = vpack.c.b16 %v549, %v541
  %v654 = vpack.c.b16 %v550, %v542
  %v655 = vpack.c.b16 %v551, %v543
  %v656 = vpack.c.b16 %v552, %v544
  %v657 = vpack.c.b16 %v553, %v545
  %v658 = vpack.c.b16 %v554, %v546
  %v870 = vunpack.c.l.b16 %v119
  %v871 = vunpack.c.l.b16 %v120
  %v872 = vunpack.c.l.b16 %v121
  %v873 = vunpack.c.l.b16 %v122
  %v874 = vunpack.c.l.b16 %v123
  %v875 = vunpack.c.l.b16 %v124
  %v876 = vunpack.c.l.b16 %v125
  %v877 = vunpack.c.l.b16 %v126
  %v878 = vunpack.c.l.b16 %v127
  %v879 = vunpack.c.l.b16 %v128
  %v880 = vunpack.c.l.b16 %v129
  %v881 = vunpack.c.l.b16 %v130
  %v882 = vunpack.c.l.b16 %v131
  %v883 = vunpack.c.l.b16 %v132
  %v884 = vunpack.c.l.b16 %v133
  %v885 = vunpack.c.l.b16 %v134
  %v886 = vunpack.c.l.b16 %v135
  %v887 = vunpack.c.l.b16 %v136
  %v888 = vunpack.c.l.b16 %v137
  %v889 = vunpack.c.l.b16 %v138
  %v890 = vunpack.c.l.b16 %v139
  %v891 = vunpack.c.l.b16 %v140
  %v892 = vunpack.c.l.b16 %v141
  %v893 = vunpack.c.l.b16 %v142
  %v894 = vunpack.c.l.b16 %v143
  %v895 = vunpack.c.l.b16 %v144
  %v896 = vunpack.c.l.b16 %v145
  %v897 = vunpack.c.l.b16 %v146
  %v898 = vunpack.c.l.b16 %v147
  %v899 = vunpack.c.l.b16 %v148
  %v900 = vunpack.c.l.b16 %v149
  %v901 = vunpack.c.l.b16 %v150
  %v902 = vunpack.c.l.b16 %v151
  %v903 = vunpack.c.l.b16 %v152
  %v904 = vunpack.c.l.b16 %v153
  %v905 = vunpack.c.l.b16 %v154
  %v906 = vunpack.c.l.b16 %v155
  %v907 = vunpack.c.l.b16 %v156
  %v908 = vunpack.c.l.b16 %v157
  %v909 = vunpack.c.l.b16 %v158
  %v910 = vunpack.c.l.b16 %v159
  %v911 = vunpack.c.l.b16 %v160
  %v912 = vunpack.c.l.b16 %v161
  %v913 = vunpack.c.l.b16 %v162
  %v914 = vunpack.c.l.b16 %v163
  %v915 = vunpack.c.l.b16 %v164
  %v916 = vunpack.c.l.b16 %v165
  %v917 = vunpack.c.l.b16 %v166
  %v918 = vunpack.c.l.b16 %v167
  %v919 = vunpack.c.l.b16 %v168
  %v920 = vunpack.c.l.b16 %v169
  %v921 = vunpack.c.l.b16 %v170
  %v922 = vunpack.c.l.b16 %v171
  %v923 = vunpack.c.l.b16 %v172
  %v924 = vunpack.c.l.b16 %v173
  %v925 = vunpack.c.l.b16 %v174
  %v926 = vunpack.c.l.b16 %v175
  %v927 = vunpack.c.l.b16 %v176
  %v928 = vunpack.c.l.b16 %v177
  %v929 = vunpack.c.l.b16 %v178
  %v930 = vunpack.c.l.b16 %v179
  %v931 = vunpack.c.l.b16 %v180
  %v932 = vunpack.c.l.b16 %v181
  %v933 = vunpack.c.l.b16 %v182
  %v934 = vunpack.c.l.b16 %v183
  %v935 = vunpack.c.l.b16 %v184
  %v936 = vunpack.c.l.b16 %v185
  %v937 = vunpack.c.l.b16 %v186
  %v938 = vunpack.c.l.b16 %v187
  %v939 = vunpack.c.l.b16 %v188
  %v940 = vunpack.c.l.b16 %v189
  %v941 = vunpack.c.l.b16 %v190
  %v942 = vunpack.c.l.b16 %v191
  %v943 = vunpack.c.l.b16 %v192
  %v944 = vunpack.c.l.b16 %v193
  %v945 = vunpack.c.l.b16 %v194
  %v946 = vunpack.c.l.b16 %v195
  %v947 = vunpack.c.l.b16 %v196
  %v948 = vunpack.c.l.b16 %v197
  %v949 = vunpack.c.l.b16 %v198
  %v950 = vunpack.c.l.b16 %v199
  %v951 = vunpack.c.l.b16 %v200
  %v952 = vunpack.c.l.b16 %v201
  %v953 = vunpack.c.l.b16 %v202
  %v954 = vunpack.c.l.b16 %v203
  %v955 = vunpack.c.l.b16 %v204
  %v956 = vunpack.c.l.b16 %v205
  %v957 = vunpack.c.l.b16 %v206
  %v958 = vunpack.c.l.b16 %v207
  %v959 = vunpack.c.l.b16 %v208
  %v960 = vunpack.c.l.b16 %v209
  %v961 = vunpack.c.l.b16 %v210
  %v962 = vunpack.c.l.b16 %v211
  %v963 = vunpack.c.l.b16 %v212
  %v964 = vunpack.c.l.b16 %v213
  %v965 = vunpack.c.l.b16 %v214
  %v966 = vunpack.c.l.b16 %v215
  %v967 = vunpack.c.l.b16 %v216
  %v968 = vunpack.c.l.b16 %v217
  %v969 = vunpack.c.l.b16 %v218
  %v970 = vunpack.c.l.b16 %v219
  %v971 = vunpack.c.l.b16 %v220
  %v972 = vunpack.c.l.b16 %v221
  %v973 = vunpack.c.l.b16 %v222
  %v974 = vunpack.c.l.b16 %v223
  %v975 = vunpack.c.l.b16 %v224
  %v976 = vunpack.c.l.b16 %v225
  %v977 = vunpack.c.l.b16 %v226
  %v978 = vunpack.c.l.b16 %v227
  %v979 = vunpack.c.l.b16 %v228
  %v980 = vunpack.c.l.b16 %v229
  %v981 = vunpack.c.l.b16 %v230
  %v982 = vunpack.c.l.b16 %v231
  %v983 = vunpack.c.l.b16 %v232
  %v984 = vunpack.c.l.b16 %v233
  %v985 = vunpack.c.l.b16 %v234
  %v986 = vunpack.c.l.b16 %v235
  %v987 = vunpack.c.l.b16 %v236
  %v988 = vunpack.c.l.b16 %v237
  %v989 = vunpack.c.l.b16 %v238
  %v990 = vpack.c.b16 %v871, %v870
  %v991 = vpack.c.b16 %v873, %v872
  %v992 = vpack.c.b16 %v875, %v874
  %v993 = vpack.c.b16 %v877, %v876
  %v994 = vpack.c.b16 %v879, %v878
  %v995 = vpack.c.b16 %v881, %v880
  %v996 = vpack.c.b16 %v883, %v882
  %v997 = vpack.c.b16 %v885, %v884
  %v998 = vpack.c.b16 %v887, %v886
  %v999 = vpack.c.b16 %v889, %v888
  %v1000 = vpack.c.b16 %v891, %v890
  %v1001 = vpack.c.b16 %v893, %v892
  %v1002 = vpack.c.b16 %v895, %v894
  %v1003 = vpack.c.b16 %v897, %v896
  %v1004 = vpack.c.b16 %v899, %v898
  %v1005 = vpack.c.b16 %v901, %v900
  %v1006 = vpack.c.b16 %v903, %v902
  %v1007 = vpack.c.b16 %v905, %v904
  %v1008 = vpack.c.b16 %v907, %v906
  %v1009 = vpack.c.b16 %v909, %v908
  %v1010 = vpack.c.b16 %v911, %v910
  %v1011 = vpack.c.b16 %v913, %v912
  %v1012 = vpack.c.b16 %v915, %v914
  %v1013 = vpack.c.b16 %v917, %v916
  %v1014 = vpack.c.b16 %v919, %v918
  %v1015 = vpack.c.b16 %v921, %v920
  %v1016 = vpack.c.b16 %v923, %v922
  %v1017 = vpack.c.b16 %v925, %v924
  %v1018 = vpack.c.b16 %v927, %v926
  %v1019 = vpack.c.b16 %v929, %v928
  %v1020 = vpack.c.b16 %v931, %v930
  %v1021 = vpack.c.b16 %v933, %v932
  %v1022 = vpack.c.b16 %v935, %v934
  %v1023 = vpack.c.b16 %v937, %v936
  %v1024 = vpack.c.b16 %v939, %v938
  %v1025 = vpack.c.b16 %v941, %v940
  %v1026 = vpack.c.b16 %v943, %v942
  %v1027 = vpack.c.b16 %v945, %v944
  %v1028 = vpack.c.b16 %v947, %v946
  %v1029 = vpack.c.b16 %v949, %v948
  %v1030 = vpack.c.b16 %v951, %v950
  %v1031 = vpack.c.b16 %v953, %v952
  %v1032 = vpack.c.b16 %v955, %v954
  %v1033 = vpack.c.b16 %v957, %v956
  %v1034 = vpack.c.b16 %v959, %v958
  %v1035 = vpack.c.b16 %v961, %v960
  %v1036 = vpack.c.b16 %v963, %v962
  %v1037 = vpack.c.b16 %v965, %v964
  %v1038 = vpack.c.b16 %v967, %v966
  %v1039 = vpack.c.b16 %v969, %v968
  %v1040 = vpack.c.b16 %v971, %v970
  %v1041 = vpack.c.b16 %v973, %v972
  %v1042 = vpack.c.b16 %v975, %v974
  %v1043 = vpack.c.b16 %v977, %v976
  %v1044 = vpack.c.b16 %v979, %v978
  %v1045 = vpack.c.b16 %v981, %v980
  %v1046 = vpack.c.b16 %v983, %v982
  %v1047 = vpack.c.b16 %v985, %v984
  %v1048 = vpack.c.b16 %v987, %v986
  %v1049 = vpack.c.b16 %v989, %v988
  %vm1110 = vcmask 523264
  %v1112 = vsel %vm1110, %v562, 0
  %v1115 = vsel %vm1110, %v570, 0
  %v1118 = vsel %vm1110, %v578, 0
  %v1121 = vsel %vm1110, %v586, 0
  %v1124 = vsel %vm1110, %v594, 0
  %v1127 = vsel %vm1110, %v602, 0
  %v1130 = vsel %vm1110, %v610, 0
  %v1133 = vsel %vm1110, %v618, 0
  %v1136 = vsel %vm1110, %v626, 0
  %v1139 = vsel %vm1110, %v634, 0
  %v1142 = vsel %vm1110, %v642, 0
  %v1145 = vsel %vm1110, %v650, 0
  %v1148 = vsel %vm1110, %v658, 0
  %1150 = vmatpush.bf16.msra.mxu0 %v997
  %1151 = vmatpush.bf16.msra.mxu0 %v996
  %1152 = vmatpush.bf16.msra.mxu0 %v995
  %1153 = vmatpush.bf16.msra.mxu0 %v994
  %1154 = vmatpush.bf16.msra.mxu0 %v993
  %1155 = vmatpush.bf16.msra.mxu0 %v992
  %1156 = vmatpush.bf16.msra.mxu0 %v991
  %1157 = vmatpush.bf16.msra.mxu0 %v990
  %1158 = vmatmul.bf16.gmra.mxu0 %v555
  %v1159 = vpop.f32.mrf.mxu0
  %v1160 = vadd.f32 %v241, %v1159
  %v1161 = vpop.f32.mrf.mxu0
  %v1162 = vadd.f32 %v241, %v1161
  %1163 = vmatmul.bf16.gmra.mxu0 %v563
  %v1164 = vpop.f32.mrf.mxu0
  %v1165 = vadd.f32 %v241, %v1164
  %v1166 = vpop.f32.mrf.mxu0
  %v1167 = vadd.f32 %v241, %v1166
  %1168 = vmatmul.bf16.gmra.mxu0 %v571
  %v1169 = vpop.f32.mrf.mxu0
  %v1170 = vadd.f32 %v241, %v1169
  %v1171 = vpop.f32.mrf.mxu0
  %v1172 = vadd.f32 %v241, %v1171
  %1173 = vmatmul.bf16.gmra.mxu0 %v579
  %v1174 = vpop.f32.mrf.mxu0
  %v1175 = vadd.f32 %v241, %v1174
  %v1176 = vpop.f32.mrf.mxu0
  %v1177 = vadd.f32 %v241, %v1176
  %1178 = vmatmul.bf16.gmra.mxu0 %v587
  %v1179 = vpop.f32.mrf.mxu0
  %v1180 = vadd.f32 %v241, %v1179
  %v1181 = vpop.f32.mrf.mxu0
  %v1182 = vadd.f32 %v241, %v1181
  %1183 = vmatmul.bf16.gmra.mxu0 %v595
  %v1184 = vpop.f32.mrf.mxu0
  %v1185 = vadd.f32 %v241, %v1184
  %v1186 = vpop.f32.mrf.mxu0
  %v1187 = vadd.f32 %v241, %v1186
  %1188 = vmatmul.bf16.gmra.mxu0 %v603
  %v1189 = vpop.f32.mrf.mxu0
  %v1190 = vadd.f32 %v241, %v1189
  %v1191 = vpop.f32.mrf.mxu0
  %v1192 = vadd.f32 %v241, %v1191
  %1193 = vmatmul.bf16.gmra.mxu0 %v611
  %v1194 = vpop.f32.mrf.mxu0
  %v1195 = vadd.f32 %v241, %v1194
  %v1196 = vpop.f32.mrf.mxu0
  %v1197 = vadd.f32 %v241, %v1196
  %1198 = vmatmul.bf16.gmra.mxu0 %v619
  %v1199 = vpop.f32.mrf.mxu0
  %v1200 = vadd.f32 %v241, %v1199
  %v1201 = vpop.f32.mrf.mxu0
  %v1202 = vadd.f32 %v241, %v1201
  %1203 = vmatmul.bf16.gmra.mxu0 %v627
  %v1204 = vpop.f32.mrf.mxu0
  %v1205 = vadd.f32 %v241, %v1204
  %v1206 = vpop.f32.mrf.mxu0
  %v1207 = vadd.f32 %v241, %v1206
  %1208 = vmatmul.bf16.gmra.mxu0 %v635
  %v1209 = vpop.f32.mrf.mxu0
  %v1210 = vadd.f32 %v241, %v1209
  %v1211 = vpop.f32.mrf.mxu0
  %v1212 = vadd.f32 %v241, %v1211
  %1213 = vmatmul.bf16.gmra.mxu0 %v643
  %v1214 = vpop.f32.mrf.mxu0
  %v1215 = vadd.f32 %v241, %v1214
  %v1216 = vpop.f32.mrf.mxu0
  %v1217 = vadd.f32 %v241, %v1216
  %1218 = vmatmul.bf16.gmra.mxu0 %v651
  %v1219 = vpop.f32.mrf.mxu0
  %v1220 = vadd.f32 %v241, %v1219
  %v1221 = vpop.f32.mrf.mxu0
  %v1222 = vadd.f32 %v241, %v1221
  %1223 = vdwg.mxu0
  %1224 = vmatpush.bf16.msra.mxu0 %v1005
  %1225 = vmatpush.bf16.msra.mxu0 %v1004
  %1226 = vmatpush.bf16.msra.mxu0 %v1003
  %1227 = vmatpush.bf16.msra.mxu0 %v1002
  %1228 = vmatpush.bf16.msra.mxu0 %v1001
  %1229 = vmatpush.bf16.msra.mxu0 %v1000
  %1230 = vmatpush.bf16.msra.mxu0 %v999
  %1231 = vmatpush.bf16.msra.mxu0 %v998
  %1232 = vmatmul.bf16.gmra.mxu0 %v556
  %v1233 = vpop.f32.mrf.mxu0
  %v1234 = vadd.f32 %v1160, %v1233
  %v1235 = vpop.f32.mrf.mxu0
  %v1236 = vadd.f32 %v1162, %v1235
  %1237 = vmatmul.bf16.gmra.mxu0 %v564
  %v1238 = vpop.f32.mrf.mxu0
  %v1239 = vadd.f32 %v1165, %v1238
  %v1240 = vpop.f32.mrf.mxu0
  %v1241 = vadd.f32 %v1167, %v1240
  %1242 = vmatmul.bf16.gmra.mxu0 %v572
  %v1243 = vpop.f32.mrf.mxu0
  %v1244 = vadd.f32 %v1170, %v1243
  %v1245 = vpop.f32.mrf.mxu0
  %v1246 = vadd.f32 %v1172, %v1245
  %1247 = vmatmul.bf16.gmra.mxu0 %v580
  %v1248 = vpop.f32.mrf.mxu0
  %v1249 = vadd.f32 %v1175, %v1248
  %v1250 = vpop.f32.mrf.mxu0
  %v1251 = vadd.f32 %v1177, %v1250
  %1252 = vmatmul.bf16.gmra.mxu0 %v588
  %v1253 = vpop.f32.mrf.mxu0
  %v1254 = vadd.f32 %v1180, %v1253
  %v1255 = vpop.f32.mrf.mxu0
  %v1256 = vadd.f32 %v1182, %v1255
  %1257 = vmatmul.bf16.gmra.mxu0 %v596
  %v1258 = vpop.f32.mrf.mxu0
  %v1259 = vadd.f32 %v1185, %v1258
  %v1260 = vpop.f32.mrf.mxu0
  %v1261 = vadd.f32 %v1187, %v1260
  %1262 = vmatmul.bf16.gmra.mxu0 %v604
  %v1263 = vpop.f32.mrf.mxu0
  %v1264 = vadd.f32 %v1190, %v1263
  %v1265 = vpop.f32.mrf.mxu0
  %v1266 = vadd.f32 %v1192, %v1265
  %1267 = vmatmul.bf16.gmra.mxu0 %v612
  %v1268 = vpop.f32.mrf.mxu0
  %v1269 = vadd.f32 %v1195, %v1268
  %v1270 = vpop.f32.mrf.mxu0
  %v1271 = vadd.f32 %v1197, %v1270
  %1272 = vmatmul.bf16.gmra.mxu0 %v620
  %v1273 = vpop.f32.mrf.mxu0
  %v1274 = vadd.f32 %v1200, %v1273
  %v1275 = vpop.f32.mrf.mxu0
  %v1276 = vadd.f32 %v1202, %v1275
  %1277 = vmatmul.bf16.gmra.mxu0 %v628
  %v1278 = vpop.f32.mrf.mxu0
  %v1279 = vadd.f32 %v1205, %v1278
  %v1280 = vpop.f32.mrf.mxu0
  %v1281 = vadd.f32 %v1207, %v1280
  %1282 = vmatmul.bf16.gmra.mxu0 %v636
  %v1283 = vpop.f32.mrf.mxu0
  %v1284 = vadd.f32 %v1210, %v1283
  %v1285 = vpop.f32.mrf.mxu0
  %v1286 = vadd.f32 %v1212, %v1285
  %1287 = vmatmul.bf16.gmra.mxu0 %v644
  %v1288 = vpop.f32.mrf.mxu0
  %v1289 = vadd.f32 %v1215, %v1288
  %v1290 = vpop.f32.mrf.mxu0
  %v1291 = vadd.f32 %v1217, %v1290
  %1292 = vmatmul.bf16.gmra.mxu0 %v652
  %v1293 = vpop.f32.mrf.mxu0
  %v1294 = vadd.f32 %v1220, %v1293
  %v1295 = vpop.f32.mrf.mxu0
  %v1296 = vadd.f32 %v1222, %v1295
  %1297 = vdwg.mxu0
  %1298 = vmatpush.bf16.msra.mxu0 %v1013
  %1299 = vmatpush.bf16.msra.mxu0 %v1012
  %1300 = vmatpush.bf16.msra.mxu0 %v1011
  %1301 = vmatpush.bf16.msra.mxu0 %v1010
  %1302 = vmatpush.bf16.msra.mxu0 %v1009
  %1303 = vmatpush.bf16.msra.mxu0 %v1008
  %1304 = vmatpush.bf16.msra.mxu0 %v1007
  %1305 = vmatpush.bf16.msra.mxu0 %v1006
  %1306 = vmatmul.bf16.gmra.mxu0 %v557
  %v1307 = vpop.f32.mrf.mxu0
  %v1308 = vadd.f32 %v1234, %v1307
  %v1309 = vpop.f32.mrf.mxu0
  %v1310 = vadd.f32 %v1236, %v1309
  %1311 = vmatmul.bf16.gmra.mxu0 %v565
  %v1312 = vpop.f32.mrf.mxu0
  %v1313 = vadd.f32 %v1239, %v1312
  %v1314 = vpop.f32.mrf.mxu0
  %v1315 = vadd.f32 %v1241, %v1314
  %1316 = vmatmul.bf16.gmra.mxu0 %v573
  %v1317 = vpop.f32.mrf.mxu0
  %v1318 = vadd.f32 %v1244, %v1317
  %v1319 = vpop.f32.mrf.mxu0
  %v1320 = vadd.f32 %v1246, %v1319
  %1321 = vmatmul.bf16.gmra.mxu0 %v581
  %v1322 = vpop.f32.mrf.mxu0
  %v1323 = vadd.f32 %v1249, %v1322
  %v1324 = vpop.f32.mrf.mxu0
  %v1325 = vadd.f32 %v1251, %v1324
  %1326 = vmatmul.bf16.gmra.mxu0 %v589
  %v1327 = vpop.f32.mrf.mxu0
  %v1328 = vadd.f32 %v1254, %v1327
  %v1329 = vpop.f32.mrf.mxu0
  %v1330 = vadd.f32 %v1256, %v1329
  %1331 = vmatmul.bf16.gmra.mxu0 %v597
  %v1332 = vpop.f32.mrf.mxu0
  %v1333 = vadd.f32 %v1259, %v1332
  %v1334 = vpop.f32.mrf.mxu0
  %v1335 = vadd.f32 %v1261, %v1334
  %1336 = vmatmul.bf16.gmra.mxu0 %v605
  %v1337 = vpop.f32.mrf.mxu0
  %v1338 = vadd.f32 %v1264, %v1337
  %v1339 = vpop.f32.mrf.mxu0
  %v1340 = vadd.f32 %v1266, %v1339
  %1341 = vmatmul.bf16.gmra.mxu0 %v613
  %v1342 = vpop.f32.mrf.mxu0
  %v1343 = vadd.f32 %v1269, %v1342
  %v1344 = vpop.f32.mrf.mxu0
  %v1345 = vadd.f32 %v1271, %v1344
  %1346 = vmatmul.bf16.gmra.mxu0 %v621
  %v1347 = vpop.f32.mrf.mxu0
  %v1348 = vadd.f32 %v1274, %v1347
  %v1349 = vpop.f32.mrf.mxu0
  %v1350 = vadd.f32 %v1276, %v1349
  %1351 = vmatmul.bf16.gmra.mxu0 %v629
  %v1352 = vpop.f32.mrf.mxu0
  %v1353 = vadd.f32 %v1279, %v1352
  %v1354 = vpop.f32.mrf.mxu0
  %v1355 = vadd.f32 %v1281, %v1354
  %1356 = vmatmul.bf16.gmra.mxu0 %v637
  %v1357 = vpop.f32.mrf.mxu0
  %v1358 = vadd.f32 %v1284, %v1357
  %v1359 = vpop.f32.mrf.mxu0
  %v1360 = vadd.f32 %v1286, %v1359
  %1361 = vmatmul.bf16.gmra.mxu0 %v645
  %v1362 = vpop.f32.mrf.mxu0
  %v1363 = vadd.f32 %v1289, %v1362
  %v1364 = vpop.f32.mrf.mxu0
  %v1365 = vadd.f32 %v1291, %v1364
  %1366 = vmatmul.bf16.gmra.mxu0 %v653
  %v1367 = vpop.f32.mrf.mxu0
  %v1368 = vadd.f32 %v1294, %v1367
  %v1369 = vpop.f32.mrf.mxu0
  %v1370 = vadd.f32 %v1296, %v1369
  %1371 = vdwg.mxu0
  %1372 = vmatpush.bf16.msra.mxu0 %v1021
  %1373 = vmatpush.bf16.msra.mxu0 %v1020
  %1374 = vmatpush.bf16.msra.mxu0 %v1019
  %1375 = vmatpush.bf16.msra.mxu0 %v1018
  %1376 = vmatpush.bf16.msra.mxu0 %v1017
  %1377 = vmatpush.bf16.msra.mxu0 %v1016
  %1378 = vmatpush.bf16.msra.mxu0 %v1015
  %1379 = vmatpush.bf16.msra.mxu0 %v1014
  %1380 = vmatmul.bf16.gmra.mxu0 %v558
  %v1381 = vpop.f32.mrf.mxu0
  %v1382 = vadd.f32 %v1308, %v1381
  %v1383 = vpop.f32.mrf.mxu0
  %v1384 = vadd.f32 %v1310, %v1383
  %1385 = vmatmul.bf16.gmra.mxu0 %v566
  %v1386 = vpop.f32.mrf.mxu0
  %v1387 = vadd.f32 %v1313, %v1386
  %v1388 = vpop.f32.mrf.mxu0
  %v1389 = vadd.f32 %v1315, %v1388
  %1390 = vmatmul.bf16.gmra.mxu0 %v574
  %v1391 = vpop.f32.mrf.mxu0
  %v1392 = vadd.f32 %v1318, %v1391
  %v1393 = vpop.f32.mrf.mxu0
  %v1394 = vadd.f32 %v1320, %v1393
  %1395 = vmatmul.bf16.gmra.mxu0 %v582
  %v1396 = vpop.f32.mrf.mxu0
  %v1397 = vadd.f32 %v1323, %v1396
  %v1398 = vpop.f32.mrf.mxu0
  %v1399 = vadd.f32 %v1325, %v1398
  %1400 = vmatmul.bf16.gmra.mxu0 %v590
  %v1401 = vpop.f32.mrf.mxu0
  %v1402 = vadd.f32 %v1328, %v1401
  %v1403 = vpop.f32.mrf.mxu0
  %v1404 = vadd.f32 %v1330, %v1403
  %1405 = vmatmul.bf16.gmra.mxu0 %v598
  %v1406 = vpop.f32.mrf.mxu0
  %v1407 = vadd.f32 %v1333, %v1406
  %v1408 = vpop.f32.mrf.mxu0
  %v1409 = vadd.f32 %v1335, %v1408
  %1410 = vmatmul.bf16.gmra.mxu0 %v606
  %v1411 = vpop.f32.mrf.mxu0
  %v1412 = vadd.f32 %v1338, %v1411
  %v1413 = vpop.f32.mrf.mxu0
  %v1414 = vadd.f32 %v1340, %v1413
  %1415 = vmatmul.bf16.gmra.mxu0 %v614
  %v1416 = vpop.f32.mrf.mxu0
  %v1417 = vadd.f32 %v1343, %v1416
  %v1418 = vpop.f32.mrf.mxu0
  %v1419 = vadd.f32 %v1345, %v1418
  %1420 = vmatmul.bf16.gmra.mxu0 %v622
  %v1421 = vpop.f32.mrf.mxu0
  %v1422 = vadd.f32 %v1348, %v1421
  %v1423 = vpop.f32.mrf.mxu0
  %v1424 = vadd.f32 %v1350, %v1423
  %1425 = vmatmul.bf16.gmra.mxu0 %v630
  %v1426 = vpop.f32.mrf.mxu0
  %v1427 = vadd.f32 %v1353, %v1426
  %v1428 = vpop.f32.mrf.mxu0
  %v1429 = vadd.f32 %v1355, %v1428
  %1430 = vmatmul.bf16.gmra.mxu0 %v638
  %v1431 = vpop.f32.mrf.mxu0
  %v1432 = vadd.f32 %v1358, %v1431
  %v1433 = vpop.f32.mrf.mxu0
  %v1434 = vadd.f32 %v1360, %v1433
  %1435 = vmatmul.bf16.gmra.mxu0 %v646
  %v1436 = vpop.f32.mrf.mxu0
  %v1437 = vadd.f32 %v1363, %v1436
  %v1438 = vpop.f32.mrf.mxu0
  %v1439 = vadd.f32 %v1365, %v1438
  %1440 = vmatmul.bf16.gmra.mxu0 %v654
  %v1441 = vpop.f32.mrf.mxu0
  %v1442 = vadd.f32 %v1368, %v1441
  %v1443 = vpop.f32.mrf.mxu0
  %v1444 = vadd.f32 %v1370, %v1443
  %1445 = vdwg.mxu0
  %1446 = vmatpush.bf16.msra.mxu0 %v1029
  %1447 = vmatpush.bf16.msra.mxu0 %v1028
  %1448 = vmatpush.bf16.msra.mxu0 %v1027
  %1449 = vmatpush.bf16.msra.mxu0 %v1026
  %1450 = vmatpush.bf16.msra.mxu0 %v1025
  %1451 = vmatpush.bf16.msra.mxu0 %v1024
  %1452 = vmatpush.bf16.msra.mxu0 %v1023
  %1453 = vmatpush.bf16.msra.mxu0 %v1022
  %1454 = vmatmul.bf16.gmra.mxu0 %v559
  %v1455 = vpop.f32.mrf.mxu0
  %v1456 = vadd.f32 %v1382, %v1455
  %v1457 = vpop.f32.mrf.mxu0
  %v1458 = vadd.f32 %v1384, %v1457
  %1459 = vmatmul.bf16.gmra.mxu0 %v567
  %v1460 = vpop.f32.mrf.mxu0
  %v1461 = vadd.f32 %v1387, %v1460
  %v1462 = vpop.f32.mrf.mxu0
  %v1463 = vadd.f32 %v1389, %v1462
  %1464 = vmatmul.bf16.gmra.mxu0 %v575
  %v1465 = vpop.f32.mrf.mxu0
  %v1466 = vadd.f32 %v1392, %v1465
  %v1467 = vpop.f32.mrf.mxu0
  %v1468 = vadd.f32 %v1394, %v1467
  %1469 = vmatmul.bf16.gmra.mxu0 %v583
  %v1470 = vpop.f32.mrf.mxu0
  %v1471 = vadd.f32 %v1397, %v1470
  %v1472 = vpop.f32.mrf.mxu0
  %v1473 = vadd.f32 %v1399, %v1472
  %1474 = vmatmul.bf16.gmra.mxu0 %v591
  %v1475 = vpop.f32.mrf.mxu0
  %v1476 = vadd.f32 %v1402, %v1475
  %v1477 = vpop.f32.mrf.mxu0
  %v1478 = vadd.f32 %v1404, %v1477
  %1479 = vmatmul.bf16.gmra.mxu0 %v599
  %v1480 = vpop.f32.mrf.mxu0
  %v1481 = vadd.f32 %v1407, %v1480
  %v1482 = vpop.f32.mrf.mxu0
  %v1483 = vadd.f32 %v1409, %v1482
  %1484 = vmatmul.bf16.gmra.mxu0 %v607
  %v1485 = vpop.f32.mrf.mxu0
  %v1486 = vadd.f32 %v1412, %v1485
  %v1487 = vpop.f32.mrf.mxu0
  %v1488 = vadd.f32 %v1414, %v1487
  %1489 = vmatmul.bf16.gmra.mxu0 %v615
  %v1490 = vpop.f32.mrf.mxu0
  %v1491 = vadd.f32 %v1417, %v1490
  %v1492 = vpop.f32.mrf.mxu0
  %v1493 = vadd.f32 %v1419, %v1492
  %1494 = vmatmul.bf16.gmra.mxu0 %v623
  %v1495 = vpop.f32.mrf.mxu0
  %v1496 = vadd.f32 %v1422, %v1495
  %v1497 = vpop.f32.mrf.mxu0
  %v1498 = vadd.f32 %v1424, %v1497
  %1499 = vmatmul.bf16.gmra.mxu0 %v631
  %v1500 = vpop.f32.mrf.mxu0
  %v1501 = vadd.f32 %v1427, %v1500
  %v1502 = vpop.f32.mrf.mxu0
  %v1503 = vadd.f32 %v1429, %v1502
  %1504 = vmatmul.bf16.gmra.mxu0 %v639
  %v1505 = vpop.f32.mrf.mxu0
  %v1506 = vadd.f32 %v1432, %v1505
  %v1507 = vpop.f32.mrf.mxu0
  %v1508 = vadd.f32 %v1434, %v1507
  %1509 = vmatmul.bf16.gmra.mxu0 %v647
  %v1510 = vpop.f32.mrf.mxu0
  %v1511 = vadd.f32 %v1437, %v1510
  %v1512 = vpop.f32.mrf.mxu0
  %v1513 = vadd.f32 %v1439, %v1512
  %1514 = vmatmul.bf16.gmra.mxu0 %v655
  %v1515 = vpop.f32.mrf.mxu0
  %v1516 = vadd.f32 %v1442, %v1515
  %v1517 = vpop.f32.mrf.mxu0
  %v1518 = vadd.f32 %v1444, %v1517
  %1519 = vdwg.mxu0
  %1520 = vmatpush.bf16.msra.mxu0 %v1037
  %1521 = vmatpush.bf16.msra.mxu0 %v1036
  %1522 = vmatpush.bf16.msra.mxu0 %v1035
  %1523 = vmatpush.bf16.msra.mxu0 %v1034
  %1524 = vmatpush.bf16.msra.mxu0 %v1033
  %1525 = vmatpush.bf16.msra.mxu0 %v1032
  %1526 = vmatpush.bf16.msra.mxu0 %v1031
  %1527 = vmatpush.bf16.msra.mxu0 %v1030
  %1528 = vmatmul.bf16.gmra.mxu0 %v560
  %v1529 = vpop.f32.mrf.mxu0
  %v1530 = vadd.f32 %v1456, %v1529
  %v1531 = vpop.f32.mrf.mxu0
  %v1532 = vadd.f32 %v1458, %v1531
  %1533 = vmatmul.bf16.gmra.mxu0 %v568
  %v1534 = vpop.f32.mrf.mxu0
  %v1535 = vadd.f32 %v1461, %v1534
  %v1536 = vpop.f32.mrf.mxu0
  %v1537 = vadd.f32 %v1463, %v1536
  %1538 = vmatmul.bf16.gmra.mxu0 %v576
  %v1539 = vpop.f32.mrf.mxu0
  %v1540 = vadd.f32 %v1466, %v1539
  %v1541 = vpop.f32.mrf.mxu0
  %v1542 = vadd.f32 %v1468, %v1541
  %1543 = vmatmul.bf16.gmra.mxu0 %v584
  %v1544 = vpop.f32.mrf.mxu0
  %v1545 = vadd.f32 %v1471, %v1544
  %v1546 = vpop.f32.mrf.mxu0
  %v1547 = vadd.f32 %v1473, %v1546
  %1548 = vmatmul.bf16.gmra.mxu0 %v592
  %v1549 = vpop.f32.mrf.mxu0
  %v1550 = vadd.f32 %v1476, %v1549
  %v1551 = vpop.f32.mrf.mxu0
  %v1552 = vadd.f32 %v1478, %v1551
  %1553 = vmatmul.bf16.gmra.mxu0 %v600
  %v1554 = vpop.f32.mrf.mxu0
  %v1555 = vadd.f32 %v1481, %v1554
  %v1556 = vpop.f32.mrf.mxu0
  %v1557 = vadd.f32 %v1483, %v1556
  %1558 = vmatmul.bf16.gmra.mxu0 %v608
  %v1559 = vpop.f32.mrf.mxu0
  %v1560 = vadd.f32 %v1486, %v1559
  %v1561 = vpop.f32.mrf.mxu0
  %v1562 = vadd.f32 %v1488, %v1561
  %1563 = vmatmul.bf16.gmra.mxu0 %v616
  %v1564 = vpop.f32.mrf.mxu0
  %v1565 = vadd.f32 %v1491, %v1564
  %v1566 = vpop.f32.mrf.mxu0
  %v1567 = vadd.f32 %v1493, %v1566
  %1568 = vmatmul.bf16.gmra.mxu0 %v624
  %v1569 = vpop.f32.mrf.mxu0
  %v1570 = vadd.f32 %v1496, %v1569
  %v1571 = vpop.f32.mrf.mxu0
  %v1572 = vadd.f32 %v1498, %v1571
  %1573 = vmatmul.bf16.gmra.mxu0 %v632
  %v1574 = vpop.f32.mrf.mxu0
  %v1575 = vadd.f32 %v1501, %v1574
  %v1576 = vpop.f32.mrf.mxu0
  %v1577 = vadd.f32 %v1503, %v1576
  %1578 = vmatmul.bf16.gmra.mxu0 %v640
  %v1579 = vpop.f32.mrf.mxu0
  %v1580 = vadd.f32 %v1506, %v1579
  %v1581 = vpop.f32.mrf.mxu0
  %v1582 = vadd.f32 %v1508, %v1581
  %1583 = vmatmul.bf16.gmra.mxu0 %v648
  %v1584 = vpop.f32.mrf.mxu0
  %v1585 = vadd.f32 %v1511, %v1584
  %v1586 = vpop.f32.mrf.mxu0
  %v1587 = vadd.f32 %v1513, %v1586
  %1588 = vmatmul.bf16.gmra.mxu0 %v656
  %v1589 = vpop.f32.mrf.mxu0
  %v1590 = vadd.f32 %v1516, %v1589
  %v1591 = vpop.f32.mrf.mxu0
  %v1592 = vadd.f32 %v1518, %v1591
  %1593 = vdwg.mxu0
  %1594 = vmatpush.bf16.msra.mxu0 %v1045
  %1595 = vmatpush.bf16.msra.mxu0 %v1044
  %1596 = vmatpush.bf16.msra.mxu0 %v1043
  %1597 = vmatpush.bf16.msra.mxu0 %v1042
  %1598 = vmatpush.bf16.msra.mxu0 %v1041
  %1599 = vmatpush.bf16.msra.mxu0 %v1040
  %1600 = vmatpush.bf16.msra.mxu0 %v1039
  %1601 = vmatpush.bf16.msra.mxu0 %v1038
  %1602 = vmatmul.bf16.gmra.mxu0 %v561
  %v1603 = vpop.f32.mrf.mxu0
  %v1604 = vadd.f32 %v1530, %v1603
  %v1605 = vpop.f32.mrf.mxu0
  %v1606 = vadd.f32 %v1532, %v1605
  %1607 = vmatmul.bf16.gmra.mxu0 %v569
  %v1608 = vpop.f32.mrf.mxu0
  %v1609 = vadd.f32 %v1535, %v1608
  %v1610 = vpop.f32.mrf.mxu0
  %v1611 = vadd.f32 %v1537, %v1610
  %1612 = vmatmul.bf16.gmra.mxu0 %v577
  %v1613 = vpop.f32.mrf.mxu0
  %v1614 = vadd.f32 %v1540, %v1613
  %v1615 = vpop.f32.mrf.mxu0
  %v1616 = vadd.f32 %v1542, %v1615
  %1617 = vmatmul.bf16.gmra.mxu0 %v585
  %v1618 = vpop.f32.mrf.mxu0
  %v1619 = vadd.f32 %v1545, %v1618
  %v1620 = vpop.f32.mrf.mxu0
  %v1621 = vadd.f32 %v1547, %v1620
  %1622 = vmatmul.bf16.gmra.mxu0 %v593
  %v1623 = vpop.f32.mrf.mxu0
  %v1624 = vadd.f32 %v1550, %v1623
  %v1625 = vpop.f32.mrf.mxu0
  %v1626 = vadd.f32 %v1552, %v1625
  %1627 = vmatmul.bf16.gmra.mxu0 %v601
  %v1628 = vpop.f32.mrf.mxu0
  %v1629 = vadd.f32 %v1555, %v1628
  %v1630 = vpop.f32.mrf.mxu0
  %v1631 = vadd.f32 %v1557, %v1630
  %1632 = vmatmul.bf16.gmra.mxu0 %v609
  %v1633 = vpop.f32.mrf.mxu0
  %v1634 = vadd.f32 %v1560, %v1633
  %v1635 = vpop.f32.mrf.mxu0
  %v1636 = vadd.f32 %v1562, %v1635
  %1637 = vmatmul.bf16.gmra.mxu0 %v617
  %v1638 = vpop.f32.mrf.mxu0
  %v1639 = vadd.f32 %v1565, %v1638
  %v1640 = vpop.f32.mrf.mxu0
  %v1641 = vadd.f32 %v1567, %v1640
  %1642 = vmatmul.bf16.gmra.mxu0 %v625
  %v1643 = vpop.f32.mrf.mxu0
  %v1644 = vadd.f32 %v1570, %v1643
  %v1645 = vpop.f32.mrf.mxu0
  %v1646 = vadd.f32 %v1572, %v1645
  %1647 = vmatmul.bf16.gmra.mxu0 %v633
  %v1648 = vpop.f32.mrf.mxu0
  %v1649 = vadd.f32 %v1575, %v1648
  %v1650 = vpop.f32.mrf.mxu0
  %v1651 = vadd.f32 %v1577, %v1650
  %1652 = vmatmul.bf16.gmra.mxu0 %v641
  %v1653 = vpop.f32.mrf.mxu0
  %v1654 = vadd.f32 %v1580, %v1653
  %v1655 = vpop.f32.mrf.mxu0
  %v1656 = vadd.f32 %v1582, %v1655
  %1657 = vmatmul.bf16.gmra.mxu0 %v649
  %v1658 = vpop.f32.mrf.mxu0
  %v1659 = vadd.f32 %v1585, %v1658
  %v1660 = vpop.f32.mrf.mxu0
  %v1661 = vadd.f32 %v1587, %v1660
  %1662 = vmatmul.bf16.gmra.mxu0 %v657
  %v1663 = vpop.f32.mrf.mxu0
  %v1664 = vadd.f32 %v1590, %v1663
  %v1665 = vpop.f32.mrf.mxu0
  %v1666 = vadd.f32 %v1592, %v1665
  %1667 = vdwg.mxu0
  %1668 = vmatpush.bf16.msra.mxu0 0
  %1669 = vmatpush.bf16.msra.mxu0 0
  %1670 = vmatpush.bf16.msra.mxu0 0
  %1671 = vmatpush.bf16.msra.mxu0 0
  %1672 = vmatpush.bf16.msra.mxu0 %v1049
  %1673 = vmatpush.bf16.msra.mxu0 %v1048
  %1674 = vmatpush.bf16.msra.mxu0 %v1047
  %1675 = vmatpush.bf16.msra.mxu0 %v1046
  %1676 = vmatmul.bf16.gmra.mxu0 %v1112
  %v1677 = vpop.f32.mrf.mxu0
  %v1678 = vadd.f32 %v1604, %v1677
  %v1679 = vpop.f32.mrf.mxu0
  %v1680 = vadd.f32 %v1606, %v1679
  %1681 = vmatmul.bf16.gmra.mxu0 %v1115
  %v1682 = vpop.f32.mrf.mxu0
  %v1683 = vadd.f32 %v1609, %v1682
  %v1684 = vpop.f32.mrf.mxu0
  %v1685 = vadd.f32 %v1611, %v1684
  %1686 = vmatmul.bf16.gmra.mxu0 %v1118
  %v1687 = vpop.f32.mrf.mxu0
  %v1688 = vadd.f32 %v1614, %v1687
  %v1689 = vpop.f32.mrf.mxu0
  %v1690 = vadd.f32 %v1616, %v1689
  %1691 = vmatmul.bf16.gmra.mxu0 %v1121
  %v1692 = vpop.f32.mrf.mxu0
  %v1693 = vadd.f32 %v1619, %v1692
  %v1694 = vpop.f32.mrf.mxu0
  %v1695 = vadd.f32 %v1621, %v1694
  %1696 = vmatmul.bf16.gmra.mxu0 %v1124
  %v1697 = vpop.f32.mrf.mxu0
  %v1698 = vadd.f32 %v1624, %v1697
  %v1699 = vpop.f32.mrf.mxu0
  %v1700 = vadd.f32 %v1626, %v1699
  %1701 = vmatmul.bf16.gmra.mxu0 %v1127
  %v1702 = vpop.f32.mrf.mxu0
  %v1703 = vadd.f32 %v1629, %v1702
  %v1704 = vpop.f32.mrf.mxu0
  %v1705 = vadd.f32 %v1631, %v1704
  %1706 = vmatmul.bf16.gmra.mxu0 %v1130
  %v1707 = vpop.f32.mrf.mxu0
  %v1708 = vadd.f32 %v1634, %v1707
  %v1709 = vpop.f32.mrf.mxu0
  %v1710 = vadd.f32 %v1636, %v1709
  %1711 = vmatmul.bf16.gmra.mxu0 %v1133
  %v1712 = vpop.f32.mrf.mxu0
  %v1713 = vadd.f32 %v1639, %v1712
  %v1714 = vpop.f32.mrf.mxu0
  %v1715 = vadd.f32 %v1641, %v1714
  %1716 = vmatmul.bf16.gmra.mxu0 %v1136
  %v1717 = vpop.f32.mrf.mxu0
  %v1718 = vadd.f32 %v1644, %v1717
  %v1719 = vpop.f32.mrf.mxu0
  %v1720 = vadd.f32 %v1646, %v1719
  %1721 = vmatmul.bf16.gmra.mxu0 %v1139
  %v1722 = vpop.f32.mrf.mxu0
  %v1723 = vadd.f32 %v1649, %v1722
  %v1724 = vpop.f32.mrf.mxu0
  %v1725 = vadd.f32 %v1651, %v1724
  %1726 = vmatmul.bf16.gmra.mxu0 %v1142
  %v1727 = vpop.f32.mrf.mxu0
  %v1728 = vadd.f32 %v1654, %v1727
  %v1729 = vpop.f32.mrf.mxu0
  %v1730 = vadd.f32 %v1656, %v1729
  %1731 = vmatmul.bf16.gmra.mxu0 %v1145
  %v1732 = vpop.f32.mrf.mxu0
  %v1733 = vadd.f32 %v1659, %v1732
  %v1734 = vpop.f32.mrf.mxu0
  %v1735 = vadd.f32 %v1661, %v1734
  %1736 = vmatmul.bf16.gmra.mxu0 %v1148
  %v1737 = vpop.f32.mrf.mxu0
  %v1738 = vadd.f32 %v1664, %v1737
  %v1739 = vpop.f32.mrf.mxu0
  %v1740 = vadd.f32 %v1666, %v1739
  %1741 = vdwg.mxu0
  %v1742 = vmax.f32 %v1678, 0.0
  %v1743 = vmax.f32 %v1680, 0.0
  %v1744 = vmax.f32 %v1683, 0.0
  %v1745 = vmax.f32 %v1685, 0.0
  %v1746 = vmax.f32 %v1688, 0.0
  %v1747 = vmax.f32 %v1690, 0.0
  %v1748 = vmax.f32 %v1693, 0.0
  %v1749 = vmax.f32 %v1695, 0.0
  %v1750 = vmax.f32 %v1698, 0.0
  %v1751 = vmax.f32 %v1700, 0.0
  %v1752 = vmax.f32 %v1703, 0.0
  %v1753 = vmax.f32 %v1705, 0.0
  %v1754 = vmax.f32 %v1708, 0.0
  %v1755 = vmax.f32 %v1710, 0.0
  %v1756 = vmax.f32 %v1713, 0.0
  %v1757 = vmax.f32 %v1715, 0.0
  %v1758 = vmax.f32 %v1718, 0.0
  %v1759 = vmax.f32 %v1720, 0.0
  %v1760 = vmax.f32 %v1723, 0.0
  %v1761 = vmax.f32 %v1725, 0.0
  %v1762 = vmax.f32 %v1728, 0.0
  %v1763 = vmax.f32 %v1730, 0.0
  %v1764 = vmax.f32 %v1733, 0.0
  %v1765 = vmax.f32 %v1735, 0.0
  %v1766 = vmax.f32 %v1738, 0.0
  %v1767 = vmax.f32 %v1740, 0.0
  %v1768 = vpack.c.bf16 %v1742, %v1742
  %v1769 = vpack.c.bf16 %v1743, %v1743
  %v1770 = vpack.c.bf16 %v1744, %v1744
  %v1771 = vpack.c.bf16 %v1745, %v1745
  %v1772 = vpack.c.bf16 %v1746, %v1746
  %v1773 = vpack.c.bf16 %v1747, %v1747
  %v1774 = vpack.c.bf16 %v1748, %v1748
  %v1775 = vpack.c.bf16 %v1749, %v1749
  %v1776 = vpack.c.bf16 %v1750, %v1750
  %v1777 = vpack.c.bf16 %v1751, %v1751
  %v1778 = vpack.c.bf16 %v1752, %v1752
  %v1779 = vpack.c.bf16 %v1753, %v1753
  %v1780 = vpack.c.bf16 %v1754, %v1754
  %v1781 = vpack.c.bf16 %v1755, %v1755
  %v1782 = vpack.c.bf16 %v1756, %v1756
  %v1783 = vpack.c.bf16 %v1757, %v1757
  %v1784 = vpack.c.bf16 %v1758, %v1758
  %v1785 = vpack.c.bf16 %v1759, %v1759
  %v1786 = vpack.c.bf16 %v1760, %v1760
  %v1787 = vpack.c.bf16 %v1761, %v1761
  %v1788 = vpack.c.bf16 %v1762, %v1762
  %v1789 = vpack.c.bf16 %v1763, %v1763
  %v1790 = vpack.c.bf16 %v1764, %v1764
  %v1791 = vpack.c.bf16 %v1765, %v1765
  %v1792 = vpack.c.bf16 %v1766, %v1766
  %v1793 = vpack.c.bf16 %v1767, %v1767
  %1794 = vst [vmem:[%s3] sm:$0xf] %v1768
  %1795 = vst [vmem:[%s3 + $0x4] sm:$0xf] %v1769
  %1796 = vst [vmem:[%s3 + $0x8] sm:$0xf] %v1770
  %1797 = vst [vmem:[%s3 + $0xc] sm:$0xf] %v1771
  %1798 = vst [vmem:[%s3 + $0x10] sm:$0xf] %v1772
  %1799 = vst [vmem:[%s3 + $0x14] sm:$0xf] %v1773
  %1800 = vst [vmem:[%s3 + $0x18] sm:$0xf] %v1774
  %1801 = vst [vmem:[%s3 + $0x1c] sm:$0xf] %v1775
  %1802 = vst [vmem:[%s3 + $0x20] sm:$0xf] %v1776
  %1803 = vst [vmem:[%s3 + $0x24] sm:$0xf] %v1777
  %1804 = vst [vmem:[%s3 + $0x28] sm:$0xf] %v1778
  %1805 = vst [vmem:[%s3 + $0x2c] sm:$0xf] %v1779
  %1806 = vst [vmem:[%s3 + $0x30] sm:$0xf] %v1780
  %1807 = vst [vmem:[%s3 + $0x34] sm:$0xf] %v1781
  %1808 = vst [vmem:[%s3 + $0x38] sm:$0xf] %v1782
  %1809 = vst [vmem:[%s3 + $0x3c] sm:$0xf] %v1783
  %1810 = vst [vmem:[%s3 + $0x40] sm:$0xf] %v1784
  %1811 = vst [vmem:[%s3 + $0x44] sm:$0xf] %v1785
  %1812 = vst [vmem:[%s3 + $0x48] sm:$0xf] %v1786
  %1813 = vst [vmem:[%s3 + $0x4c] sm:$0xf] %v1787
  %1814 = vst [vmem:[%s3 + $0x50] sm:$0xf] %v1788
  %1815 = vst [vmem:[%s3 + $0x54] sm:$0xf] %v1789
  %1816 = vst [vmem:[%s3 + $0x58] sm:$0xf] %v1790
  %1817 = vst [vmem:[%s3 + $0x5c] sm:$0xf] %v1791
  %1818 = vst [vmem:[%s3 + $0x60] sm:$0xf] %v1792
  %1819 = vst [vmem:[%s3 + $0x64] sm:$0xf] %v1793
  // Predicated region
  $region14: #{_lambda_.10} parent=0 // pred_check
    _
  $region15: #{_lambda_.10} parent=0 // pred_check_branch
    %1821 = sbr.rel (0) target = $region17
  $region16: #{_lambda_.10} parent=0 // pred_region
    _
  $region17: #{_lambda_.10} parent=0 // pred_fallthru
    _
  // Predicated region
  $region18: #{_lambda_.10} parent=0 // pred_check
    _
  $region19: #{_lambda_.10} parent=0 // pred_check_branch
    %1823 = sbr.rel (0) target = $region21
  $region20: #{_lambda_.10} parent=0 // pred_region
    _
  $region21: #{_lambda_.10} parent=0 // pred_fallthru
    _

// kernel: reverse.0
$region0: #{reverse.0}
  %s0 = inlined_call_operand.vmem [shape: f32[2,9,31], index: 0, kind: input, shape index: {}]
  %s1 = inlined_call_operand.vmem [shape: f32[2,9,31], index: 1, kind: output, shape index: {}]
  %v2 = vlaneseq
  %v3 = vsub.s32 30, %v2
  %4 = vset.pattern.permute.xlu0 %v3
  $region1: #{reverse.0} parent=0
    #allocation0 [shape = 'u8[16384]{0}', space=vmem, size = 0x4000, scoped, tag = 'operand span for operand 0']
    #allocation1 [shape = 'u8[16384]{0}', space=vmem, size = 0x4000, scoped, tag = 'operand span for operand 1']
    // Predicated region
    $region2: #{reverse.0} parent=1 // pred_check
      _
    $region3: #{reverse.0} parent=1 // pred_check_branch
      %6 = sbr.rel (0) target = $region5
    $region4: #{reverse.0} parent=1 // pred_region
      // Predicated region
      $region6: #{reverse.0} parent=4 // pred_check
        _
      $region7: #{reverse.0} parent=4 // pred_check_branch
        %8 = sbr.rel (0) target = $region9
      $region8: #{reverse.0} parent=4 // pred_region
        // Predicated region
        $region21: #{reverse.0} parent=8 // pred_check
          _
        $region22: #{reverse.0} parent=8 // pred_check_branch
          %30 = sbr.rel (0) target = $region24
        $region23: #{reverse.0} parent=8 // pred_region
          loop: start=0, step=1, limit=1
          $region25: #{reverse.0} parent=23 // loop_pre_header
            _
          $region26: #{reverse.0} parent=23 // loop_header
            %s32 = sphi 0, %s36
            %p33 = scmp.ge.s32.totalorder %s32, 1
            %s37 = sphi %s0, %s0
            %s38 = sphi [#allocation0], [#allocation0]
          $region27: #{reverse.0} parent=23 // loop_header_branch
            %35 = sbr.rel (%p33) target = $region31
          $region28: #{reverse.0} parent=23 // loop_body
            %v39 = vld [vmem:[%s37] sm:$0xff]
            %40 = vst [vmem:[%s38] sm:$0xff] %v39
            %v41 = vld [vmem:[%s37 + $0x8] sm:$0xff]
            %42 = vst [vmem:[%s38 + $0x8] sm:$0xff] %v41
            %v43 = vld [vmem:[%s37 + $0x10] sm:$0xff]
            %44 = vst [vmem:[%s38 + $0x10] sm:$0xff] %v43
            %v45 = vld [vmem:[%s37 + $0x18] sm:$0xff]
            %46 = vst [vmem:[%s38 + $0x18] sm:$0xff] %v45
          $region29: #{reverse.0} parent=23 // loop_footer
            %s36 = sadd.s32 1, %s32
          $region30: #{reverse.0} parent=23 // loop_footer_branch
            %31 = sbr.rel target = $region26
          $region31: #{reverse.0} parent=23 // loop_exit
            _
        $region24: #{reverse.0} parent=8 // pred_fallthru
          _
        // Predicated region
        $region32: #{reverse.0} parent=8 // pred_check
          _
        $region33: #{reverse.0} parent=8 // pred_check_branch
          %48 = sbr.rel target = $region35
        $region34: #{reverse.0} parent=8 // pred_region
          _
        $region35: #{reverse.0} parent=8 // pred_fallthru
          _
      $region9: #{reverse.0} parent=4 // pred_fallthru
        _
      // Predicated region
      $region10: #{reverse.0} parent=4 // pred_check
        _
      $region11: #{reverse.0} parent=4 // pred_check_branch
        %10 = sbr.rel target = $region13
      $region12: #{reverse.0} parent=4 // pred_region
        %s12 = ssub.s32 256, 1
        loop: start=0, step=1, limit=1
        $region14: #{reverse.0} parent=12 // loop_pre_header
          _
        $region15: #{reverse.0} parent=12 // loop_header
          %s14 = sphi 0, %s18
          %p15 = scmp.ge.s32.totalorder %s14, 1
          %s19 = sphi %s0, %s0
          %s20 = sphi [#allocation0], [#allocation0]
        $region16: #{reverse.0} parent=12 // loop_header_branch
          %17 = sbr.rel (%p15) target = $region20
        $region17: #{reverse.0} parent=12 // loop_body
          %v21 = vld [vmem:[%s19] sm:%s12]
          %22 = vst [vmem:[%s20] sm:%s12] %v21
          %v23 = vld [vmem:[%s19 + $0x8] sm:%s12]
          %24 = vst [vmem:[%s20 + $0x8] sm:%s12] %v23
          %v25 = vld [vmem:[%s19 + $0x10] sm:%s12]
          %26 = vst [vmem:[%s20 + $0x10] sm:%s12] %v25
          %v27 = vld [vmem:[%s19 + $0x18] sm:%s12]
          %28 = vst [vmem:[%s20 + $0x18] sm:%s12] %v27
        $region18: #{reverse.0} parent=12 // loop_footer
          %s18 = sadd.s32 1, %s14
        $region19: #{reverse.0} parent=12 // loop_footer_branch
          %13 = sbr.rel target = $region15
        $region20: #{reverse.0} parent=12 // loop_exit
          _
      $region13: #{reverse.0} parent=4 // pred_fallthru
        _
    $region5: #{reverse.0} parent=1 // pred_fallthru
      _
    %49 = vnop
    %v50 = vld [vmem:[#allocation0] sm:$0xff]
    %51 = vperm.xlu0 %4, %v50
    %v52 = vpop.permute.xlu0 %51
    %53 = vst [vmem:[#allocation1] sm:$0xff] %v52
    %s54 = scalar_lea.vmem [#allocation1], 8
    %s55 = scalar_lea.vmem [#allocation0], 8
    %v56 = vld [vmem:[%s55] sm:$0xff]
    %57 = vperm.xlu0 %4, %v56
    %v58 = vpop.permute.xlu0 %57
    %59 = vst [vmem:[%s54] sm:$0xff] %v58
    %s60 = scalar_lea.vmem [#allocation1], 16
    %s61 = scalar_lea.vmem [#allocation0], 16
    %v62 = vld [vmem:[%s61] sm:$0xff]
    %63 = vperm.xlu0 %4, %v62
    %v64 = vpop.permute.xlu0 %63
    %65 = vst [vmem:[%s60] sm:$0xff] %v64
    %s66 = scalar_lea.vmem %s60, 8 [#allocation1]
    %s67 = scalar_lea.vmem %s61, 8 [#allocation0]
    %v68 = vld [vmem:[%s67] sm:$0xff]
    %69 = vperm.xlu0 %4, %v68
    %v70 = vpop.permute.xlu0 %69
    %71 = vst [vmem:[%s66] sm:$0xff] %v70
    // Predicated region
    $region36: #{reverse.0} parent=1 // pred_check
      _
    $region37: #{reverse.0} parent=1 // pred_check_branch
      %73 = sbr.rel (0) target = $region39
    $region38: #{reverse.0} parent=1 // pred_region
      // Predicated region
      $region40: #{reverse.0} parent=38 // pred_check
        _
      $region41: #{reverse.0} parent=38 // pred_check_branch
        %75 = sbr.rel (0) target = $region43
      $region42: #{reverse.0} parent=38 // pred_region
        // Predicated region
        $region55: #{reverse.0} parent=42 // pred_check
          _
        $region56: #{reverse.0} parent=42 // pred_check_branch
          %97 = sbr.rel (0) target = $region58
        $region57: #{reverse.0} parent=42 // pred_region
          loop: start=0, step=1, limit=1
          $region59: #{reverse.0} parent=57 // loop_pre_header
            _
          $region60: #{reverse.0} parent=57 // loop_header
            %s99 = sphi 0, %s103
            %p100 = scmp.ge.s32.totalorder %s99, 1
            %s104 = sphi [#allocation1], [#allocation1]
            %s105 = sphi %s1, %s1
          $region61: #{reverse.0} parent=57 // loop_header_branch
            %102 = sbr.rel (%p100) target = $region65
          $region62: #{reverse.0} parent=57 // loop_body
            %v106 = vld [vmem:[%s104] sm:$0xff]
            %107 = vst [vmem:[%s105] sm:$0xff] %v106
            %v108 = vld [vmem:[%s104 + $0x8] sm:$0xff]
            %109 = vst [vmem:[%s105 + $0x8] sm:$0xff] %v108
            %v110 = vld [vmem:[%s104 + $0x10] sm:$0xff]
            %111 = vst [vmem:[%s105 + $0x10] sm:$0xff] %v110
            %v112 = vld [vmem:[%s104 + $0x18] sm:$0xff]
            %113 = vst [vmem:[%s105 + $0x18] sm:$0xff] %v112
          $region63: #{reverse.0} parent=57 // loop_footer
            %s103 = sadd.s32 1, %s99
          $region64: #{reverse.0} parent=57 // loop_footer_branch
            %98 = sbr.rel target = $region60
          $region65: #{reverse.0} parent=57 // loop_exit
            _
        $region58: #{reverse.0} parent=42 // pred_fallthru
          _
        // Predicated region
        $region66: #{reverse.0} parent=42 // pred_check
          _
        $region67: #{reverse.0} parent=42 // pred_check_branch
          %115 = sbr.rel target = $region69
        $region68: #{reverse.0} parent=42 // pred_region
          _
        $region69: #{reverse.0} parent=42 // pred_fallthru
          _
      $region43: #{reverse.0} parent=38 // pred_fallthru
        _
      // Predicated region
      $region44: #{reverse.0} parent=38 // pred_check
        _
      $region45: #{reverse.0} parent=38 // pred_check_branch
        %77 = sbr.rel target = $region47
      $region46: #{reverse.0} parent=38 // pred_region
        %s79 = ssub.s32 256, 1
        loop: start=0, step=1, limit=1
        $region48: #{reverse.0} parent=46 // loop_pre_header
          _
        $region49: #{reverse.0} parent=46 // loop_header
          %s81 = sphi 0, %s85
          %p82 = scmp.ge.s32.totalorder %s81, 1
          %s86 = sphi [#allocation1], [#allocation1]
          %s87 = sphi %s1, %s1
        $region50: #{reverse.0} parent=46 // loop_header_branch
          %84 = sbr.rel (%p82) target = $region54
        $region51: #{reverse.0} parent=46 // loop_body
          %v88 = vld [vmem:[%s86] sm:%s79]
          %89 = vst [vmem:[%s87] sm:%s79] %v88
          %v90 = vld [vmem:[%s86 + $0x8] sm:%s79]
          %91 = vst [vmem:[%s87 + $0x8] sm:%s79] %v90
          %v92 = vld [vmem:[%s86 + $0x10] sm:%s79]
          %93 = vst [vmem:[%s87 + $0x10] sm:%s79] %v92
          %v94 = vld [vmem:[%s86 + $0x18] sm:%s79]
          %95 = vst [vmem:[%s87 + $0x18] sm:%s79] %v94
        $region52: #{reverse.0} parent=46 // loop_footer
          %s85 = sadd.s32 1, %s81
        $region53: #{reverse.0} parent=46 // loop_footer_branch
          %80 = sbr.rel target = $region49
        $region54: #{reverse.0} parent=46 // loop_exit
          _
      $region47: #{reverse.0} parent=38 // pred_fallthru
        _
    $region39: #{reverse.0} parent=1 // pred_fallthru
      _
    %116 = vnop

// kernel: _lambda_.11
$region0: #{_lambda_.11}
  #allocation0 [shape = 'u32[]', space=smem, size = 0x4, offset = 0x4, fixed_abs, tag = 'smem constant byte address 0x4 - core index']
  #allocation1 [shape = 'u32[72,128]{1,0:T(1,128)}', space=vmem, size = 0x9000, scoped, tag = 'internal scratch']
  %s0 = inlined_call_operand.vmem [shape: bf16[768,192], index: 0, kind: input, shape index: {}]
  %s1 = inlined_call_operand.vmem [shape: bf16[192,128], index: 1, kind: input, shape index: {}]
  %s2 = inlined_call_operand.vmem [shape: f32[1,128], index: 2, kind: input, shape index: {}]
  %s3 = inlined_call_operand.vmem [shape: f32[768,2], index: 3, kind: input, shape index: {}]
  %s4 = inlined_call_operand.vmem [shape: f32[768,128], index: 4, kind: output, shape index: {}]
  %s5 = sld [smem:[#allocation0]]
  $region49: #{_lambda_.11} parent=0
    _
  %s7 = ssub.s32 1, %s5
  %s8 = scalar_select 0, %s7, %s5
  loop: start=0, step=1, limit=5
  $region2: #{_lambda_.11} parent=0 // loop_pre_header
    _
  $region3: #{_lambda_.11} parent=0 // loop_header
    %s10 = sphi 0, %s14
    %p11 = scmp.ge.s32.totalorder %s10, 5
    %s17 = sphi 0, %s29
    %s18 = sphi 0, %s25
    %s19 = sphi 0, %s17
    %s20 = sphi 0, %s18
    %s21 = sphi 0, %s19
    %s22 = sphi 0, %s20
    %s32 = sphi 0, %s34
    %s35 = sphi 0, %s32
    %s36 = sphi 0, %s35
    %s52 = sphi 0, %s36
    %s58 = sphi 0, %s60
    %s61 = sphi 0, %s58
    %s62 = sphi 0, %s61
    %s78 = sphi 0, %s62
    %s84 = sphi 0, %s86
    %s87 = sphi 0, %s84
    %s88 = sphi 0, %s87
    %s104 = sphi 0, %s88
    %s110 = sphi 0, %s112
    %s113 = sphi 0, %s110
    %s114 = sphi 0, %s113
    %s130 = sphi 0, %s114
    %s138 = sphi 0, %s140
    %s141 = sphi 0, %s138
    %s142 = sphi 0, %s141
    %s158 = sphi 0, %s142
  $region4: #{_lambda_.11} parent=0 // loop_header_branch
    %13 = sbr.rel (%p11) target = $region8
  $region5: #{_lambda_.11} parent=0 // loop_body
    %s15 = ssub.s32 %s10, 1
    %s16 = ssub.s32 %s10, 2
    %s23 = sadd.s32 1, %s18
    %p24 = scmp.ge.s32.totalorder %s23, 1
    %s25 = scalar_select %p24, 0, %s23
    %s26 = sadd.s32 1, %s17
    %s27 = scalar_select %p24, %s26, %s17
    %p28 = scmp.ge.s32.totalorder %s27, 3
    %s29 = scalar_select %p28, 0, %s27
    %s30 = ssub.s32 %s17, %s29
    %p31 = scmp.eq.s32.totalorder %s30, 0
    %s33 = sadd.s32 %s32, 1
    %s34 = scalar_select %p31, %s32, %s33
    %p37 = pneg %p31
    %p38 = scmp.eq.s32.totalorder %s10, 2
    %p39 = por %p37, %p38
    %p40 = scmp.ne.s32.totalorder %s32, %s35
    %p41 = scmp.eq.s32.totalorder %s10, 0
    %p42 = por %p40, %p41
    %p43 = scmp.ne.s32.totalorder %s32, %s35
    %p44 = scmp.eq.s32.totalorder %s15, 2
    %p45 = por %p43, %p44
    %p46 = scmp.ne.s32.totalorder %s35, %s36
    %p47 = scmp.eq.s32.totalorder %s15, 0
    %p48 = por %p46, %p47
    %p49 = scmp.ne.s32.totalorder %s35, %s36
    %p50 = scmp.eq.s32.totalorder %s16, 2
    %p51 = por %p49, %p50
    %p53 = scmp.ne.s32.totalorder %s36, %s52
    %p54 = scmp.eq.s32.totalorder %s16, 0
    %p55 = por %p53, %p54
    %s56 = ssub.s32 %s18, %s25
    %p57 = scmp.eq.s32.totalorder %s56, 0
    %s59 = sadd.s32 %s58, 1
    %s60 = scalar_select %p57, %s58, %s59
    %p63 = pneg %p57
    %p64 = scmp.eq.s32.totalorder %s10, 2
    %p65 = por %p63, %p64
    %p66 = scmp.ne.s32.totalorder %s58, %s61
    %p67 = scmp.eq.s32.totalorder %s10, 0
    %p68 = por %p66, %p67
    %p69 = scmp.ne.s32.totalorder %s58, %s61
    %p70 = scmp.eq.s32.totalorder %s15, 2
    %p71 = por %p69, %p70
    %p72 = scmp.ne.s32.totalorder %s61, %s62
    %p73 = scmp.eq.s32.totalorder %s15, 0
    %p74 = por %p72, %p73
    %p75 = scmp.ne.s32.totalorder %s61, %s62
    %p76 = scmp.eq.s32.totalorder %s16, 2
    %p77 = por %p75, %p76
    %p79 = scmp.ne.s32.totalorder %s62, %s78
    %p80 = scmp.eq.s32.totalorder %s16, 0
    %p81 = por %p79, %p80
    %s82 = ssub.s32 %s18, %s25
    %p83 = scmp.eq.s32.totalorder %s82, 0
    %s85 = sadd.s32 %s84, 1
    %s86 = scalar_select %p83, %s84, %s85
    %p89 = pneg %p83
    %p90 = scmp.eq.s32.totalorder %s10, 2
    %p91 = por %p89, %p90
    %p92 = scmp.ne.s32.totalorder %s84, %s87
    %p93 = scmp.eq.s32.totalorder %s10, 0
    %p94 = por %p92, %p93
    %p95 = scmp.ne.s32.totalorder %s84, %s87
    %p96 = scmp.eq.s32.totalorder %s15, 2
    %p97 = por %p95, %p96
    %p98 = scmp.ne.s32.totalorder %s87, %s88
    %p99 = scmp.eq.s32.totalorder %s15, 0
    %p100 = por %p98, %p99
    %p101 = scmp.ne.s32.totalorder %s87, %s88
    %p102 = scmp.eq.s32.totalorder %s16, 2
    %p103 = por %p101, %p102
    %p105 = scmp.ne.s32.totalorder %s88, %s104
    %p106 = scmp.eq.s32.totalorder %s16, 0
    %p107 = por %p105, %p106
    %s108 = ssub.s32 %s17, %s29
    %p109 = scmp.eq.s32.totalorder %s108, 0
    %s111 = sadd.s32 %s110, 1
    %s112 = scalar_select %p109, %s110, %s111
    %p115 = pneg %p109
    %p116 = scmp.eq.s32.totalorder %s10, 2
    %p117 = por %p115, %p116
    %p118 = scmp.ne.s32.totalorder %s110, %s113
    %p119 = scmp.eq.s32.totalorder %s10, 0
    %p120 = por %p118, %p119
    %p121 = scmp.ne.s32.totalorder %s110, %s113
    %p122 = scmp.eq.s32.totalorder %s15, 2
    %p123 = por %p121, %p122
    %p124 = scmp.ne.s32.totalorder %s113, %s114
    %p125 = scmp.eq.s32.totalorder %s15, 0
    %p126 = por %p124, %p125
    %p127 = scmp.ne.s32.totalorder %s113, %s114
    %p128 = scmp.eq.s32.totalorder %s16, 2
    %p129 = por %p127, %p128
    %p131 = scmp.ne.s32.totalorder %s114, %s130
    %p132 = scmp.eq.s32.totalorder %s16, 0
    %p133 = por %p131, %p132
    %s134 = ssub.s32 %s17, %s29
    %s135 = ssub.s32 %s18, %s25
    %s136 = sor.u32 %s134, %s135
    %p137 = scmp.eq.s32.totalorder %s136, 0
    %s139 = sadd.s32 %s138, 1
    %s140 = scalar_select %p137, %s138, %s139
    %p143 = pneg %p137
    %p144 = scmp.eq.s32.totalorder %s10, 2
    %p145 = por %p143, %p144
    %p146 = scmp.ne.s32.totalorder %s138, %s141
    %p147 = scmp.eq.s32.totalorder %s10, 0
    %p148 = por %p146, %p147
    %p149 = scmp.ne.s32.totalorder %s138, %s141
    %p150 = scmp.eq.s32.totalorder %s15, 2
    %p151 = por %p149, %p150
    %p152 = scmp.ne.s32.totalorder %s141, %s142
    %p153 = scmp.eq.s32.totalorder %s15, 0
    %p154 = por %p152, %p153
    %p155 = scmp.ne.s32.totalorder %s141, %s142
    %p156 = scmp.eq.s32.totalorder %s16, 2
    %p157 = por %p155, %p156
    %p159 = scmp.ne.s32.totalorder %s142, %s158
    %p160 = scmp.eq.s32.totalorder %s16, 0
    %p161 = por %p159, %p160
    %p162 = scmp.le.s32.totalorder 1, %s10
    %p163 = scmp.lt.s32.totalorder %s10, 4
    %p164 = pnand %p162, %p163
    %p165 = pneg %p164
    // Predicated region
    $region9: #{_lambda_.11} parent=5 // pred_check
      _
    $region10: #{_lambda_.11} parent=5 // pred_check_branch
      %167 = sbr.rel (%p164) target = $region12
    $region11: #{_lambda_.11} parent=5 // pred_region
      %s168 = ssub.s32 %s10, 1
      // Predicated region
      $region13: #{_lambda_.11} parent=11 // pred_check
        %p169 = pneg %p74
      $region14: #{_lambda_.11} parent=11 // pred_check_branch
        %171 = sbr.rel (%p169) target = $region16
      $region15: #{_lambda_.11} parent=11 // pred_region
        %p172 = scmp.lt.s32.totalorder %s20, 0
        %s173 = scalar_select %p172, %s20, 0
        %s174 = smul.addr %s173, 4
        %s175 = scalar_lea.vmem %s1, %s174
      $region16: #{_lambda_.11} parent=11 // pred_fallthru
        _
      // Predicated region
      $region17: #{_lambda_.11} parent=11 // pred_check
        %p176 = pneg %p100
      $region18: #{_lambda_.11} parent=11 // pred_check_branch
        %178 = sbr.rel (%p176) target = $region20
      $region19: #{_lambda_.11} parent=11 // pred_region
        %p179 = scmp.lt.s32.totalorder %s20, 0
        %s180 = scalar_select %p179, %s20, 0
        %s181 = scalar_lea.vmem %s2, %s180
      $region20: #{_lambda_.11} parent=11 // pred_fallthru
        _
    $region12: #{_lambda_.11} parent=5 // pred_fallthru
      _
    %p182 = scmp.lt.s32.totalorder %s10, 3
    // Predicated region
    $region21: #{_lambda_.11} parent=5 // pred_check
      %p183 = pneg %p182
    $region22: #{_lambda_.11} parent=5 // pred_check_branch
      %185 = sbr.rel (%p183) target = $region24
    $region23: #{_lambda_.11} parent=5 // pred_region
      // Predicated region
      $region25: #{_lambda_.11} parent=23 // pred_check
        %p186 = pneg %p42
      $region26: #{_lambda_.11} parent=23 // pred_check_branch
        %188 = sbr.rel (%p186) target = $region28
      $region27: #{_lambda_.11} parent=23 // pred_region
        %s189 = smul.u32 32, %s17
        %p190 = scmp.lt.s32.totalorder %s189, 95
        %s191 = scalar_select %p190, %s189, 95
        %s192 = smul.addr %s191, 2
        %s193 = smul.addr %s192, 4
        %s194 = scalar_lea.vmem %s0, %s193
        %s195 = smul.u32 32, %s17
      $region28: #{_lambda_.11} parent=23 // pred_fallthru
        _
      // Predicated region
      $region29: #{_lambda_.11} parent=23 // pred_check
        %p196 = pneg %p120
      $region30: #{_lambda_.11} parent=23 // pred_check_branch
        %198 = sbr.rel (%p196) target = $region32
      $region31: #{_lambda_.11} parent=23 // pred_region
        %s199 = smul.u32 32, %s17
        %p200 = scmp.lt.s32.totalorder %s199, 95
        %s201 = scalar_select %p200, %s199, 95
        %s202 = smul.addr %s201, 8
        %s203 = scalar_lea.vmem %s3, %s202
        %s204 = smul.u32 32, %s17
      $region32: #{_lambda_.11} parent=23 // pred_fallthru
        _
    $region24: #{_lambda_.11} parent=5 // pred_fallthru
      _
    %p205 = scmp.le.s32.totalorder 1, %s10
    %p206 = scmp.lt.s32.totalorder %s10, 4
    %p207 = pnand %p205, %p206
    %p208 = pneg %p207
    // Predicated region
    $region33: #{_lambda_.11} parent=5 // pred_check
      _
    $region34: #{_lambda_.11} parent=5 // pred_check_branch
      %210 = sbr.rel (%p207) target = $region36
    $region35: #{_lambda_.11} parent=5 // pred_region
      %s211 = ssub.s32 %s10, 1
      %s212 = smul.u32 32, %s19
      %p213 = scmp.lt.s32.totalorder %s212, 95
      %s214 = scalar_select %p213, %s212, 95
      %s215 = smul.addr %s214, 2
      %s216 = smul.addr %s215, 4
      %s217 = scalar_lea.vmem %s0, %s216
      %p218 = pneg %p48
      %p219 = pneg %p45
      %p220 = scmp.lt.s32.totalorder %s20, 0
      %s221 = scalar_select %p220, %s20, 0
      %s222 = smul.addr %s221, 4
      %s223 = scalar_lea.vmem %s1, %s222
      %p224 = pneg %p74
      %p225 = pneg %p71
      %p226 = scmp.lt.s32.totalorder %s20, 0
      %s227 = scalar_select %p226, %s20, 0
      %s228 = scalar_lea.vmem %s2, %s227
      %p229 = pneg %p100
      %p230 = pneg %p97
      %s231 = smul.u32 32, %s19
      %p232 = scmp.lt.s32.totalorder %s231, 95
      %s233 = scalar_select %p232, %s231, 95
      %s234 = smul.addr %s233, 8
      %s235 = scalar_lea.vmem %s3, %s234
      %p236 = pneg %p126
      %p237 = pneg %p123
      %p238 = pneg %p154
      %p239 = pneg %p151
      %s240 = smul.u32 32, %s19
      %p241 = scmp.lt.s32.totalorder %s240, 95
      %s242 = scalar_select %p241, %s240, 95
      %p243 = scmp.lt.s32.totalorder %s20, 0
      %s244 = scalar_select %p243, %s20, 0
      %s245 = sadd.s32 %s244, %s242
      %s246 = smul.addr %s245, 8
      %s247 = scalar_lea.vmem %s4, %s246
      %s248 = smul.u32 32, %s19
      %p249 = scmp.lt.s32.totalorder %s248, 95
      %s250 = scalar_select %p249, %s248, 95
      %s251 = smul.addr %s250, 2
      %s252 = smul.addr %s251, 4
      %s253 = scalar_lea.vmem %s0, %s252
      %s254 = smul.u32 32, %s19
      %p255 = scmp.lt.s32.totalorder %s20, 0
      %s256 = scalar_select %p255, %s20, 0
      %s257 = smul.addr %s256, 4
      %s258 = scalar_lea.vmem %s1, %s257
      %p259 = scmp.lt.s32.totalorder %s20, 0
      %s260 = scalar_select %p259, %s20, 0
      %s261 = scalar_lea.vmem %s2, %s260
      %s262 = smul.u32 32, %s19
      %p263 = scmp.lt.s32.totalorder %s262, 95
      %s264 = scalar_select %p263, %s262, 95
      %s265 = smul.addr %s264, 8
      %s266 = scalar_lea.vmem %s3, %s265
      %s267 = smul.u32 32, %s19
      %s268 = smul.u32 32, %s19
      %p269 = scmp.lt.s32.totalorder %s268, 95
      %s270 = scalar_select %p269, %s268, 95
      %p271 = scmp.lt.s32.totalorder %s20, 0
      %s272 = scalar_select %p271, %s20, 0
      %s273 = sadd.s32 %s272, %s270
      %s274 = smul.addr %s273, 8
      %s275 = scalar_lea.vmem %s4, %s274
      %s276 = smul.u32 32, %s19
      %v278 = vld [vmem:[%s253] sm:$0xff]
      %v279 = vld [vmem:[%s253 + $0x8] sm:$0xff]
      %v280 = vld [vmem:[%s253 + $0x10] sm:$0xff]
      %v281 = vld [vmem:[%s253 + $0x18] sm:$0xff]
      %v282 = vld [vmem:[%s253 + $0x20] sm:$0xff]
      %v283 = vld [vmem:[%s253 + $0x28] sm:$0xff]
      %v284 = vld [vmem:[%s253 + $0x30] sm:$0xff]
      %v285 = vld [vmem:[%s253 + $0x38] sm:$0xff]
      %v286 = vld [vmem:[%s253 + $0x40] sm:$0xff]
      %v287 = vld [vmem:[%s253 + $0x48] sm:$0xff]
      %v288 = vld [vmem:[%s253 + $0x50] sm:$0xff]
      %v289 = vld [vmem:[%s253 + $0x58] sm:$0xff]
      %v290 = vld [vmem:[%s253 + $0x60] sm:$0xff]
      %v291 = vld [vmem:[%s253 + $0x68] sm:$0xff]
      %v292 = vld [vmem:[%s253 + $0x70] sm:$0xff]
      %v293 = vld [vmem:[%s253 + $0x78] sm:$0xff]
      %v294 = vld [vmem:[%s253 + $0x80] sm:$0xff]
      %v295 = vld [vmem:[%s253 + $0x88] sm:$0xff]
      %v296 = vld [vmem:[%s253 + $0x90] sm:$0xff]
      %v297 = vld [vmem:[%s253 + $0x98] sm:$0xff]
      %v298 = vld [vmem:[%s253 + $0xa0] sm:$0xff]
      %v299 = vld [vmem:[%s253 + $0xa8] sm:$0xff]
      %v300 = vld [vmem:[%s253 + $0xb0] sm:$0xff]
      %v301 = vld [vmem:[%s253 + $0xb8] sm:$0xff]
      %v302 = vld [vmem:[%s253 + $0xc0] sm:$0xff]
      %v303 = vld [vmem:[%s253 + $0xc8] sm:$0xff]
      %v304 = vld [vmem:[%s253 + $0xd0] sm:$0xff]
      %v305 = vld [vmem:[%s253 + $0xd8] sm:$0xff]
      %v306 = vld [vmem:[%s253 + $0xe0] sm:$0xff]
      %v307 = vld [vmem:[%s253 + $0xe8] sm:$0xff]
      %v308 = vld [vmem:[%s253 + $0xf0] sm:$0xff]
      %v309 = vld [vmem:[%s253 + $0xf8] sm:$0xff]
      %v310 = vld [vmem:[%s258] sm:$0xf]
      %v311 = vld [vmem:[%s258 + $0x4] sm:$0xf]
      %v312 = vld [vmem:[%s258 + $0x8] sm:$0xf]
      %v313 = vld [vmem:[%s258 + $0xc] sm:$0xf]
      %v314 = vld [vmem:[%s258 + $0x10] sm:$0xf]
      %v315 = vld [vmem:[%s258 + $0x14] sm:$0xf]
      %v316 = vld [vmem:[%s258 + $0x18] sm:$0xf]
      %v317 = vld [vmem:[%s258 + $0x1c] sm:$0xf]
      %v318 = vld [vmem:[%s258 + $0x20] sm:$0xf]
      %v319 = vld [vmem:[%s258 + $0x24] sm:$0xf]
      %v320 = vld [vmem:[%s258 + $0x28] sm:$0xf]
      %v321 = vld [vmem:[%s258 + $0x2c] sm:$0xf]
      %v322 = vld [vmem:[%s258 + $0x30] sm:$0xf]
      %v323 = vld [vmem:[%s258 + $0x34] sm:$0xf]
      %v324 = vld [vmem:[%s258 + $0x38] sm:$0xf]
      %v325 = vld [vmem:[%s258 + $0x3c] sm:$0xf]
      %v326 = vld [vmem:[%s258 + $0x40] sm:$0xf]
      %v327 = vld [vmem:[%s258 + $0x44] sm:$0xf]
      %v328 = vld [vmem:[%s258 + $0x48] sm:$0xf]
      %v329 = vld [vmem:[%s258 + $0x4c] sm:$0xf]
      %v330 = vld [vmem:[%s258 + $0x50] sm:$0xf]
      %v331 = vld [vmem:[%s258 + $0x54] sm:$0xf]
      %v332 = vld [vmem:[%s258 + $0x58] sm:$0xf]
      %v333 = vld [vmem:[%s258 + $0x5c] sm:$0xf]
      %v334 = vld [vmem:[%s261] sm:$0x1]
      %v336 = vperm.slane %v334, 0
      %v370 = vunpack.c.l.b16 %v278
      %v371 = vunpack.c.h.b16 %v278
      %v372 = vunpack.c.l.b16 %v279
      %v373 = vunpack.c.h.b16 %v279
      %v374 = vunpack.c.l.b16 %v280
      %v375 = vunpack.c.h.b16 %v280
      %v376 = vunpack.c.l.b16 %v281
      %v377 = vunpack.c.h.b16 %v281
      %v378 = vunpack.c.l.b16 %v282
      %v379 = vunpack.c.h.b16 %v282
      %v380 = vunpack.c.l.b16 %v283
      %v381 = vunpack.c.h.b16 %v283
      %v382 = vunpack.c.l.b16 %v284
      %v383 = vunpack.c.h.b16 %v284
      %v384 = vunpack.c.l.b16 %v285
      %v385 = vunpack.c.h.b16 %v285
      %v386 = vunpack.c.l.b16 %v286
      %v387 = vunpack.c.h.b16 %v286
      %v388 = vunpack.c.l.b16 %v287
      %v389 = vunpack.c.h.b16 %v287
      %v390 = vunpack.c.l.b16 %v288
      %v391 = vunpack.c.h.b16 %v288
      %v392 = vunpack.c.l.b16 %v289
      %v393 = vunpack.c.h.b16 %v289
      %v394 = vunpack.c.l.b16 %v290
      %v395 = vunpack.c.h.b16 %v290
      %v396 = vunpack.c.l.b16 %v291
      %v397 = vunpack.c.h.b16 %v291
      %v398 = vunpack.c.l.b16 %v292
      %v399 = vunpack.c.h.b16 %v292
      %v400 = vunpack.c.l.b16 %v293
      %v401 = vunpack.c.h.b16 %v293
      %v402 = vunpack.c.l.b16 %v294
      %v403 = vunpack.c.h.b16 %v294
      %v404 = vunpack.c.l.b16 %v295
      %v405 = vunpack.c.h.b16 %v295
      %v406 = vunpack.c.l.b16 %v296
      %v407 = vunpack.c.h.b16 %v296
      %v408 = vunpack.c.l.b16 %v297
      %v409 = vunpack.c.h.b16 %v297
      %v410 = vunpack.c.l.b16 %v298
      %v411 = vunpack.c.h.b16 %v298
      %v412 = vunpack.c.l.b16 %v299
      %v413 = vunpack.c.h.b16 %v299
      %v414 = vunpack.c.l.b16 %v300
      %v415 = vunpack.c.h.b16 %v300
      %v416 = vunpack.c.l.b16 %v301
      %v417 = vunpack.c.h.b16 %v301
      %v418 = vunpack.c.l.b16 %v302
      %v419 = vunpack.c.h.b16 %v302
      %v420 = vunpack.c.l.b16 %v303
      %v421 = vunpack.c.h.b16 %v303
      %v422 = vunpack.c.l.b16 %v304
      %v423 = vunpack.c.h.b16 %v304
      %v424 = vunpack.c.l.b16 %v305
      %v425 = vunpack.c.h.b16 %v305
      %v426 = vunpack.c.l.b16 %v306
      %v427 = vunpack.c.h.b16 %v306
      %v428 = vunpack.c.l.b16 %v307
      %v429 = vunpack.c.h.b16 %v307
      %v430 = vunpack.c.l.b16 %v308
      %v431 = vunpack.c.h.b16 %v308
      %v432 = vunpack.c.l.b16 %v309
      %v433 = vunpack.c.h.b16 %v309
      %v434 = vpack.c.b16 %v372, %v370
      %v435 = vpack.c.b16 %v373, %v371
      %v436 = vpack.c.b16 %v376, %v374
      %v437 = vpack.c.b16 %v377, %v375
      %v438 = vpack.c.b16 %v380, %v378
      %v439 = vpack.c.b16 %v381, %v379
      %v440 = vpack.c.b16 %v384, %v382
      %v441 = vpack.c.b16 %v385, %v383
      %v442 = vpack.c.b16 %v388, %v386
      %v443 = vpack.c.b16 %v389, %v387
      %v444 = vpack.c.b16 %v392, %v390
      %v445 = vpack.c.b16 %v393, %v391
      %v446 = vpack.c.b16 %v396, %v394
      %v447 = vpack.c.b16 %v397, %v395
      %v448 = vpack.c.b16 %v400, %v398
      %v449 = vpack.c.b16 %v401, %v399
      %v450 = vpack.c.b16 %v404, %v402
      %v451 = vpack.c.b16 %v405, %v403
      %v452 = vpack.c.b16 %v408, %v406
      %v453 = vpack.c.b16 %v409, %v407
      %v454 = vpack.c.b16 %v412, %v410
      %v455 = vpack.c.b16 %v413, %v411
      %v456 = vpack.c.b16 %v416, %v414
      %v457 = vpack.c.b16 %v417, %v415
      %v458 = vpack.c.b16 %v420, %v418
      %v459 = vpack.c.b16 %v421, %v419
      %v460 = vpack.c.b16 %v424, %v422
      %v461 = vpack.c.b16 %v425, %v423
      %v462 = vpack.c.b16 %v428, %v426
      %v463 = vpack.c.b16 %v429, %v427
      %v464 = vpack.c.b16 %v432, %v430
      %v465 = vpack.c.b16 %v433, %v431
      %v506 = vunpack.c.l.b16 %v310
      %v507 = vunpack.c.l.b16 %v311
      %v508 = vunpack.c.l.b16 %v312
      %v509 = vunpack.c.l.b16 %v313
      %v510 = vunpack.c.l.b16 %v314
      %v511 = vunpack.c.l.b16 %v315
      %v512 = vunpack.c.l.b16 %v316
      %v513 = vunpack.c.l.b16 %v317
      %v514 = vunpack.c.l.b16 %v318
      %v515 = vunpack.c.l.b16 %v319
      %v516 = vunpack.c.l.b16 %v320
      %v517 = vunpack.c.l.b16 %v321
      %v518 = vunpack.c.l.b16 %v322
      %v519 = vunpack.c.l.b16 %v323
      %v520 = vunpack.c.l.b16 %v324
      %v521 = vunpack.c.l.b16 %v325
      %v522 = vunpack.c.l.b16 %v326
      %v523 = vunpack.c.l.b16 %v327
      %v524 = vunpack.c.l.b16 %v328
      %v525 = vunpack.c.l.b16 %v329
      %v526 = vunpack.c.l.b16 %v330
      %v527 = vunpack.c.l.b16 %v331
      %v528 = vunpack.c.l.b16 %v332
      %v529 = vunpack.c.l.b16 %v333
      %v530 = vpack.c.b16 %v507, %v506
      %v531 = vpack.c.b16 %v509, %v508
      %v532 = vpack.c.b16 %v511, %v510
      %v533 = vpack.c.b16 %v513, %v512
      %v534 = vpack.c.b16 %v515, %v514
      %v535 = vpack.c.b16 %v517, %v516
      %v536 = vpack.c.b16 %v519, %v518
      %v537 = vpack.c.b16 %v521, %v520
      %v538 = vpack.c.b16 %v523, %v522
      %v539 = vpack.c.b16 %v525, %v524
      %v540 = vpack.c.b16 %v527, %v526
      %v541 = vpack.c.b16 %v529, %v528
      %vm554 = vcmask 523264
      %v556 = vsel %vm554, %v435, 0
      %v559 = vsel %vm554, %v437, 0
      %v562 = vsel %vm554, %v439, 0
      %v565 = vsel %vm554, %v441, 0
      %v568 = vsel %vm554, %v443, 0
      %v571 = vsel %vm554, %v445, 0
      %v574 = vsel %vm554, %v447, 0
      %v577 = vsel %vm554, %v449, 0
      %v580 = vsel %vm554, %v451, 0
      %v583 = vsel %vm554, %v453, 0
      %v586 = vsel %vm554, %v455, 0
      %v589 = vsel %vm554, %v457, 0
      %v592 = vsel %vm554, %v459, 0
      %v595 = vsel %vm554, %v461, 0
      %v598 = vsel %vm554, %v463, 0
      %v601 = vsel %vm554, %v465, 0
      %603 = vmatpush.bf16.msra.mxu0 %v537
      %604 = vmatpush.bf16.msra.mxu0 %v536
      %605 = vmatpush.bf16.msra.mxu0 %v535
      %606 = vmatpush.bf16.msra.mxu0 %v534
      %607 = vmatpush.bf16.msra.mxu0 %v533
      %608 = vmatpush.bf16.msra.mxu0 %v532
      %609 = vmatpush.bf16.msra.mxu0 %v531
      %610 = vmatpush.bf16.msra.mxu0 %v530
      %611 = vmatmul.bf16.gmra.mxu0 %v434
      %v612 = vpop.f32.mrf.mxu0
      %v613 = vadd.f32 %v336, %v612
      %v614 = vpop.f32.mrf.mxu0
      %v615 = vadd.f32 %v336, %v614
      %616 = vmatmul.bf16.gmra.mxu0 %v436
      %v617 = vpop.f32.mrf.mxu0
      %v618 = vadd.f32 %v336, %v617
      %v619 = vpop.f32.mrf.mxu0
      %v620 = vadd.f32 %v336, %v619
      %621 = vmatmul.bf16.gmra.mxu0 %v438
      %v622 = vpop.f32.mrf.mxu0
      %v623 = vadd.f32 %v336, %v622
      %v624 = vpop.f32.mrf.mxu0
      %v625 = vadd.f32 %v336, %v624
      %626 = vmatmul.bf16.gmra.mxu0 %v440
      %v627 = vpop.f32.mrf.mxu0
      %v628 = vadd.f32 %v336, %v627
      %v629 = vpop.f32.mrf.mxu0
      %v630 = vadd.f32 %v336, %v629
      %631 = vmatmul.bf16.gmra.mxu0 %v442
      %v632 = vpop.f32.mrf.mxu0
      %v633 = vadd.f32 %v336, %v632
      %v634 = vpop.f32.mrf.mxu0
      %v635 = vadd.f32 %v336, %v634
      %636 = vmatmul.bf16.gmra.mxu0 %v444
      %v637 = vpop.f32.mrf.mxu0
      %v638 = vadd.f32 %v336, %v637
      %v639 = vpop.f32.mrf.mxu0
      %v640 = vadd.f32 %v336, %v639
      %641 = vmatmul.bf16.gmra.mxu0 %v446
      %v642 = vpop.f32.mrf.mxu0
      %v643 = vadd.f32 %v336, %v642
      %v644 = vpop.f32.mrf.mxu0
      %v645 = vadd.f32 %v336, %v644
      %646 = vmatmul.bf16.gmra.mxu0 %v448
      %v647 = vpop.f32.mrf.mxu0
      %v648 = vadd.f32 %v336, %v647
      %v649 = vpop.f32.mrf.mxu0
      %v650 = vadd.f32 %v336, %v649
      %651 = vmatmul.bf16.gmra.mxu0 %v450
      %v652 = vpop.f32.mrf.mxu0
      %v653 = vadd.f32 %v336, %v652
      %v654 = vpop.f32.mrf.mxu0
      %v655 = vadd.f32 %v336, %v654
      %656 = vmatmul.bf16.gmra.mxu0 %v452
      %v657 = vpop.f32.mrf.mxu0
      %v658 = vadd.f32 %v336, %v657
      %v659 = vpop.f32.mrf.mxu0
      %v660 = vadd.f32 %v336, %v659
      %661 = vmatmul.bf16.gmra.mxu0 %v454
      %v662 = vpop.f32.mrf.mxu0
      %v663 = vadd.f32 %v336, %v662
      %v664 = vpop.f32.mrf.mxu0
      %v665 = vadd.f32 %v336, %v664
      %666 = vmatmul.bf16.gmra.mxu0 %v456
      %v667 = vpop.f32.mrf.mxu0
      %v668 = vadd.f32 %v336, %v667
      %v669 = vpop.f32.mrf.mxu0
      %v670 = vadd.f32 %v336, %v669
      %671 = vmatmul.bf16.gmra.mxu0 %v458
      %v672 = vpop.f32.mrf.mxu0
      %v673 = vadd.f32 %v336, %v672
      %v674 = vpop.f32.mrf.mxu0
      %v675 = vadd.f32 %v336, %v674
      %676 = vmatmul.bf16.gmra.mxu0 %v460
      %v677 = vpop.f32.mrf.mxu0
      %v678 = vadd.f32 %v336, %v677
      %v679 = vpop.f32.mrf.mxu0
      %v680 = vadd.f32 %v336, %v679
      %681 = vmatmul.bf16.gmra.mxu0 %v462
      %v682 = vpop.f32.mrf.mxu0
      %v683 = vadd.f32 %v336, %v682
      %v684 = vpop.f32.mrf.mxu0
      %v685 = vadd.f32 %v336, %v684
      %686 = vmatmul.bf16.gmra.mxu0 %v464
      %v687 = vpop.f32.mrf.mxu0
      %v688 = vadd.f32 %v336, %v687
      %v689 = vpop.f32.mrf.mxu0
      %v690 = vadd.f32 %v336, %v689
      %691 = vdwg.mxu0
      %692 = vmatpush.bf16.msra.mxu0 0
      %693 = vmatpush.bf16.msra.mxu0 0
      %694 = vmatpush.bf16.msra.mxu0 0
      %695 = vmatpush.bf16.msra.mxu0 0
      %696 = vmatpush.bf16.msra.mxu0 %v541
      %697 = vmatpush.bf16.msra.mxu0 %v540
      %698 = vmatpush.bf16.msra.mxu0 %v539
      %699 = vmatpush.bf16.msra.mxu0 %v538
      %700 = vmatmul.bf16.gmra.mxu0 %v556
      %v701 = vpop.f32.mrf.mxu0
      %v702 = vadd.f32 %v613, %v701
      %v703 = vpop.f32.mrf.mxu0
      %v704 = vadd.f32 %v615, %v703
      %705 = vmatmul.bf16.gmra.mxu0 %v559
      %v706 = vpop.f32.mrf.mxu0
      %v707 = vadd.f32 %v618, %v706
      %v708 = vpop.f32.mrf.mxu0
      %v709 = vadd.f32 %v620, %v708
      %710 = vmatmul.bf16.gmra.mxu0 %v562
      %v711 = vpop.f32.mrf.mxu0
      %v712 = vadd.f32 %v623, %v711
      %v713 = vpop.f32.mrf.mxu0
      %v714 = vadd.f32 %v625, %v713
      %715 = vmatmul.bf16.gmra.mxu0 %v565
      %v716 = vpop.f32.mrf.mxu0
      %v717 = vadd.f32 %v628, %v716
      %v718 = vpop.f32.mrf.mxu0
      %v719 = vadd.f32 %v630, %v718
      %720 = vmatmul.bf16.gmra.mxu0 %v568
      %v721 = vpop.f32.mrf.mxu0
      %v722 = vadd.f32 %v633, %v721
      %v723 = vpop.f32.mrf.mxu0
      %v724 = vadd.f32 %v635, %v723
      %725 = vmatmul.bf16.gmra.mxu0 %v571
      %v726 = vpop.f32.mrf.mxu0
      %v727 = vadd.f32 %v638, %v726
      %v728 = vpop.f32.mrf.mxu0
      %v729 = vadd.f32 %v640, %v728
      %730 = vmatmul.bf16.gmra.mxu0 %v574
      %v731 = vpop.f32.mrf.mxu0
      %v732 = vadd.f32 %v643, %v731
      %v733 = vpop.f32.mrf.mxu0
      %v734 = vadd.f32 %v645, %v733
      %735 = vmatmul.bf16.gmra.mxu0 %v577
      %v736 = vpop.f32.mrf.mxu0
      %v737 = vadd.f32 %v648, %v736
      %v738 = vpop.f32.mrf.mxu0
      %v739 = vadd.f32 %v650, %v738
      %740 = vmatmul.bf16.gmra.mxu0 %v580
      %v741 = vpop.f32.mrf.mxu0
      %v742 = vadd.f32 %v653, %v741
      %v743 = vpop.f32.mrf.mxu0
      %v744 = vadd.f32 %v655, %v743
      %745 = vmatmul.bf16.gmra.mxu0 %v583
      %v746 = vpop.f32.mrf.mxu0
      %v747 = vadd.f32 %v658, %v746
      %v748 = vpop.f32.mrf.mxu0
      %v749 = vadd.f32 %v660, %v748
      %750 = vmatmul.bf16.gmra.mxu0 %v586
      %v751 = vpop.f32.mrf.mxu0
      %v752 = vadd.f32 %v663, %v751
      %v753 = vpop.f32.mrf.mxu0
      %v754 = vadd.f32 %v665, %v753
      %755 = vmatmul.bf16.gmra.mxu0 %v589
      %v756 = vpop.f32.mrf.mxu0
      %v757 = vadd.f32 %v668, %v756
      %v758 = vpop.f32.mrf.mxu0
      %v759 = vadd.f32 %v670, %v758
      %760 = vmatmul.bf16.gmra.mxu0 %v592
      %v761 = vpop.f32.mrf.mxu0
      %v762 = vadd.f32 %v673, %v761
      %v763 = vpop.f32.mrf.mxu0
      %v764 = vadd.f32 %v675, %v763
      %765 = vmatmul.bf16.gmra.mxu0 %v595
      %v766 = vpop.f32.mrf.mxu0
      %v767 = vadd.f32 %v678, %v766
      %v768 = vpop.f32.mrf.mxu0
      %v769 = vadd.f32 %v680, %v768
      %770 = vmatmul.bf16.gmra.mxu0 %v598
      %v771 = vpop.f32.mrf.mxu0
      %v772 = vadd.f32 %v683, %v771
      %v773 = vpop.f32.mrf.mxu0
      %v774 = vadd.f32 %v685, %v773
      %775 = vmatmul.bf16.gmra.mxu0 %v601
      %v776 = vpop.f32.mrf.mxu0
      %v777 = vadd.f32 %v688, %v776
      %v778 = vpop.f32.mrf.mxu0
      %v779 = vadd.f32 %v690, %v778
      %780 = vdwg.mxu0
      %v781 = vld [vmem:[%s266] sm:$0xff]
      %v782 = vld [vmem:[%s266 + $0x8] sm:$0xff]
      %v783 = vld [vmem:[%s266 + $0x10] sm:$0xff]
      %v784 = vld [vmem:[%s266 + $0x18] sm:$0xff]
      %v785 = vld [vmem:[%s266 + $0x20] sm:$0xff]
      %v786 = vld [vmem:[%s266 + $0x28] sm:$0xff]
      %v787 = vld [vmem:[%s266 + $0x30] sm:$0xff]
      %v788 = vld [vmem:[%s266 + $0x38] sm:$0xff]
      %v789 = vld [vmem:[%s266 + $0x40] sm:$0xff]
      %v790 = vld [vmem:[%s266 + $0x48] sm:$0xff]
      %v791 = vld [vmem:[%s266 + $0x50] sm:$0xff]
      %v792 = vld [vmem:[%s266 + $0x58] sm:$0xff]
      %v793 = vld [vmem:[%s266 + $0x60] sm:$0xff]
      %v794 = vld [vmem:[%s266 + $0x68] sm:$0xff]
      %v795 = vld [vmem:[%s266 + $0x70] sm:$0xff]
      %v796 = vld [vmem:[%s266 + $0x78] sm:$0xff]
      %v797 = vld [vmem:[%s266 + $0x80] sm:$0xff]
      %v798 = vld [vmem:[%s266 + $0x88] sm:$0xff]
      %v799 = vld [vmem:[%s266 + $0x90] sm:$0xff]
      %v800 = vld [vmem:[%s266 + $0x98] sm:$0xff]
      %v801 = vld [vmem:[%s266 + $0xa0] sm:$0xff]
      %v802 = vld [vmem:[%s266 + $0xa8] sm:$0xff]
      %v803 = vld [vmem:[%s266 + $0xb0] sm:$0xff]
      %v804 = vld [vmem:[%s266 + $0xb8] sm:$0xff]
      %v805 = vld [vmem:[%s266 + $0xc0] sm:$0xff]
      %v806 = vld [vmem:[%s266 + $0xc8] sm:$0xff]
      %v807 = vld [vmem:[%s266 + $0xd0] sm:$0xff]
      %v808 = vld [vmem:[%s266 + $0xd8] sm:$0xff]
      %v809 = vld [vmem:[%s266 + $0xe0] sm:$0xff]
      %v810 = vld [vmem:[%s266 + $0xe8] sm:$0xff]
      %v811 = vld [vmem:[%s266 + $0xf0] sm:$0xff]
      %v812 = vld [vmem:[%s266 + $0xf8] sm:$0xff]
      %v813 = vmul.f32 %v702, %v781
      %v814 = vmul.f32 %v704, %v782
      %v815 = vmul.f32 %v707, %v783
      %v816 = vmul.f32 %v709, %v784
      %v817 = vmul.f32 %v712, %v785
      %v818 = vmul.f32 %v714, %v786
      %v819 = vmul.f32 %v717, %v787
      %v820 = vmul.f32 %v719, %v788
      %v821 = vmul.f32 %v722, %v789
      %v822 = vmul.f32 %v724, %v790
      %v823 = vmul.f32 %v727, %v791
      %v824 = vmul.f32 %v729, %v792
      %v825 = vmul.f32 %v732, %v793
      %v826 = vmul.f32 %v734, %v794
      %v827 = vmul.f32 %v737, %v795
      %v828 = vmul.f32 %v739, %v796
      %v829 = vmul.f32 %v742, %v797
      %v830 = vmul.f32 %v744, %v798
      %v831 = vmul.f32 %v747, %v799
      %v832 = vmul.f32 %v749, %v800
      %v833 = vmul.f32 %v752, %v801
      %v834 = vmul.f32 %v754, %v802
      %v835 = vmul.f32 %v757, %v803
      %v836 = vmul.f32 %v759, %v804
      %v837 = vmul.f32 %v762, %v805
      %v838 = vmul.f32 %v764, %v806
      %v839 = vmul.f32 %v767, %v807
      %v840 = vmul.f32 %v769, %v808
      %v841 = vmul.f32 %v772, %v809
      %v842 = vmul.f32 %v774, %v810
      %v843 = vmul.f32 %v777, %v811
      %v844 = vmul.f32 %v779, %v812
      %877 = vrot.lane.b32.xlu0 %v813, 127
      %v878 = vpop.permute.xlu0 %877
      %879 = vrot.lane.b32.xlu0 %v814, 127
      %v880 = vpop.permute.xlu0 %879
      %881 = vrot.lane.b32.xlu0 %v815, 127
      %v882 = vpop.permute.xlu0 %881
      %883 = vrot.lane.b32.xlu0 %v816, 127
      %v884 = vpop.permute.xlu0 %883
      %885 = vrot.lane.b32.xlu0 %v817, 127
      %v886 = vpop.permute.xlu0 %885
      %887 = vrot.lane.b32.xlu0 %v818, 127
      %v888 = vpop.permute.xlu0 %887
      %889 = vrot.lane.b32.xlu0 %v819, 127
      %v890 = vpop.permute.xlu0 %889
      %891 = vrot.lane.b32.xlu0 %v820, 127
      %v892 = vpop.permute.xlu0 %891
      %893 = vrot.lane.b32.xlu0 %v821, 127
      %v894 = vpop.permute.xlu0 %893
      %895 = vrot.lane.b32.xlu0 %v822, 127
      %v896 = vpop.permute.xlu0 %895
      %897 = vrot.lane.b32.xlu0 %v823, 127
      %v898 = vpop.permute.xlu0 %897
      %899 = vrot.lane.b32.xlu0 %v824, 127
      %v900 = vpop.permute.xlu0 %899
      %901 = vrot.lane.b32.xlu0 %v825, 127
      %v902 = vpop.permute.xlu0 %901
      %903 = vrot.lane.b32.xlu0 %v826, 127
      %v904 = vpop.permute.xlu0 %903
      %905 = vrot.lane.b32.xlu0 %v827, 127
      %v906 = vpop.permute.xlu0 %905
      %907 = vrot.lane.b32.xlu0 %v828, 127
      %v908 = vpop.permute.xlu0 %907
      %909 = vrot.lane.b32.xlu0 %v829, 127
      %v910 = vpop.permute.xlu0 %909
      %911 = vrot.lane.b32.xlu0 %v830, 127
      %v912 = vpop.permute.xlu0 %911
      %913 = vrot.lane.b32.xlu0 %v831, 127
      %v914 = vpop.permute.xlu0 %913
      %915 = vrot.lane.b32.xlu0 %v832, 127
      %v916 = vpop.permute.xlu0 %915
      %917 = vrot.lane.b32.xlu0 %v833, 127
      %v918 = vpop.permute.xlu0 %917
      %919 = vrot.lane.b32.xlu0 %v834, 127
      %v920 = vpop.permute.xlu0 %919
      %921 = vrot.lane.b32.xlu0 %v835, 127
      %v922 = vpop.permute.xlu0 %921
      %923 = vrot.lane.b32.xlu0 %v836, 127
      %v924 = vpop.permute.xlu0 %923
      %925 = vrot.lane.b32.xlu0 %v837, 127
      %v926 = vpop.permute.xlu0 %925
      %927 = vrot.lane.b32.xlu0 %v838, 127
      %v928 = vpop.permute.xlu0 %927
      %929 = vrot.lane.b32.xlu0 %v839, 127
      %v930 = vpop.permute.xlu0 %929
      %931 = vrot.lane.b32.xlu0 %v840, 127
      %v932 = vpop.permute.xlu0 %931
      %933 = vrot.lane.b32.xlu0 %v841, 127
      %v934 = vpop.permute.xlu0 %933
      %935 = vrot.lane.b32.xlu0 %v842, 127
      %v936 = vpop.permute.xlu0 %935
      %937 = vrot.lane.b32.xlu0 %v843, 127
      %v938 = vpop.permute.xlu0 %937
      %939 = vrot.lane.b32.xlu0 %v844, 127
      %v940 = vpop.permute.xlu0 %939
      %v973 = vsub.f32 %v813, %v878
      %v974 = vsub.f32 %v814, %v880
      %v975 = vsub.f32 %v815, %v882
      %v976 = vsub.f32 %v816, %v884
      %v977 = vsub.f32 %v817, %v886
      %v978 = vsub.f32 %v818, %v888
      %v979 = vsub.f32 %v819, %v890
      %v980 = vsub.f32 %v820, %v892
      %v981 = vsub.f32 %v821, %v894
      %v982 = vsub.f32 %v822, %v896
      %v983 = vsub.f32 %v823, %v898
      %v984 = vsub.f32 %v824, %v900
      %v985 = vsub.f32 %v825, %v902
      %v986 = vsub.f32 %v826, %v904
      %v987 = vsub.f32 %v827, %v906
      %v988 = vsub.f32 %v828, %v908
      %v989 = vsub.f32 %v829, %v910
      %v990 = vsub.f32 %v830, %v912
      %v991 = vsub.f32 %v831, %v914
      %v992 = vsub.f32 %v832, %v916
      %v993 = vsub.f32 %v833, %v918
      %v994 = vsub.f32 %v834, %v920
      %v995 = vsub.f32 %v835, %v922
      %v996 = vsub.f32 %v836, %v924
      %v997 = vsub.f32 %v837, %v926
      %v998 = vsub.f32 %v838, %v928
      %v999 = vsub.f32 %v839, %v930
      %v1000 = vsub.f32 %v840, %v932
      %v1001 = vsub.f32 %v841, %v934
      %v1002 = vsub.f32 %v842, %v936
      %v1003 = vsub.f32 %v843, %v938
      %v1004 = vsub.f32 %v844, %v940
      %1037 = vrot.lane.b32.xlu0 %v781, 127
      %v1038 = vpop.permute.xlu0 %1037
      %1039 = vrot.lane.b32.xlu0 %v782, 127
      %v1040 = vpop.permute.xlu0 %1039
      %1041 = vrot.lane.b32.xlu0 %v783, 127
      %v1042 = vpop.permute.xlu0 %1041
      %1043 = vrot.lane.b32.xlu0 %v784, 127
      %v1044 = vpop.permute.xlu0 %1043
      %1045 = vrot.lane.b32.xlu0 %v785, 127
      %v1046 = vpop.permute.xlu0 %1045
      %1047 = vrot.lane.b32.xlu0 %v786, 127
      %v1048 = vpop.permute.xlu0 %1047
      %1049 = vrot.lane.b32.xlu0 %v787, 127
      %v1050 = vpop.permute.xlu0 %1049
      %1051 = vrot.lane.b32.xlu0 %v788, 127
      %v1052 = vpop.permute.xlu0 %1051
      %1053 = vrot.lane.b32.xlu0 %v789, 127
      %v1054 = vpop.permute.xlu0 %1053
      %1055 = vrot.lane.b32.xlu0 %v790, 127
      %v1056 = vpop.permute.xlu0 %1055
      %1057 = vrot.lane.b32.xlu0 %v791, 127
      %v1058 = vpop.permute.xlu0 %1057
      %1059 = vrot.lane.b32.xlu0 %v792, 127
      %v1060 = vpop.permute.xlu0 %1059
      %1061 = vrot.lane.b32.xlu0 %v793, 127
      %v1062 = vpop.permute.xlu0 %1061
      %1063 = vrot.lane.b32.xlu0 %v794, 127
      %v1064 = vpop.permute.xlu0 %1063
      %1065 = vrot.lane.b32.xlu0 %v795, 127
      %v1066 = vpop.permute.xlu0 %1065
      %1067 = vrot.lane.b32.xlu0 %v796, 127
      %v1068 = vpop.permute.xlu0 %1067
      %1069 = vrot.lane.b32.xlu0 %v797, 127
      %v1070 = vpop.permute.xlu0 %1069
      %1071 = vrot.lane.b32.xlu0 %v798, 127
      %v1072 = vpop.permute.xlu0 %1071
      %1073 = vrot.lane.b32.xlu0 %v799, 127
      %v1074 = vpop.permute.xlu0 %1073
      %1075 = vrot.lane.b32.xlu0 %v800, 127
      %v1076 = vpop.permute.xlu0 %1075
      %1077 = vrot.lane.b32.xlu0 %v801, 127
      %v1078 = vpop.permute.xlu0 %1077
      %1079 = vrot.lane.b32.xlu0 %v802, 127
      %v1080 = vpop.permute.xlu0 %1079
      %1081 = vrot.lane.b32.xlu0 %v803, 127
      %v1082 = vpop.permute.xlu0 %1081
      %1083 = vrot.lane.b32.xlu0 %v804, 127
      %v1084 = vpop.permute.xlu0 %1083
      %1085 = vrot.lane.b32.xlu0 %v805, 127
      %v1086 = vpop.permute.xlu0 %1085
      %1087 = vrot.lane.b32.xlu0 %v806, 127
      %v1088 = vpop.permute.xlu0 %1087
      %1089 = vrot.lane.b32.xlu0 %v807, 127
      %v1090 = vpop.permute.xlu0 %1089
      %1091 = vrot.lane.b32.xlu0 %v808, 127
      %v1092 = vpop.permute.xlu0 %1091
      %1093 = vrot.lane.b32.xlu0 %v809, 127
      %v1094 = vpop.permute.xlu0 %1093
      %1095 = vrot.lane.b32.xlu0 %v810, 127
      %v1096 = vpop.permute.xlu0 %1095
      %1097 = vrot.lane.b32.xlu0 %v811, 127
      %v1098 = vpop.permute.xlu0 %1097
      %1099 = vrot.lane.b32.xlu0 %v812, 127
      %v1100 = vpop.permute.xlu0 %1099
      %v1133 = vmul.f32 %v702, %v1038
      %v1134 = vmul.f32 %v704, %v1040
      %v1135 = vmul.f32 %v707, %v1042
      %v1136 = vmul.f32 %v709, %v1044
      %v1137 = vmul.f32 %v712, %v1046
      %v1138 = vmul.f32 %v714, %v1048
      %v1139 = vmul.f32 %v717, %v1050
      %v1140 = vmul.f32 %v719, %v1052
      %v1141 = vmul.f32 %v722, %v1054
      %v1142 = vmul.f32 %v724, %v1056
      %v1143 = vmul.f32 %v727, %v1058
      %v1144 = vmul.f32 %v729, %v1060
      %v1145 = vmul.f32 %v732, %v1062
      %v1146 = vmul.f32 %v734, %v1064
      %v1147 = vmul.f32 %v737, %v1066
      %v1148 = vmul.f32 %v739, %v1068
      %v1149 = vmul.f32 %v742, %v1070
      %v1150 = vmul.f32 %v744, %v1072
      %v1151 = vmul.f32 %v747, %v1074
      %v1152 = vmul.f32 %v749, %v1076
      %v1153 = vmul.f32 %v752, %v1078
      %v1154 = vmul.f32 %v754, %v1080
      %v1155 = vmul.f32 %v757, %v1082
      %v1156 = vmul.f32 %v759, %v1084
      %v1157 = vmul.f32 %v762, %v1086
      %v1158 = vmul.f32 %v764, %v1088
      %v1159 = vmul.f32 %v767, %v1090
      %v1160 = vmul.f32 %v769, %v1092
      %v1161 = vmul.f32 %v772, %v1094
      %v1162 = vmul.f32 %v774, %v1096
      %v1163 = vmul.f32 %v777, %v1098
      %v1164 = vmul.f32 %v779, %v1100
      %1165 = vrot.lane.b32.xlu0 %v781, 1
      %v1166 = vpop.permute.xlu0 %1165
      %1167 = vrot.lane.b32.xlu0 %v782, 1
      %v1168 = vpop.permute.xlu0 %1167
      %1169 = vrot.lane.b32.xlu0 %v783, 1
      %v1170 = vpop.permute.xlu0 %1169
      %1171 = vrot.lane.b32.xlu0 %v784, 1
      %v1172 = vpop.permute.xlu0 %1171
      %1173 = vrot.lane.b32.xlu0 %v785, 1
      %v1174 = vpop.permute.xlu0 %1173
      %1175 = vrot.lane.b32.xlu0 %v786, 1
      %v1176 = vpop.permute.xlu0 %1175
      %1177 = vrot.lane.b32.xlu0 %v787, 1
      %v1178 = vpop.permute.xlu0 %1177
      %1179 = vrot.lane.b32.xlu0 %v788, 1
      %v1180 = vpop.permute.xlu0 %1179
      %1181 = vrot.lane.b32.xlu0 %v789, 1
      %v1182 = vpop.permute.xlu0 %1181
      %1183 = vrot.lane.b32.xlu0 %v790, 1
      %v1184 = vpop.permute.xlu0 %1183
      %1185 = vrot.lane.b32.xlu0 %v791, 1
      %v1186 = vpop.permute.xlu0 %1185
      %1187 = vrot.lane.b32.xlu0 %v792, 1
      %v1188 = vpop.permute.xlu0 %1187
      %1189 = vrot.lane.b32.xlu0 %v793, 1
      %v1190 = vpop.permute.xlu0 %1189
      %1191 = vrot.lane.b32.xlu0 %v794, 1
      %v1192 = vpop.permute.xlu0 %1191
      %1193 = vrot.lane.b32.xlu0 %v795, 1
      %v1194 = vpop.permute.xlu0 %1193
      %1195 = vrot.lane.b32.xlu0 %v796, 1
      %v1196 = vpop.permute.xlu0 %1195
      %1197 = vrot.lane.b32.xlu0 %v797, 1
      %v1198 = vpop.permute.xlu0 %1197
      %1199 = vrot.lane.b32.xlu0 %v798, 1
      %v1200 = vpop.permute.xlu0 %1199
      %1201 = vrot.lane.b32.xlu0 %v799, 1
      %v1202 = vpop.permute.xlu0 %1201
      %1203 = vrot.lane.b32.xlu0 %v800, 1
      %v1204 = vpop.permute.xlu0 %1203
      %1205 = vrot.lane.b32.xlu0 %v801, 1
      %v1206 = vpop.permute.xlu0 %1205
      %1207 = vrot.lane.b32.xlu0 %v802, 1
      %v1208 = vpop.permute.xlu0 %1207
      %1209 = vrot.lane.b32.xlu0 %v803, 1
      %v1210 = vpop.permute.xlu0 %1209
      %1211 = vrot.lane.b32.xlu0 %v804, 1
      %v1212 = vpop.permute.xlu0 %1211
      %1213 = vrot.lane.b32.xlu0 %v805, 1
      %v1214 = vpop.permute.xlu0 %1213
      %1215 = vrot.lane.b32.xlu0 %v806, 1
      %v1216 = vpop.permute.xlu0 %1215
      %1217 = vrot.lane.b32.xlu0 %v807, 1
      %v1218 = vpop.permute.xlu0 %1217
      %1219 = vrot.lane.b32.xlu0 %v808, 1
      %v1220 = vpop.permute.xlu0 %1219
      %1221 = vrot.lane.b32.xlu0 %v809, 1
      %v1222 = vpop.permute.xlu0 %1221
      %1223 = vrot.lane.b32.xlu0 %v810, 1
      %v1224 = vpop.permute.xlu0 %1223
      %1225 = vrot.lane.b32.xlu0 %v811, 1
      %v1226 = vpop.permute.xlu0 %1225
      %1227 = vrot.lane.b32.xlu0 %v812, 1
      %v1228 = vpop.permute.xlu0 %1227
      %v1261 = vmul.f32 %v702, %v1166
      %v1262 = vmul.f32 %v704, %v1168
      %v1263 = vmul.f32 %v707, %v1170
      %v1264 = vmul.f32 %v709, %v1172
      %v1265 = vmul.f32 %v712, %v1174
      %v1266 = vmul.f32 %v714, %v1176
      %v1267 = vmul.f32 %v717, %v1178
      %v1268 = vmul.f32 %v719, %v1180
      %v1269 = vmul.f32 %v722, %v1182
      %v1270 = vmul.f32 %v724, %v1184
      %v1271 = vmul.f32 %v727, %v1186
      %v1272 = vmul.f32 %v729, %v1188
      %v1273 = vmul.f32 %v732, %v1190
      %v1274 = vmul.f32 %v734, %v1192
      %v1275 = vmul.f32 %v737, %v1194
      %v1276 = vmul.f32 %v739, %v1196
      %v1277 = vmul.f32 %v742, %v1198
      %v1278 = vmul.f32 %v744, %v1200
      %v1279 = vmul.f32 %v747, %v1202
      %v1280 = vmul.f32 %v749, %v1204
      %v1281 = vmul.f32 %v752, %v1206
      %v1282 = vmul.f32 %v754, %v1208
      %v1283 = vmul.f32 %v757, %v1210
      %v1284 = vmul.f32 %v759, %v1212
      %v1285 = vmul.f32 %v762, %v1214
      %v1286 = vmul.f32 %v764, %v1216
      %v1287 = vmul.f32 %v767, %v1218
      %v1288 = vmul.f32 %v769, %v1220
      %v1289 = vmul.f32 %v772, %v1222
      %v1290 = vmul.f32 %v774, %v1224
      %v1291 = vmul.f32 %v777, %v1226
      %v1292 = vmul.f32 %v779, %v1228
      %1325 = vrot.lane.b32.xlu0 %v1261, 127
      %v1326 = vpop.permute.xlu0 %1325
      %1327 = vrot.lane.b32.xlu0 %v1262, 127
      %v1328 = vpop.permute.xlu0 %1327
      %1329 = vrot.lane.b32.xlu0 %v1263, 127
      %v1330 = vpop.permute.xlu0 %1329
      %1331 = vrot.lane.b32.xlu0 %v1264, 127
      %v1332 = vpop.permute.xlu0 %1331
      %1333 = vrot.lane.b32.xlu0 %v1265, 127
      %v1334 = vpop.permute.xlu0 %1333
      %1335 = vrot.lane.b32.xlu0 %v1266, 127
      %v1336 = vpop.permute.xlu0 %1335
      %1337 = vrot.lane.b32.xlu0 %v1267, 127
      %v1338 = vpop.permute.xlu0 %1337
      %1339 = vrot.lane.b32.xlu0 %v1268, 127
      %v1340 = vpop.permute.xlu0 %1339
      %1341 = vrot.lane.b32.xlu0 %v1269, 127
      %v1342 = vpop.permute.xlu0 %1341
      %1343 = vrot.lane.b32.xlu0 %v1270, 127
      %v1344 = vpop.permute.xlu0 %1343
      %1345 = vrot.lane.b32.xlu0 %v1271, 127
      %v1346 = vpop.permute.xlu0 %1345
      %1347 = vrot.lane.b32.xlu0 %v1272, 127
      %v1348 = vpop.permute.xlu0 %1347
      %1349 = vrot.lane.b32.xlu0 %v1273, 127
      %v1350 = vpop.permute.xlu0 %1349
      %1351 = vrot.lane.b32.xlu0 %v1274, 127
      %v1352 = vpop.permute.xlu0 %1351
      %1353 = vrot.lane.b32.xlu0 %v1275, 127
      %v1354 = vpop.permute.xlu0 %1353
      %1355 = vrot.lane.b32.xlu0 %v1276, 127
      %v1356 = vpop.permute.xlu0 %1355
      %1357 = vrot.lane.b32.xlu0 %v1277, 127
      %v1358 = vpop.permute.xlu0 %1357
      %1359 = vrot.lane.b32.xlu0 %v1278, 127
      %v1360 = vpop.permute.xlu0 %1359
      %1361 = vrot.lane.b32.xlu0 %v1279, 127
      %v1362 = vpop.permute.xlu0 %1361
      %1363 = vrot.lane.b32.xlu0 %v1280, 127
      %v1364 = vpop.permute.xlu0 %1363
      %1365 = vrot.lane.b32.xlu0 %v1281, 127
      %v1366 = vpop.permute.xlu0 %1365
      %1367 = vrot.lane.b32.xlu0 %v1282, 127
      %v1368 = vpop.permute.xlu0 %1367
      %1369 = vrot.lane.b32.xlu0 %v1283, 127
      %v1370 = vpop.permute.xlu0 %1369
      %1371 = vrot.lane.b32.xlu0 %v1284, 127
      %v1372 = vpop.permute.xlu0 %1371
      %1373 = vrot.lane.b32.xlu0 %v1285, 127
      %v1374 = vpop.permute.xlu0 %1373
      %1375 = vrot.lane.b32.xlu0 %v1286, 127
      %v1376 = vpop.permute.xlu0 %1375
      %1377 = vrot.lane.b32.xlu0 %v1287, 127
      %v1378 = vpop.permute.xlu0 %1377
      %1379 = vrot.lane.b32.xlu0 %v1288, 127
      %v1380 = vpop.permute.xlu0 %1379
      %1381 = vrot.lane.b32.xlu0 %v1289, 127
      %v1382 = vpop.permute.xlu0 %1381
      %1383 = vrot.lane.b32.xlu0 %v1290, 127
      %v1384 = vpop.permute.xlu0 %1383
      %1385 = vrot.lane.b32.xlu0 %v1291, 127
      %v1386 = vpop.permute.xlu0 %1385
      %1387 = vrot.lane.b32.xlu0 %v1292, 127
      %v1388 = vpop.permute.xlu0 %1387
      %v1421 = vadd.f32 %v1133, %v1326
      %v1422 = vadd.f32 %v1134, %v1328
      %v1423 = vadd.f32 %v1135, %v1330
      %v1424 = vadd.f32 %v1136, %v1332
      %v1425 = vadd.f32 %v1137, %v1334
      %v1426 = vadd.f32 %v1138, %v1336
      %v1427 = vadd.f32 %v1139, %v1338
      %v1428 = vadd.f32 %v1140, %v1340
      %v1429 = vadd.f32 %v1141, %v1342
      %v1430 = vadd.f32 %v1142, %v1344
      %v1431 = vadd.f32 %v1143, %v1346
      %v1432 = vadd.f32 %v1144, %v1348
      %v1433 = vadd.f32 %v1145, %v1350
      %v1434 = vadd.f32 %v1146, %v1352
      %v1435 = vadd.f32 %v1147, %v1354
      %v1436 = vadd.f32 %v1148, %v1356
      %v1437 = vadd.f32 %v1149, %v1358
      %v1438 = vadd.f32 %v1150, %v1360
      %v1439 = vadd.f32 %v1151, %v1362
      %v1440 = vadd.f32 %v1152, %v1364
      %v1441 = vadd.f32 %v1153, %v1366
      %v1442 = vadd.f32 %v1154, %v1368
      %v1443 = vadd.f32 %v1155, %v1370
      %v1444 = vadd.f32 %v1156, %v1372
      %v1445 = vadd.f32 %v1157, %v1374
      %v1446 = vadd.f32 %v1158, %v1376
      %v1447 = vadd.f32 %v1159, %v1378
      %v1448 = vadd.f32 %v1160, %v1380
      %v1449 = vadd.f32 %v1161, %v1382
      %v1450 = vadd.f32 %v1162, %v1384
      %v1451 = vadd.f32 %v1163, %v1386
      %v1452 = vadd.f32 %v1164, %v1388
      %v1453 = vlaneseq
      %v1454 = vand.u32 %v1453, 127
      %vm1455 = vcmp.eq.s32.totalorder %v1454, 0
      %vm1456 = vcmp.eq.s32.totalorder %v1454, 1
      %1458 = vset.pattern.permute.xlu0 0
      %1459 = vperm.xlu0 %1458, %v1421
      %v1460 = vpop.permute.xlu0 %1459
      %1463 = vset.pattern.permute.xlu0 0
      %1464 = vperm.xlu0 %1463, %v1422
      %v1465 = vpop.permute.xlu0 %1464
      %1468 = vset.pattern.permute.xlu0 0
      %1469 = vperm.xlu0 %1468, %v1423
      %v1470 = vpop.permute.xlu0 %1469
      %1473 = vset.pattern.permute.xlu0 0
      %1474 = vperm.xlu0 %1473, %v1424
      %v1475 = vpop.permute.xlu0 %1474
      %1478 = vset.pattern.permute.xlu0 0
      %1479 = vperm.xlu0 %1478, %v1425
      %v1480 = vpop.permute.xlu0 %1479
      %1483 = vset.pattern.permute.xlu0 0
      %1484 = vperm.xlu0 %1483, %v1426
      %v1485 = vpop.permute.xlu0 %1484
      %1488 = vset.pattern.permute.xlu0 0
      %1489 = vperm.xlu0 %1488, %v1427
      %v1490 = vpop.permute.xlu0 %1489
      %1493 = vset.pattern.permute.xlu0 0
      %1494 = vperm.xlu0 %1493, %v1428
      %v1495 = vpop.permute.xlu0 %1494
      %1498 = vset.pattern.permute.xlu0 0
      %1499 = vperm.xlu0 %1498, %v1429
      %v1500 = vpop.permute.xlu0 %1499
      %1503 = vset.pattern.permute.xlu0 0
      %1504 = vperm.xlu0 %1503, %v1430
      %v1505 = vpop.permute.xlu0 %1504
      %1508 = vset.pattern.permute.xlu0 0
      %1509 = vperm.xlu0 %1508, %v1431
      %v1510 = vpop.permute.xlu0 %1509
      %1513 = vset.pattern.permute.xlu0 0
      %1514 = vperm.xlu0 %1513, %v1432
      %v1515 = vpop.permute.xlu0 %1514
      %1518 = vset.pattern.permute.xlu0 0
      %1519 = vperm.xlu0 %1518, %v1433
      %v1520 = vpop.permute.xlu0 %1519
      %1523 = vset.pattern.permute.xlu0 0
      %1524 = vperm.xlu0 %1523, %v1434
      %v1525 = vpop.permute.xlu0 %1524
      %1528 = vset.pattern.permute.xlu0 0
      %1529 = vperm.xlu0 %1528, %v1435
      %v1530 = vpop.permute.xlu0 %1529
      %1533 = vset.pattern.permute.xlu0 0
      %1534 = vperm.xlu0 %1533, %v1436
      %v1535 = vpop.permute.xlu0 %1534
      %1538 = vset.pattern.permute.xlu0 0
      %1539 = vperm.xlu0 %1538, %v1437
      %v1540 = vpop.permute.xlu0 %1539
      %1543 = vset.pattern.permute.xlu0 0
      %1544 = vperm.xlu0 %1543, %v1438
      %v1545 = vpop.permute.xlu0 %1544
      %1548 = vset.pattern.permute.xlu0 0
      %1549 = vperm.xlu0 %1548, %v1439
      %v1550 = vpop.permute.xlu0 %1549
      %1553 = vset.pattern.permute.xlu0 0
      %1554 = vperm.xlu0 %1553, %v1440
      %v1555 = vpop.permute.xlu0 %1554
      %1558 = vset.pattern.permute.xlu0 0
      %1559 = vperm.xlu0 %1558, %v1441
      %v1560 = vpop.permute.xlu0 %1559
      %1563 = vset.pattern.permute.xlu0 0
      %1564 = vperm.xlu0 %1563, %v1442
      %v1565 = vpop.permute.xlu0 %1564
      %1568 = vset.pattern.permute.xlu0 0
      %1569 = vperm.xlu0 %1568, %v1443
      %v1570 = vpop.permute.xlu0 %1569
      %1573 = vset.pattern.permute.xlu0 0
      %1574 = vperm.xlu0 %1573, %v1444
      %v1575 = vpop.permute.xlu0 %1574
      %1578 = vset.pattern.permute.xlu0 0
      %1579 = vperm.xlu0 %1578, %v1445
      %v1580 = vpop.permute.xlu0 %1579
      %1583 = vset.pattern.permute.xlu0 0
      %1584 = vperm.xlu0 %1583, %v1446
      %v1585 = vpop.permute.xlu0 %1584
      %1588 = vset.pattern.permute.xlu0 0
      %1589 = vperm.xlu0 %1588, %v1447
      %v1590 = vpop.permute.xlu0 %1589
      %1593 = vset.pattern.permute.xlu0 0
      %1594 = vperm.xlu0 %1593, %v1448
      %v1595 = vpop.permute.xlu0 %1594
      %1598 = vset.pattern.permute.xlu0 0
      %1599 = vperm.xlu0 %1598, %v1449
      %v1600 = vpop.permute.xlu0 %1599
      %1603 = vset.pattern.permute.xlu0 0
      %1604 = vperm.xlu0 %1603, %v1450
      %v1605 = vpop.permute.xlu0 %1604
      %1608 = vset.pattern.permute.xlu0 0
      %1609 = vperm.xlu0 %1608, %v1451
      %v1610 = vpop.permute.xlu0 %1609
      %1613 = vset.pattern.permute.xlu0 0
      %1614 = vperm.xlu0 %1613, %v1452
      %v1615 = vpop.permute.xlu0 %1614
      %v1617 = vsel %vm1456, %v1460, 0.0
      %v1618 = vsel %vm1456, %v1465, 0.0
      %v1619 = vsel %vm1456, %v1470, 0.0
      %v1620 = vsel %vm1456, %v1475, 0.0
      %v1621 = vsel %vm1456, %v1480, 0.0
      %v1622 = vsel %vm1456, %v1485, 0.0
      %v1623 = vsel %vm1456, %v1490, 0.0
      %v1624 = vsel %vm1456, %v1495, 0.0
      %v1625 = vsel %vm1456, %v1500, 0.0
      %v1626 = vsel %vm1456, %v1505, 0.0
      %v1627 = vsel %vm1456, %v1510, 0.0
      %v1628 = vsel %vm1456, %v1515, 0.0
      %v1629 = vsel %vm1456, %v1520, 0.0
      %v1630 = vsel %vm1456, %v1525, 0.0
      %v1631 = vsel %vm1456, %v1530, 0.0
      %v1632 = vsel %vm1456, %v1535, 0.0
      %v1633 = vsel %vm1456, %v1540, 0.0
      %v1634 = vsel %vm1456, %v1545, 0.0
      %v1635 = vsel %vm1456, %v1550, 0.0
      %v1636 = vsel %vm1456, %v1555, 0.0
      %v1637 = vsel %vm1456, %v1560, 0.0
      %v1638 = vsel %vm1456, %v1565, 0.0
      %v1639 = vsel %vm1456, %v1570, 0.0
      %v1640 = vsel %vm1456, %v1575, 0.0
      %v1641 = vsel %vm1456, %v1580, 0.0
      %v1642 = vsel %vm1456, %v1585, 0.0
      %v1643 = vsel %vm1456, %v1590, 0.0
      %v1644 = vsel %vm1456, %v1595, 0.0
      %v1645 = vsel %vm1456, %v1600, 0.0
      %v1646 = vsel %vm1456, %v1605, 0.0
      %v1647 = vsel %vm1456, %v1610, 0.0
      %v1648 = vsel %vm1456, %v1615, 0.0
      %1650 = vset.pattern.permute.xlu0 0
      %1651 = vperm.xlu0 %1650, %v973
      %v1652 = vpop.permute.xlu0 %1651
      %1655 = vset.pattern.permute.xlu0 0
      %1656 = vperm.xlu0 %1655, %v974
      %v1657 = vpop.permute.xlu0 %1656
      %1660 = vset.pattern.permute.xlu0 0
      %1661 = vperm.xlu0 %1660, %v975
      %v1662 = vpop.permute.xlu0 %1661
      %1665 = vset.pattern.permute.xlu0 0
      %1666 = vperm.xlu0 %1665, %v976
      %v1667 = vpop.permute.xlu0 %1666
      %1670 = vset.pattern.permute.xlu0 0
      %1671 = vperm.xlu0 %1670, %v977
      %v1672 = vpop.permute.xlu0 %1671
      %1675 = vset.pattern.permute.xlu0 0
      %1676 = vperm.xlu0 %1675, %v978
      %v1677 = vpop.permute.xlu0 %1676
      %1680 = vset.pattern.permute.xlu0 0
      %1681 = vperm.xlu0 %1680, %v979
      %v1682 = vpop.permute.xlu0 %1681
      %1685 = vset.pattern.permute.xlu0 0
      %1686 = vperm.xlu0 %1685, %v980
      %v1687 = vpop.permute.xlu0 %1686
      %1690 = vset.pattern.permute.xlu0 0
      %1691 = vperm.xlu0 %1690, %v981
      %v1692 = vpop.permute.xlu0 %1691
      %1695 = vset.pattern.permute.xlu0 0
      %1696 = vperm.xlu0 %1695, %v982
      %v1697 = vpop.permute.xlu0 %1696
      %1700 = vset.pattern.permute.xlu0 0
      %1701 = vperm.xlu0 %1700, %v983
      %v1702 = vpop.permute.xlu0 %1701
      %1705 = vset.pattern.permute.xlu0 0
      %1706 = vperm.xlu0 %1705, %v984
      %v1707 = vpop.permute.xlu0 %1706
      %1710 = vset.pattern.permute.xlu0 0
      %1711 = vperm.xlu0 %1710, %v985
      %v1712 = vpop.permute.xlu0 %1711
      %1715 = vset.pattern.permute.xlu0 0
      %1716 = vperm.xlu0 %1715, %v986
      %v1717 = vpop.permute.xlu0 %1716
      %1720 = vset.pattern.permute.xlu0 0
      %1721 = vperm.xlu0 %1720, %v987
      %v1722 = vpop.permute.xlu0 %1721
      %1725 = vset.pattern.permute.xlu0 0
      %1726 = vperm.xlu0 %1725, %v988
      %v1727 = vpop.permute.xlu0 %1726
      %1730 = vset.pattern.permute.xlu0 0
      %1731 = vperm.xlu0 %1730, %v989
      %v1732 = vpop.permute.xlu0 %1731
      %1735 = vset.pattern.permute.xlu0 0
      %1736 = vperm.xlu0 %1735, %v990
      %v1737 = vpop.permute.xlu0 %1736
      %1740 = vset.pattern.permute.xlu0 0
      %1741 = vperm.xlu0 %1740, %v991
      %v1742 = vpop.permute.xlu0 %1741
      %1745 = vset.pattern.permute.xlu0 0
      %1746 = vperm.xlu0 %1745, %v992
      %v1747 = vpop.permute.xlu0 %1746
      %1750 = vset.pattern.permute.xlu0 0
      %1751 = vperm.xlu0 %1750, %v993
      %v1752 = vpop.permute.xlu0 %1751
      %1755 = vset.pattern.permute.xlu0 0
      %1756 = vperm.xlu0 %1755, %v994
      %v1757 = vpop.permute.xlu0 %1756
      %1760 = vset.pattern.permute.xlu0 0
      %1761 = vperm.xlu0 %1760, %v995
      %v1762 = vpop.permute.xlu0 %1761
      %1765 = vset.pattern.permute.xlu0 0
      %1766 = vperm.xlu0 %1765, %v996
      %v1767 = vpop.permute.xlu0 %1766
      %1770 = vset.pattern.permute.xlu0 0
      %1771 = vperm.xlu0 %1770, %v997
      %v1772 = vpop.permute.xlu0 %1771
      %1775 = vset.pattern.permute.xlu0 0
      %1776 = vperm.xlu0 %1775, %v998
      %v1777 = vpop.permute.xlu0 %1776
      %1780 = vset.pattern.permute.xlu0 0
      %1781 = vperm.xlu0 %1780, %v999
      %v1782 = vpop.permute.xlu0 %1781
      %1785 = vset.pattern.permute.xlu0 0
      %1786 = vperm.xlu0 %1785, %v1000
      %v1787 = vpop.permute.xlu0 %1786
      %1790 = vset.pattern.permute.xlu0 0
      %1791 = vperm.xlu0 %1790, %v1001
      %v1792 = vpop.permute.xlu0 %1791
      %1795 = vset.pattern.permute.xlu0 0
      %1796 = vperm.xlu0 %1795, %v1002
      %v1797 = vpop.permute.xlu0 %1796
      %1800 = vset.pattern.permute.xlu0 0
      %1801 = vperm.xlu0 %1800, %v1003
      %v1802 = vpop.permute.xlu0 %1801
      %1805 = vset.pattern.permute.xlu0 0
      %1806 = vperm.xlu0 %1805, %v1004
      %v1807 = vpop.permute.xlu0 %1806
      %v1809 = vsel %vm1455, %v1652, %v1617
      %v1810 = vsel %vm1455, %v1657, %v1618
      %v1811 = vsel %vm1455, %v1662, %v1619
      %v1812 = vsel %vm1455, %v1667, %v1620
      %v1813 = vsel %vm1455, %v1672, %v1621
      %v1814 = vsel %vm1455, %v1677, %v1622
      %v1815 = vsel %vm1455, %v1682, %v1623
      %v1816 = vsel %vm1455, %v1687, %v1624
      %v1817 = vsel %vm1455, %v1692, %v1625
      %v1818 = vsel %vm1455, %v1697, %v1626
      %v1819 = vsel %vm1455, %v1702, %v1627
      %v1820 = vsel %vm1455, %v1707, %v1628
      %v1821 = vsel %vm1455, %v1712, %v1629
      %v1822 = vsel %vm1455, %v1717, %v1630
      %v1823 = vsel %vm1455, %v1722, %v1631
      %v1824 = vsel %vm1455, %v1727, %v1632
      %v1825 = vsel %vm1455, %v1732, %v1633
      %v1826 = vsel %vm1455, %v1737, %v1634
      %v1827 = vsel %vm1455, %v1742, %v1635
      %v1828 = vsel %vm1455, %v1747, %v1636
      %v1829 = vsel %vm1455, %v1752, %v1637
      %v1830 = vsel %vm1455, %v1757, %v1638
      %v1831 = vsel %vm1455, %v1762, %v1639
      %v1832 = vsel %vm1455, %v1767, %v1640
      %v1833 = vsel %vm1455, %v1772, %v1641
      %v1834 = vsel %vm1455, %v1777, %v1642
      %v1835 = vsel %vm1455, %v1782, %v1643
      %v1836 = vsel %vm1455, %v1787, %v1644
      %v1837 = vsel %vm1455, %v1792, %v1645
      %v1838 = vsel %vm1455, %v1797, %v1646
      %v1839 = vsel %vm1455, %v1802, %v1647
      %v1840 = vsel %vm1455, %v1807, %v1648
      %1841 = vst [vmem:[%s275] sm:$0xff] %v1809
      %1842 = vst [vmem:[%s275 + $0x8] sm:$0xff] %v1810
      %1843 = vst [vmem:[%s275 + $0x10] sm:$0xff] %v1811
      %1844 = vst [vmem:[%s275 + $0x18] sm:$0xff] %v1812
      %1845 = vst [vmem:[%s275 + $0x20] sm:$0xff] %v1813
      %1846 = vst [vmem:[%s275 + $0x28] sm:$0xff] %v1814
      %1847 = vst [vmem:[%s275 + $0x30] sm:$0xff] %v1815
      %1848 = vst [vmem:[%s275 + $0x38] sm:$0xff] %v1816
      %1849 = vst [vmem:[%s275 + $0x40] sm:$0xff] %v1817
      %1850 = vst [vmem:[%s275 + $0x48] sm:$0xff] %v1818
      %1851 = vst [vmem:[%s275 + $0x50] sm:$0xff] %v1819
      %1852 = vst [vmem:[%s275 + $0x58] sm:$0xff] %v1820
      %1853 = vst [vmem:[%s275 + $0x60] sm:$0xff] %v1821
      %1854 = vst [vmem:[%s275 + $0x68] sm:$0xff] %v1822
      %1855 = vst [vmem:[%s275 + $0x70] sm:$0xff] %v1823
      %1856 = vst [vmem:[%s275 + $0x78] sm:$0xff] %v1824
      %1857 = vst [vmem:[%s275 + $0x80] sm:$0xff] %v1825
      %1858 = vst [vmem:[%s275 + $0x88] sm:$0xff] %v1826
      %1859 = vst [vmem:[%s275 + $0x90] sm:$0xff] %v1827
      %1860 = vst [vmem:[%s275 + $0x98] sm:$0xff] %v1828
      %1861 = vst [vmem:[%s275 + $0xa0] sm:$0xff] %v1829
      %1862 = vst [vmem:[%s275 + $0xa8] sm:$0xff] %v1830
      %1863 = vst [vmem:[%s275 + $0xb0] sm:$0xff] %v1831
      %1864 = vst [vmem:[%s275 + $0xb8] sm:$0xff] %v1832
      %1865 = vst [vmem:[%s275 + $0xc0] sm:$0xff] %v1833
      %1866 = vst [vmem:[%s275 + $0xc8] sm:$0xff] %v1834
      %1867 = vst [vmem:[%s275 + $0xd0] sm:$0xff] %v1835
      %1868 = vst [vmem:[%s275 + $0xd8] sm:$0xff] %v1836
      %1869 = vst [vmem:[%s275 + $0xe0] sm:$0xff] %v1837
      %1870 = vst [vmem:[%s275 + $0xe8] sm:$0xff] %v1838
      %1871 = vst [vmem:[%s275 + $0xf0] sm:$0xff] %v1839
      %1872 = vst [vmem:[%s275 + $0xf8] sm:$0xff] %v1840
      %s1873 = smul.u32 32, %s19
      %p1874 = scmp.lt.s32.totalorder %s1873, 95
      %s1875 = scalar_select %p1874, %s1873, 95
      %p1876 = scmp.lt.s32.totalorder %s20, 0
      %s1877 = scalar_select %p1876, %s20, 0
      %s1878 = sadd.s32 %s1877, %s1875
      %s1879 = smul.addr %s1878, 8
      %s1880 = scalar_lea.vmem %s4, %s1879
      // Predicated region
      $region37: #{_lambda_.11} parent=35 // pred_check
        %p1881 = pneg %p151
      $region38: #{_lambda_.11} parent=35 // pred_check_branch
        %1883 = sbr.rel (%p1881) target = $region40
      $region39: #{_lambda_.11} parent=35 // pred_region
        %s1884 = smul.u32 32, %s19
      $region40: #{_lambda_.11} parent=35 // pred_fallthru
        _
    $region36: #{_lambda_.11} parent=5 // pred_fallthru
      _
    %p1885 = scmp.le.s32.totalorder 2, %s10
    // Predicated region
    $region41: #{_lambda_.11} parent=5 // pred_check
      %p1886 = pneg %p1885
    $region42: #{_lambda_.11} parent=5 // pred_check_branch
      %1888 = sbr.rel (%p1886) target = $region44
    $region43: #{_lambda_.11} parent=5 // pred_region
      %s1889 = ssub.s32 %s10, 2
      // Predicated region
      $region45: #{_lambda_.11} parent=43 // pred_check
        %p1890 = pneg %p157
      $region46: #{_lambda_.11} parent=43 // pred_check_branch
        %1892 = sbr.rel (%p1890) target = $region48
      $region47: #{_lambda_.11} parent=43 // pred_region
        %s1893 = smul.u32 32, %s21
        %p1894 = scmp.lt.s32.totalorder %s1893, 95
        %s1895 = scalar_select %p1894, %s1893, 95
        %p1896 = scmp.lt.s32.totalorder %s22, 0
        %s1897 = scalar_select %p1896, %s22, 0
        %s1898 = sadd.s32 %s1897, %s1895
        %s1899 = smul.addr %s1898, 8
        %s1900 = scalar_lea.vmem %s4, %s1899
      $region48: #{_lambda_.11} parent=43 // pred_fallthru
        _
    $region44: #{_lambda_.11} parent=5 // pred_fallthru
      _
  $region6: #{_lambda_.11} parent=0 // loop_footer
    %s14 = sadd.s32 1, %s10
  $region7: #{_lambda_.11} parent=0 // loop_footer_branch
    %9 = sbr.rel target = $region3
  $region8: #{_lambda_.11} parent=0 // loop_exit
    _

</llo_original>
